<compile_context>
chip_gen: v7x
topology: tpu7x:2x2x1
jax: 0.10.0
libtpu: 0.0.40
codegen_flags: <defaults>
</compile_context>

<pallas_src>
import functools

import jax
import jax.numpy as jnp
from jax import lax
from jax.experimental import pallas as pl
from jax.experimental.pallas import tpu as pltpu

LANE = 128


def _round_up(x, m):
    return (x + m - 1) // m * m


def _vmem_capacity_bytes():
    try:
        return int(pltpu.get_tpu_info().vmem_capacity_bytes)
    except Exception:
        return 64 << 20                      # v7x-safe fallback


# ---------------- fused kernel ----------------

def _make_fused_kernel(*, has_expand, use_shortcut, TH, TH_in, Wo, Wp, stride,
                       col_starts, n_tiles):
    """expand(1x1+BN+ReLU6) -> depthwise 3x3(+BN+ReLU6) -> project(1x1+BN)(+res)."""
    L = (TH - 1) * stride * Wp + Wo          # rows of the band-wide depthwise result

    def kernel(*refs):
        i = 0
        x_ref = refs[i]; i += 1                  # (Hp*Wp, Cin_k)  bf16 padded image (flat)
        if has_expand:
            w1_ref = refs[i]; i += 1             # (Cin_k, Hid_p)  bf16, bias in last row
        wdw_ref = refs[i]; i += 1                # (9, Hid_p)      f32 depthwise taps
        b2_ref = refs[i]; i += 1                 # (1, Hid_p)      f32
        w3_ref = refs[i]; i += 1                 # (Hid_p, Cout_p) bf16
        b3_ref = refs[i]; i += 1                 # (1, Cout_p)     f32
        if use_shortcut:
            res_ref = refs[i]; i += 1            # (TH*Wo, Cout_p) bf16
        o_ref = refs[i]; i += 1                  # (TH*Wo, Cout_p)
        hbuf = refs[i]; i += 1                   # VMEM (TH_in*Wp, Hid_p) f32
        accbuf = refs[i]; i += 1                 # VMEM (L, Hid_p)        f32
        dwbuf = refs[i]                          # VMEM (TH*Wo, Hid_p)    f32

        # First padded-image row of this band (Wp is 8-aligned -> base is too).
        if n_tiles == 1:
            base = 0
        else:
            base = pl.multiple_of(pl.program_id(1) * (TH * stride * Wp), 8)

        # -- stage 1: 1x1 expand conv (+BN+ReLU6), bf16 MXU, f32 accumulate.
        # The expand bias and the spatial-padding mask are folded into the
        # matmul via a constant-1 extra input channel (padding rows -> 0).
        xin = x_ref[pl.ds(base, TH_in * Wp), :]
        if has_expand:
            h = jnp.dot(xin, w1_ref[...], preferred_element_type=jnp.float32)
            hbuf[...] = jnp.clip(h, 0.0, 6.0)
        else:
            hbuf[...] = xin.astype(jnp.float32)

        # -- stage 2: depthwise 3x3 (+BN bias + ReLU6), band-wide: 9 large
        #    shifted FMA passes instead of 9*TH tiny per-row taps.
        w_all = wdw_ref[...]                     # (9, Hid_p), loaded/hoisted once
        acc = hbuf[pl.ds(col_starts[0], L), :] * w_all[0:1, :]
        for k in range(1, 9):
            kh, kw = divmod(k, 3)
            off = kh * Wp + col_starts[kw]
            acc = acc + hbuf[pl.ds(off, L), :] * w_all[k:k + 1, :]
        accbuf[...] = jnp.clip(acc + b2_ref[...], 0.0, 6.0)

        # gather the TH valid output rows (row pitch Wp -> contiguous Wo rows)
        for r in range(TH):
            dwbuf[pl.ds(r * Wo, Wo), :] = accbuf[pl.ds(r * stride * Wp, Wo), :]

        # -- stage 3: 1x1 projection conv (+BN), bf16 MXU, f32 accumulate,
        #    + residual, one lane-dense store.
        y = jnp.dot(dwbuf[...].astype(jnp.bfloat16), w3_ref[...],
                    preferred_element_type=jnp.float32)
        y = y + b3_ref[...]
        if use_shortcut:
            y = y + res_ref[...].astype(jnp.float32)
        o_ref[...] = y.astype(o_ref.dtype)

    return kernel


# ---------------- tiling helpers ----------------

def _col_layout(Wp, stride):
    """Column permutation (group columns by index mod stride) and the start of
    each of the 3 horizontal taps in the permuted, 8-aligned-pitch layout."""
    groups = [list(range(g, Wp, stride)) for g in range(stride)]
    perm = [c for grp in groups for c in grp]
    starts = []
    for kw in range(3):
        g = kw % stride
        starts.append(sum(len(groups[h]) for h in range(g)) + kw // stride)
    return perm, tuple(starts)


def _pick_tile_rows(Ho, Wo, Wp, hid_p, cout_p, stride, use_shortcut,
                    fixed_bytes, budget, max_rows=64):
    """Largest divisor of Ho (<= max_rows) whose full VMEM footprint (scratch +
    double-buffered output/residual + fixed inputs) fits the budget, with an
    8-aligned output block."""
    best = None
    for th in range(1, min(Ho, max_rows) + 1):
        if Ho % th:
            continue
        if th != Ho and (th * Wo) % 8 != 0:
            continue
        th_in = (th - 1) * stride + 3
        band = (th - 1) * stride * Wp + Wo
        scratch = (th_in * Wp + band + th * Wo) * hid_p * 4
        io = 2 * th * Wo * cout_p * 4                    # output blocks (f32, 2 bufs)
        if use_shortcut:
            io += 2 * th * Wo * cout_p * 2               # residual blocks (bf16, 2 bufs)
        if fixed_bytes + scratch + io <= budget:
            best = th
    if best is None:
        # TODO(synk): band-sized manual DMA (make_async_copy) of x for images
        # too large for the whole-image BlockSpec path.
        raise ValueError(
            "Inverted_Residual_Block pallas kernel: no row tile fits in VMEM "
            f"(Ho={Ho}, Wo={Wo}, hidden_padded={hid_p}).")
    return best


# ---------------- parameters & BN folding ----------------

def _fold_bn(w, gamma, beta, mean, var, eps=1e-5):
    scale = gamma / jnp.sqrt(var + eps)
    return w * scale, beta - mean * scale


def _init_bn(key, c):
    k1, k2, k3, k4 = jax.random.split(key, 4)
    return dict(
        gamma=1.0 + 0.1 * jax.random.normal(k1, (c,), jnp.float32),
        beta=0.1 * jax.random.normal(k2, (c,), jnp.float32),
        mean=0.1 * jax.random.normal(k3, (c,), jnp.float32),
        var=1.0 + 0.1 * jax.random.uniform(k4, (c,), jnp.float32),
    )


def init_params(key, in_channel, out_channel, stride, expand_ratio):
    del stride
    hidden = in_channel * expand_ratio
    keys = jax.random.split(key, 6)
    params = {}
    if expand_ratio != 1:
        params["w_expand"] = 0.1 * jax.random.normal(
            keys[0], (in_channel, hidden), jnp.float32)       # 1x1 conv (Cin, Chid)
        params["bn1"] = _init_bn(keys[1], hidden)
    params["w_dw"] = 0.1 * jax.random.normal(
        keys[2], (9, hidden), jnp.float32)                    # depthwise 3x3 (kh*3+kw, Chid)
    params["bn2"] = _init_bn(keys[3], hidden)
    params["w_proj"] = 0.1 * jax.random.normal(
        keys[4], (hidden, out_channel), jnp.float32)          # 1x1 conv (Chid, Cout)
    params["bn3"] = _init_bn(keys[5], out_channel)
    return params


def fold_params(params, *, in_channel, out_channel, expand_ratio, eps=1e-5):
    """Fold eval-mode BatchNorm into conv weights/biases once; zero-pad the
    hidden/out channel dims to lane multiples; cast matmul weights to bf16."""
    hidden = in_channel * expand_ratio
    hid_p = _round_up(hidden, LANE)
    cout_p = _round_up(out_channel, LANE)
    folded = {}
    if expand_ratio != 1:
        w1, b1 = _fold_bn(params["w_expand"], **params["bn1"], eps=eps)
        w1a = jnp.concatenate([w1, b1[None, :]], axis=0)      # bias as extra input row
        folded["w1"] = jnp.pad(
            w1a, ((0, 0), (0, hid_p - hidden))).astype(jnp.bfloat16)
    w2, b2 = _fold_bn(params["w_dw"], **params["bn2"], eps=eps)
    folded["w_dw"] = jnp.pad(w2, ((0, 0), (0, hid_p - hidden)))           # f32
    folded["b2"] = jnp.pad(b2, (0, hid_p - hidden)).reshape(1, hid_p)     # f32
    w3, b3 = _fold_bn(params["w_proj"], **params["bn3"], eps=eps)
    folded["w3"] = jnp.pad(
        w3, ((0, hid_p - hidden), (0, cout_p - out_channel))).astype(jnp.bfloat16)
    folded["b3"] = jnp.pad(b3, (0, cout_p - out_channel)).reshape(1, cout_p)
    return folded


# ---------------- module forward ----------------

@functools.partial(
    jax.jit,
    static_argnames=("in_channel", "out_channel", "stride", "expand_ratio",
                     "max_tile_rows"))
def inverted_residual_block(folded, x_nchw, *, in_channel, out_channel, stride,
                            expand_ratio, max_tile_rows=64):
    hidden = in_channel * expand_ratio
    has_expand = expand_ratio != 1
    use_shortcut = (stride == 1 and in_channel == out_channel)
    hid_p = _round_up(hidden, LANE)
    cout_p = _round_up(out_channel, LANE)

    x = jnp.transpose(x_nchw, (0, 2, 3, 1))          # NCHW -> NHWC
    N, H, W, _ = x.shape
    Ho = (H - 1) // stride + 1
    Wo = (W - 1) // stride + 1
    Hp = H + 2
    Wp = _round_up(W + 2, 8)                         # 8-aligned row pitch

    xb = x.astype(jnp.bfloat16)                      # bf16 MXU inputs, half the DMA bytes
    if has_expand:
        # Constant-1 channel folds expand bias + spatial-padding mask into the matmul.
        xk = jnp.concatenate([xb, jnp.ones((N, H, W, 1), jnp.bfloat16)], axis=-1)
        cin_k = in_channel + 1
    else:
        # No expand: x IS the hidden activation; pad channels to lane width.
        xk = jnp.pad(xb, ((0, 0), (0, 0), (0, 0), (0, hid_p - in_channel)))
        cin_k = hid_p

    perm, col_starts = _col_layout(Wp, stride)
    xpad = jnp.pad(xk, ((0, 0), (1, 1), (1, Wp - W - 1), (0, 0)))
    if stride != 1:
        xpad = xpad[:, :, jnp.asarray(perm), :]      # stride-2 column de-interleave
    xflat = xpad.reshape(N, Hp * Wp, cin_k)

    # ---- generation-aware VMEM budgeting & tile choice ----
    phys = _vmem_capacity_bytes()
    fixed = 2 * Hp * Wp * cin_k * 2                  # whole-image x block, bf16, 2 bufs
    fixed += 2 * (9 * hid_p * 4 + hid_p * 4 + hid_p * cout_p * 2 + cout_p * 4)
    if has_expand:
        fixed += 2 * cin_k * hid_p * 2
    TH = _pick_tile_rows(Ho, Wo, Wp, hid_p, cout_p, stride, use_shortcut,
                         fixed, int(phys * 0.6), max_rows=max_tile_rows)
    TH_in = (TH - 1) * stride + 3
    L = (TH - 1) * stride * Wp + Wo
    n_tiles = Ho // TH
    used = fixed + (TH_in * Wp + L + TH * Wo) * hid_p * 4 + 2 * TH * Wo * cout_p * 4
    if use_shortcut:
        used += 2 * TH * Wo * cout_p * 2
    vmem_limit = int(min((phys * 9) // 10, max(used + (8 << 20), 32 << 20)))

    args = [xflat]
    in_specs = [pl.BlockSpec((None, Hp * Wp, cin_k), lambda n, j: (n, 0, 0))]
    if has_expand:
        args.append(folded["w1"])
        in_specs.append(pl.BlockSpec((cin_k, hid_p), lambda n, j: (0, 0)))
    args += [folded["w_dw"], folded["b2"], folded["w3"], folded["b3"]]
    in_specs += [
        pl.BlockSpec((9, hid_p), lambda n, j: (0, 0)),
        pl.BlockSpec((1, hid_p), lambda n, j: (0, 0)),
        pl.BlockSpec((hid_p, cout_p), lambda n, j: (0, 0)),
        pl.BlockSpec((1, cout_p), lambda n, j: (0, 0)),
    ]
    if use_shortcut:
        res2d = jnp.pad(
            xb, ((0, 0), (0, 0), (0, 0), (0, cout_p - in_channel))
        ).reshape(N, H * W, cout_p)
        args.append(res2d)
        in_specs.append(pl.BlockSpec((None, TH * Wo, cout_p), lambda n, j: (n, j, 0)))

    kernel = _make_fused_kernel(
        has_expand=has_expand, use_shortcut=use_shortcut, TH=TH, TH_in=TH_in,
        Wo=Wo, Wp=Wp, stride=stride, col_starts=col_starts, n_tiles=n_tiles)

    out2d = pl.pallas_call(
        kernel,
        out_shape=jax.ShapeDtypeStruct((N, Ho * Wo, cout_p), x_nchw.dtype),
        grid=(N, n_tiles),
        in_specs=in_specs,
        out_specs=pl.BlockSpec((None, TH * Wo, cout_p), lambda n, j: (n, j, 0)),
        scratch_shapes=[
            pltpu.VMEM((TH_in * Wp, hid_p), jnp.float32),   # expanded hidden band
            pltpu.VMEM((L, hid_p), jnp.float32),            # band-wide depthwise result
            pltpu.VMEM((TH * Wo, hid_p), jnp.float32),      # gathered depthwise rows
        ],
        compiler_params=pltpu.CompilerParams(
            # N "parallel" for megacore; row bands "arbitrary" so the per-image
            # x block is DMA'd once and reused across bands (v7x: avoids both
            # cores re-fetching the same image).
            dimension_semantics=("parallel", "arbitrary"),
            vmem_limit_bytes=vmem_limit),
    )(*args)

    out = out2d[..., :out_channel].reshape(N, Ho, Wo, out_channel)
    return jnp.transpose(out, (0, 3, 1, 2))          # NHWC -> NCHW


# ---------------- pure-JAX reference (mirrors the kernel's bf16 casts) ----------------

def _reference(folded, x_nchw, *, in_channel, out_channel, stride, expand_ratio):
    hidden = in_channel * expand_ratio
    use_shortcut = (stride == 1 and in_channel == out_channel)
    hi = lax.Precision.HIGHEST
    x = jnp.transpose(x_nchw, (0, 2, 3, 1))
    xb = x.astype(jnp.bfloat16).astype(jnp.float32)
    h = xb
    if expand_ratio != 1:
        w1 = folded["w1"].astype(jnp.float32)
        w, b = w1[:in_channel, :hidden], w1[in_channel, :hidden]
        h = jnp.clip(jnp.einsum("nhwc,cd->nhwd", xb, w, precision=hi) + b, 0.0, 6.0)
    wdw = folded["w_dw"][:, :hidden].reshape(3, 3, 1, hidden)
    h = lax.conv_general_dilated(
        h, wdw, (stride, stride), ((1, 1), (1, 1)),
        dimension_numbers=("NHWC", "HWIO", "NHWC"),
        feature_group_count=hidden, precision=hi)
    h = jnp.clip(h + folded["b2"][0, :hidden], 0.0, 6.0)
    hb = h.astype(jnp.bfloat16).astype(jnp.float32)
    w3 = folded["w3"][:hidden, :out_channel].astype(jnp.float32)
    y = jnp.einsum("nhwc,cd->nhwd", hb, w3, precision=hi) + folded["b3"][0, :out_channel]
    if use_shortcut:
        y = y + xb
    return jnp.transpose(y, (0, 3, 1, 2))


if __name__ == "__main__":
    key = jax.random.PRNGKey(0)
    configs = [
        dict(in_channel=4, out_channel=4, stride=1, expand_ratio=6, N=2, H=16, W=16,
             max_tile_rows=64),   # shortcut + expand
        dict(in_channel=4, out_channel=8, stride=2, expand_ratio=6, N=2, H=16, W=16,
             max_tile_rows=64),   # stride 2
        dict(in_channel=8, out_channel=8, stride=1, expand_ratio=1, N=2, H=16, W=16,
             max_tile_rows=64),   # no expand, shortcut
        dict(in_channel=4, out_channel=4, stride=1, expand_ratio=6, N=2, H=16, W=16,
             max_tile_rows=4),    # force multiple row bands (dynamic-base path)
    ]
    for cfg in configs:
        key, kx, kp = jax.random.split(key, 3)
        x = jax.random.normal(
            kx, (cfg["N"], cfg["in_channel"], cfg["H"], cfg["W"]), jnp.float32)  # NCHW
        params = init_params(kp, cfg["in_channel"], cfg["out_channel"],
                             cfg["stride"], cfg["expand_ratio"])
        folded = fold_params(params, in_channel=cfg["in_channel"],
                             out_channel=cfg["out_channel"],
                             expand_ratio=cfg["expand_ratio"])

        out = inverted_residual_block(
            folded, x, in_channel=cfg["in_channel"], out_channel=cfg["out_channel"],
            stride=cfg["stride"], expand_ratio=cfg["expand_ratio"],
            max_tile_rows=cfg["max_tile_rows"])
        out = jax.block_until_ready(out)

        ref = _reference(folded, x, in_channel=cfg["in_channel"],
                         out_channel=cfg["out_channel"], stride=cfg["stride"],
                         expand_ratio=cfg["expand_ratio"])
        Ho = (cfg["H"] - 1) // cfg["stride"] + 1
        Wo = (cfg["W"] - 1) // cfg["stride"] + 1
        assert out.shape == (cfg["N"], cfg["out_channel"], Ho, Wo), (out.shape, cfg)
        assert bool(jnp.allclose(out, ref, atol=1e-2, rtol=1e-2)), \
            f"mismatch vs reference: {cfg}"

    print("KERNEL_OK")
</pallas_src>

<mosaic_0001>
module attributes {stable_mosaic.version = 11 : i64} {
  func.func @kernel(%arg0: i32, %arg1: i32, %arg2: memref<1x432x5xbf16, #tpu.memory_space<vmem>>, %arg3: memref<5x128xbf16, #tpu.memory_space<vmem>>, %arg4: memref<9x128xf32, #tpu.memory_space<vmem>>, %arg5: memref<1x128xf32, #tpu.memory_space<vmem>>, %arg6: memref<128x128xbf16, #tpu.memory_space<vmem>>, %arg7: memref<1x128xf32, #tpu.memory_space<vmem>>, %arg8: memref<1x256x128xbf16, #tpu.memory_space<vmem>>, %arg9: memref<1x256x128xf32, #tpu.memory_space<vmem>>, %arg10: memref<432x128xf32, #tpu.memory_space<vmem>>, %arg11: memref<376x128xf32, #tpu.memory_space<vmem>>, %arg12: memref<256x128xf32, #tpu.memory_space<vmem>>) attributes {dimension_semantics = [#tpu.dimension_semantics<parallel>, #tpu.dimension_semantics<arbitrary>], iteration_bounds = array<i64: 2, 1>, scalar_prefetch = 0 : i64, scratch_operands = 3 : i64, tpu.core_type = #tpu.core_type<tc>, window_params = [{transform_indices = @transform_0, window_bounds = array<i64: 1, 432, 5>}, {pipeline_mode = #tpu.pipeline_mode<synchronous>, transform_indices = @transform_1, window_bounds = array<i64: 5, 128>}, {pipeline_mode = #tpu.pipeline_mode<synchronous>, transform_indices = @transform_2, window_bounds = array<i64: 9, 128>}, {pipeline_mode = #tpu.pipeline_mode<synchronous>, transform_indices = @transform_3, window_bounds = array<i64: 1, 128>}, {pipeline_mode = #tpu.pipeline_mode<synchronous>, transform_indices = @transform_4, window_bounds = array<i64: 128, 128>}, {pipeline_mode = #tpu.pipeline_mode<synchronous>, transform_indices = @transform_5, window_bounds = array<i64: 1, 128>}, {transform_indices = @transform_6, window_bounds = array<i64: 1, 256, 128>}, {transform_indices = @transform_7, window_bounds = array<i64: 1, 256, 128>}]} {
    %c0 = arith.constant 0 : index
    %c0_0 = arith.constant 0 : index
    %c0_1 = arith.constant 0 : index
    %0 = vector.load %arg2[%c0, %c0_0, %c0_1] : memref<1x432x5xbf16, #tpu.memory_space<vmem>>, vector<1x432x5xbf16>
    %1 = vector.shape_cast %0 : vector<1x432x5xbf16> to vector<432x5xbf16>
    %c0_2 = arith.constant 0 : index
    %c0_3 = arith.constant 0 : index
    %2 = vector.load %arg3[%c0_2, %c0_3] : memref<5x128xbf16, #tpu.memory_space<vmem>>, vector<5x128xbf16>
    %cst = arith.constant dense<0.000000e+00> : vector<432x128xf32>
    %3 = tpu.matmul %1, %2, %cst {dimension_numbers = #tpu.dot_dimension_numbers<[1], [0], [0], [1], [0, 0, 1, 1], [], []>} : vector<432x5xbf16>, vector<5x128xbf16>, vector<432x128xf32> -> vector<432x128xf32>
    %cst_4 = arith.constant 0.000000e+00 : f32
    %cst_5 = arith.constant 6.000000e+00 : f32
    %4 = vector.broadcast %cst_4 : f32 to vector<432x128xf32>
    %5 = arith.maximumf %4, %3 : vector<432x128xf32>
    %6 = vector.broadcast %cst_5 : f32 to vector<432x128xf32>
    %7 = arith.minimumf %6, %5 : vector<432x128xf32>
    %c0_6 = arith.constant 0 : index
    %c0_7 = arith.constant 0 : index
    %8 = vector.load %arg10[%c0_6, %c0_7] : memref<432x128xf32, #tpu.memory_space<vmem>>, vector<432x128xf32>
    tpu.vector_store %arg10[%c0_6, %c0_7], %7 {strides = array<i32>} : memref<432x128xf32, #tpu.memory_space<vmem>>, vector<432x128xf32>,
    %c0_8 = arith.constant 0 : index
    %c0_9 = arith.constant 0 : index
    %9 = vector.load %arg4[%c0_8, %c0_9] : memref<9x128xf32, #tpu.memory_space<vmem>>, vector<9x128xf32>
    %c0_10 = arith.constant 0 : index
    %c0_11 = arith.constant 0 : index
    %10 = vector.load %arg10[%c0_10, %c0_11] : memref<432x128xf32, #tpu.memory_space<vmem>>, vector<376x128xf32>
    %11 = vector.extract_strided_slice %9 {offsets = [0, 0], sizes = [1, 128], strides = [1, 1]} : vector<9x128xf32> to vector<1x128xf32>
    %12 = vector.broadcast %11 : vector<1x128xf32> to vector<376x128xf32>
    %13 = arith.mulf %10, %12 : vector<376x128xf32>
    %c1 = arith.constant 1 : index
    %c0_12 = arith.constant 0 : index
    %14 = vector.load %arg10[%c1, %c0_12] : memref<432x128xf32, #tpu.memory_space<vmem>>, vector<376x128xf32>
    %15 = vector.extract_strided_slice %9 {offsets = [1, 0], sizes = [1, 128], strides = [1, 1]} : vector<9x128xf32> to vector<1x128xf32>
    %16 = vector.broadcast %15 : vector<1x128xf32> to vector<376x128xf32>
    %17 = arith.mulf %14, %16 : vector<376x128xf32>
    %18 = arith.addf %13, %17 : vector<376x128xf32>
    %c2 = arith.constant 2 : index
    %c0_13 = arith.constant 0 : index
    %19 = vector.load %arg10[%c2, %c0_13] : memref<432x128xf32, #tpu.memory_space<vmem>>, vector<376x128xf32>
    %20 = vector.extract_strided_slice %9 {offsets = [2, 0], sizes = [1, 128], strides = [1, 1]} : vector<9x128xf32> to vector<1x128xf32>
    %21 = vector.broadcast %20 : vector<1x128xf32> to vector<376x128xf32>
    %22 = arith.mulf %19, %21 : vector<376x128xf32>
    %23 = arith.addf %18, %22 : vector<376x128xf32>
    %c24 = arith.constant 24 : index
    %c0_14 = arith.constant 0 : index
    %24 = vector.load %arg10[%c24, %c0_14] : memref<432x128xf32, #tpu.memory_space<vmem>>, vector<376x128xf32>
    %25 = vector.extract_strided_slice %9 {offsets = [3, 0], sizes = [1, 128], strides = [1, 1]} : vector<9x128xf32> to vector<1x128xf32>
    %26 = vector.broadcast %25 : vector<1x128xf32> to vector<376x128xf32>
    %27 = arith.mulf %24, %26 : vector<376x128xf32>
    %28 = arith.addf %23, %27 : vector<376x128xf32>
    %c25 = arith.constant 25 : index
    %c0_15 = arith.constant 0 : index
    %29 = vector.load %arg10[%c25, %c0_15] : memref<432x128xf32, #tpu.memory_space<vmem>>, vector<376x128xf32>
    %30 = vector.extract_strided_slice %9 {offsets = [4, 0], sizes = [1, 128], strides = [1, 1]} : vector<9x128xf32> to vector<1x128xf32>
    %31 = vector.broadcast %30 : vector<1x128xf32> to vector<376x128xf32>
    %32 = arith.mulf %29, %31 : vector<376x128xf32>
    %33 = arith.addf %28, %32 : vector<376x128xf32>
    %c26 = arith.constant 26 : index
    %c0_16 = arith.constant 0 : index
    %34 = vector.load %arg10[%c26, %c0_16] : memref<432x128xf32, #tpu.memory_space<vmem>>, vector<376x128xf32>
    %35 = vector.extract_strided_slice %9 {offsets = [5, 0], sizes = [1, 128], strides = [1, 1]} : vector<9x128xf32> to vector<1x128xf32>
    %36 = vector.broadcast %35 : vector<1x128xf32> to vector<376x128xf32>
    %37 = arith.mulf %34, %36 : vector<376x128xf32>
    %38 = arith.addf %33, %37 : vector<376x128xf32>
    %c48 = arith.constant 48 : index
    %c0_17 = arith.constant 0 : index
    %39 = vector.load %arg10[%c48, %c0_17] : memref<432x128xf32, #tpu.memory_space<vmem>>, vector<376x128xf32>
    %40 = vector.extract_strided_slice %9 {offsets = [6, 0], sizes = [1, 128], strides = [1, 1]} : vector<9x128xf32> to vector<1x128xf32>
    %41 = vector.broadcast %40 : vector<1x128xf32> to vector<376x128xf32>
    %42 = arith.mulf %39, %41 : vector<376x128xf32>
    %43 = arith.addf %38, %42 : vector<376x128xf32>
    %c49 = arith.constant 49 : index
    %c0_18 = arith.constant 0 : index
    %44 = vector.load %arg10[%c49, %c0_18] : memref<432x128xf32, #tpu.memory_space<vmem>>, vector<376x128xf32>
    %45 = vector.extract_strided_slice %9 {offsets = [7, 0], sizes = [1, 128], strides = [1, 1]} : vector<9x128xf32> to vector<1x128xf32>
    %46 = vector.broadcast %45 : vector<1x128xf32> to vector<376x128xf32>
    %47 = arith.mulf %44, %46 : vector<376x128xf32>
    %48 = arith.addf %43, %47 : vector<376x128xf32>
    %c50 = arith.constant 50 : index
    %c0_19 = arith.constant 0 : index
    %49 = vector.load %arg10[%c50, %c0_19] : memref<432x128xf32, #tpu.memory_space<vmem>>, vector<376x128xf32>
    %50 = vector.extract_strided_slice %9 {offsets = [8, 0], sizes = [1, 128], strides = [1, 1]} : vector<9x128xf32> to vector<1x128xf32>
    %51 = vector.broadcast %50 : vector<1x128xf32> to vector<376x128xf32>
    %52 = arith.mulf %49, %51 : vector<376x128xf32>
    %53 = arith.addf %48, %52 : vector<376x128xf32>
    %c0_20 = arith.constant 0 : index
    %c0_21 = arith.constant 0 : index
    %54 = vector.load %arg5[%c0_20, %c0_21] : memref<1x128xf32, #tpu.memory_space<vmem>>, vector<1x128xf32>
    %55 = vector.broadcast %54 : vector<1x128xf32> to vector<376x128xf32>
    %56 = arith.addf %53, %55 : vector<376x128xf32>
    %cst_22 = arith.constant 0.000000e+00 : f32
    %cst_23 = arith.constant 6.000000e+00 : f32
    %57 = vector.broadcast %cst_22 : f32 to vector<376x128xf32>
    %58 = arith.maximumf %57, %56 : vector<376x128xf32>
    %59 = vector.broadcast %cst_23 : f32 to vector<376x128xf32>
    %60 = arith.minimumf %59, %58 : vector<376x128xf32>
    %c0_24 = arith.constant 0 : index
    %c0_25 = arith.constant 0 : index
    %61 = vector.load %arg11[%c0_24, %c0_25] : memref<376x128xf32, #tpu.memory_space<vmem>>, vector<376x128xf32>
    tpu.vector_store %arg11[%c0_24, %c0_25], %60 {strides = array<i32>} : memref<376x128xf32, #tpu.memory_space<vmem>>, vector<376x128xf32>,
    %c0_26 = arith.constant 0 : index
    %c0_27 = arith.constant 0 : index
    %62 = vector.load %arg11[%c0_26, %c0_27] : memref<376x128xf32, #tpu.memory_space<vmem>>, vector<16x128xf32>
    %c0_28 = arith.constant 0 : index
    %c0_29 = arith.constant 0 : index
    %63 = vector.load %arg12[%c0_28, %c0_29] : memref<256x128xf32, #tpu.memory_space<vmem>>, vector<16x128xf32>
    tpu.vector_store %arg12[%c0_28, %c0_29], %62 {strides = array<i32>} : memref<256x128xf32, #tpu.memory_space<vmem>>, vector<16x128xf32>,
    %c24_30 = arith.constant 24 : index
    %c0_31 = arith.constant 0 : index
    %64 = vector.load %arg11[%c24_30, %c0_31] : memref<376x128xf32, #tpu.memory_space<vmem>>, vector<16x128xf32>
    %c16 = arith.constant 16 : index
    %c0_32 = arith.constant 0 : index
    %65 = vector.load %arg12[%c16, %c0_32] : memref<256x128xf32, #tpu.memory_space<vmem>>, vector<16x128xf32>
    tpu.vector_store %arg12[%c16, %c0_32], %64 {strides = array<i32>} : memref<256x128xf32, #tpu.memory_space<vmem>>, vector<16x128xf32>,
    %c48_33 = arith.constant 48 : index
    %c0_34 = arith.constant 0 : index
    %66 = vector.load %arg11[%c48_33, %c0_34] : memref<376x128xf32, #tpu.memory_space<vmem>>, vector<16x128xf32>
    %c32 = arith.constant 32 : index
    %c0_35 = arith.constant 0 : index
    %67 = vector.load %arg12[%c32, %c0_35] : memref<256x128xf32, #tpu.memory_space<vmem>>, vector<16x128xf32>
    tpu.vector_store %arg12[%c32, %c0_35], %66 {strides = array<i32>} : memref<256x128xf32, #tpu.memory_space<vmem>>, vector<16x128xf32>,
    %c72 = arith.constant 72 : index
    %c0_36 = arith.constant 0 : index
    %68 = vector.load %arg11[%c72, %c0_36] : memref<376x128xf32, #tpu.memory_space<vmem>>, vector<16x128xf32>
    %c48_37 = arith.constant 48 : index
    %c0_38 = arith.constant 0 : index
    %69 = vector.load %arg12[%c48_37, %c0_38] : memref<256x128xf32, #tpu.memory_space<vmem>>, vector<16x128xf32>
    tpu.vector_store %arg12[%c48_37, %c0_38], %68 {strides = array<i32>} : memref<256x128xf32, #tpu.memory_space<vmem>>, vector<16x128xf32>,
    %c96 = arith.constant 96 : index
    %c0_39 = arith.constant 0 : index
    %70 = vector.load %arg11[%c96, %c0_39] : memref<376x128xf32, #tpu.memory_space<vmem>>, vector<16x128xf32>
    %c64 = arith.constant 64 : index
    %c0_40 = arith.constant 0 : index
    %71 = vector.load %arg12[%c64, %c0_40] : memref<256x128xf32, #tpu.memory_space<vmem>>, vector<16x128xf32>
    tpu.vector_store %arg12[%c64, %c0_40], %70 {strides = array<i32>} : memref<256x128xf32, #tpu.memory_space<vmem>>, vector<16x128xf32>,
    %c120 = arith.constant 120 : index
    %c0_41 = arith.constant 0 : index
    %72 = vector.load %arg11[%c120, %c0_41] : memref<376x128xf32, #tpu.memory_space<vmem>>, vector<16x128xf32>
    %c80 = arith.constant 80 : index
    %c0_42 = arith.constant 0 : index
    %73 = vector.load %arg12[%c80, %c0_42] : memref<256x128xf32, #tpu.memory_space<vmem>>, vector<16x128xf32>
    tpu.vector_store %arg12[%c80, %c0_42], %72 {strides = array<i32>} : memref<256x128xf32, #tpu.memory_space<vmem>>, vector<16x128xf32>,
    %c144 = arith.constant 144 : index
    %c0_43 = arith.constant 0 : index
    %74 = vector.load %arg11[%c144, %c0_43] : memref<376x128xf32, #tpu.memory_space<vmem>>, vector<16x128xf32>
    %c96_44 = arith.constant 96 : index
    %c0_45 = arith.constant 0 : index
    %75 = vector.load %arg12[%c96_44, %c0_45] : memref<256x128xf32, #tpu.memory_space<vmem>>, vector<16x128xf32>
    tpu.vector_store %arg12[%c96_44, %c0_45], %74 {strides = array<i32>} : memref<256x128xf32, #tpu.memory_space<vmem>>, vector<16x128xf32>,
    %c168 = arith.constant 168 : index
    %c0_46 = arith.constant 0 : index
    %76 = vector.load %arg11[%c168, %c0_46] : memref<376x128xf32, #tpu.memory_space<vmem>>, vector<16x128xf32>
    %c112 = arith.constant 112 : index
    %c0_47 = arith.constant 0 : index
    %77 = vector.load %arg12[%c112, %c0_47] : memref<256x128xf32, #tpu.memory_space<vmem>>, vector<16x128xf32>
    tpu.vector_store %arg12[%c112, %c0_47], %76 {strides = array<i32>} : memref<256x128xf32, #tpu.memory_space<vmem>>, vector<16x128xf32>,
    %c192 = arith.constant 192 : index
    %c0_48 = arith.constant 0 : index
    %78 = vector.load %arg11[%c192, %c0_48] : memref<376x128xf32, #tpu.memory_space<vmem>>, vector<16x128xf32>
    %c128 = arith.constant 128 : index
    %c0_49 = arith.constant 0 : index
    %79 = vector.load %arg12[%c128, %c0_49] : memref<256x128xf32, #tpu.memory_space<vmem>>, vector<16x128xf32>
    tpu.vector_store %arg12[%c128, %c0_49], %78 {strides = array<i32>} : memref<256x128xf32, #tpu.memory_space<vmem>>, vector<16x128xf32>,
    %c216 = arith.constant 216 : index
    %c0_50 = arith.constant 0 : index
    %80 = vector.load %arg11[%c216, %c0_50] : memref<376x128xf32, #tpu.memory_space<vmem>>, vector<16x128xf32>
    %c144_51 = arith.constant 144 : index
    %c0_52 = arith.constant 0 : index
    %81 = vector.load %arg12[%c144_51, %c0_52] : memref<256x128xf32, #tpu.memory_space<vmem>>, vector<16x128xf32>
    tpu.vector_store %arg12[%c144_51, %c0_52], %80 {strides = array<i32>} : memref<256x128xf32, #tpu.memory_space<vmem>>, vector<16x128xf32>,
    %c240 = arith.constant 240 : index
    %c0_53 = arith.constant 0 : index
    %82 = vector.load %arg11[%c240, %c0_53] : memref<376x128xf32, #tpu.memory_space<vmem>>, vector<16x128xf32>
    %c160 = arith.constant 160 : index
    %c0_54 = arith.constant 0 : index
    %83 = vector.load %arg12[%c160, %c0_54] : memref<256x128xf32, #tpu.memory_space<vmem>>, vector<16x128xf32>
    tpu.vector_store %arg12[%c160, %c0_54], %82 {strides = array<i32>} : memref<256x128xf32, #tpu.memory_space<vmem>>, vector<16x128xf32>,
    %c264 = arith.constant 264 : index
    %c0_55 = arith.constant 0 : index
    %84 = vector.load %arg11[%c264, %c0_55] : memref<376x128xf32, #tpu.memory_space<vmem>>, vector<16x128xf32>
    %c176 = arith.constant 176 : index
    %c0_56 = arith.constant 0 : index
    %85 = vector.load %arg12[%c176, %c0_56] : memref<256x128xf32, #tpu.memory_space<vmem>>, vector<16x128xf32>
    tpu.vector_store %arg12[%c176, %c0_56], %84 {strides = array<i32>} : memref<256x128xf32, #tpu.memory_space<vmem>>, vector<16x128xf32>,
    %c288 = arith.constant 288 : index
    %c0_57 = arith.constant 0 : index
    %86 = vector.load %arg11[%c288, %c0_57] : memref<376x128xf32, #tpu.memory_space<vmem>>, vector<16x128xf32>
    %c192_58 = arith.constant 192 : index
    %c0_59 = arith.constant 0 : index
    %87 = vector.load %arg12[%c192_58, %c0_59] : memref<256x128xf32, #tpu.memory_space<vmem>>, vector<16x128xf32>
    tpu.vector_store %arg12[%c192_58, %c0_59], %86 {strides = array<i32>} : memref<256x128xf32, #tpu.memory_space<vmem>>, vector<16x128xf32>,
    %c312 = arith.constant 312 : index
    %c0_60 = arith.constant 0 : index
    %88 = vector.load %arg11[%c312, %c0_60] : memref<376x128xf32, #tpu.memory_space<vmem>>, vector<16x128xf32>
    %c208 = arith.constant 208 : index
    %c0_61 = arith.constant 0 : index
    %89 = vector.load %arg12[%c208, %c0_61] : memref<256x128xf32, #tpu.memory_space<vmem>>, vector<16x128xf32>
    tpu.vector_store %arg12[%c208, %c0_61], %88 {strides = array<i32>} : memref<256x128xf32, #tpu.memory_space<vmem>>, vector<16x128xf32>,
    %c336 = arith.constant 336 : index
    %c0_62 = arith.constant 0 : index
    %90 = vector.load %arg11[%c336, %c0_62] : memref<376x128xf32, #tpu.memory_space<vmem>>, vector<16x128xf32>
    %c224 = arith.constant 224 : index
    %c0_63 = arith.constant 0 : index
    %91 = vector.load %arg12[%c224, %c0_63] : memref<256x128xf32, #tpu.memory_space<vmem>>, vector<16x128xf32>
    tpu.vector_store %arg12[%c224, %c0_63], %90 {strides = array<i32>} : memref<256x128xf32, #tpu.memory_space<vmem>>, vector<16x128xf32>,
    %c360 = arith.constant 360 : index
    %c0_64 = arith.constant 0 : index
    %92 = vector.load %arg11[%c360, %c0_64] : memref<376x128xf32, #tpu.memory_space<vmem>>, vector<16x128xf32>
    %c240_65 = arith.constant 240 : index
    %c0_66 = arith.constant 0 : index
    %93 = vector.load %arg12[%c240_65, %c0_66] : memref<256x128xf32, #tpu.memory_space<vmem>>, vector<16x128xf32>
    tpu.vector_store %arg12[%c240_65, %c0_66], %92 {strides = array<i32>} : memref<256x128xf32, #tpu.memory_space<vmem>>, vector<16x128xf32>,
    %c0_67 = arith.constant 0 : index
    %c0_68 = arith.constant 0 : index
    %94 = vector.load %arg12[%c0_67, %c0_68] : memref<256x128xf32, #tpu.memory_space<vmem>>, vector<256x128xf32>
    %95 = arith.truncf %94 : vector<256x128xf32> to vector<256x128xbf16>
    %c0_69 = arith.constant 0 : index
    %c0_70 = arith.constant 0 : index
    %96 = vector.load %arg6[%c0_69, %c0_70] : memref<128x128xbf16, #tpu.memory_space<vmem>>, vector<128x128xbf16>
    %cst_71 = arith.constant dense<0.000000e+00> : vector<256x128xf32>
    %97 = tpu.matmul %95, %96, %cst_71 {dimension_numbers = #tpu.dot_dimension_numbers<[1], [0], [0], [1], [0, 0, 1, 1], [], []>} : vector<256x128xbf16>, vector<128x128xbf16>, vector<256x128xf32> -> vector<256x128xf32>
    %c0_72 = arith.constant 0 : index
    %c0_73 = arith.constant 0 : index
    %98 = vector.load %arg7[%c0_72, %c0_73] : memref<1x128xf32, #tpu.memory_space<vmem>>, vector<1x128xf32>
    %99 = vector.broadcast %98 : vector<1x128xf32> to vector<256x128xf32>
    %100 = arith.addf %97, %99 : vector<256x128xf32>
    %c0_74 = arith.constant 0 : index
    %c0_75 = arith.constant 0 : index
    %c0_76 = arith.constant 0 : index
    %101 = vector.load %arg8[%c0_74, %c0_75, %c0_76] : memref<1x256x128xbf16, #tpu.memory_space<vmem>>, vector<1x256x128xbf16>
    %102 = vector.shape_cast %101 : vector<1x256x128xbf16> to vector<256x128xbf16>
    %103 = arith.extf %102 : vector<256x128xbf16> to vector<256x128xf32>
    %104 = arith.addf %100, %103 : vector<256x128xf32>
    %c0_77 = arith.constant 0 : index
    %c0_78 = arith.constant 0 : index
    %c0_79 = arith.constant 0 : index
    %105 = vector.load %arg9[%c0_77, %c0_78, %c0_79] : memref<1x256x128xf32, #tpu.memory_space<vmem>>, vector<1x256x128xf32>
    %106 = vector.shape_cast %105 : vector<1x256x128xf32> to vector<256x128xf32>
    %107 = vector.shape_cast %104 : vector<256x128xf32> to vector<1x256x128xf32>
    tpu.vector_store %arg9[%c0_77, %c0_78, %c0_79], %107 {strides = array<i32>} : memref<1x256x128xf32, #tpu.memory_space<vmem>>, vector<1x256x128xf32>,
    return
  }
  func.func @transform_0(%arg0: i32, %arg1: i32) -> (i32, i32, i32) {
    %c0_i32 = arith.constant 0 : i32
    %c0_i32_0 = arith.constant 0 : i32
    %c0_i32_1 = arith.constant 0 : i32
    return %arg0, %c0_i32, %c0_i32_0 : i32, i32, i32
  }
  func.func @transform_1(%arg0: i32, %arg1: i32) -> (i32, i32) {
    %c0_i32 = arith.constant 0 : i32
    %c0_i32_0 = arith.constant 0 : i32
    %c0_i32_1 = arith.constant 0 : i32
    return %c0_i32, %c0_i32_0 : i32, i32
  }
  func.func @transform_2(%arg0: i32, %arg1: i32) -> (i32, i32) {
    %c0_i32 = arith.constant 0 : i32
    %c0_i32_0 = arith.constant 0 : i32
    %c0_i32_1 = arith.constant 0 : i32
    return %c0_i32, %c0_i32_0 : i32, i32
  }
  func.func @transform_3(%arg0: i32, %arg1: i32) -> (i32, i32) {
    %c0_i32 = arith.constant 0 : i32
    %c0_i32_0 = arith.constant 0 : i32
    %c0_i32_1 = arith.constant 0 : i32
    return %c0_i32, %c0_i32_0 : i32, i32
  }
  func.func @transform_4(%arg0: i32, %arg1: i32) -> (i32, i32) {
    %c0_i32 = arith.constant 0 : i32
    %c0_i32_0 = arith.constant 0 : i32
    %c0_i32_1 = arith.constant 0 : i32
    return %c0_i32, %c0_i32_0 : i32, i32
  }
  func.func @transform_5(%arg0: i32, %arg1: i32) -> (i32, i32) {
    %c0_i32 = arith.constant 0 : i32
    %c0_i32_0 = arith.constant 0 : i32
    %c0_i32_1 = arith.constant 0 : i32
    return %c0_i32, %c0_i32_0 : i32, i32
  }
  func.func @transform_6(%arg0: i32, %arg1: i32) -> (i32, i32, i32) {
    %c0_i32 = arith.constant 0 : i32
    %c0_i32_0 = arith.constant 0 : i32
    return %arg0, %arg1, %c0_i32 : i32, i32, i32
  }
  func.func @transform_7(%arg0: i32, %arg1: i32) -> (i32, i32, i32) {
    %c0_i32 = arith.constant 0 : i32
    %c0_i32_0 = arith.constant 0 : i32
    return %arg0, %arg1, %c0_i32 : i32, i32, i32
  }
}

</mosaic_0001>

<llo_original>
// kernel: inverted_residual_block.1
$region0: #{inverted_residual_block.1}
  #allocation0 [shape = 'u32[]', space=smem, size = 0x4, offset = 0x4, fixed_abs, tag = 'smem constant byte address 0x4 - core index']
  #allocation1 [shape = 'u32[144,128]{1,0:T(1,128)}', space=vmem, size = 0x12000, scoped, tag = 'internal scratch']
  #allocation2 [shape = 'f32[432,128]{1,0:T(8,128)}', space=vmem, size = 0x36000, scoped, tag = 'scratch operand']
  #allocation3 [shape = 'f32[376,128]{1,0:T(8,128)}', space=vmem, size = 0x2f000, scoped, tag = 'scratch operand']
  #allocation4 [shape = 'f32[256,128]{1,0:T(8,128)}', space=vmem, size = 0x20000, scoped, tag = 'scratch operand']
  %s0 = inlined_call_operand.vmem [shape: bf16[2,432,5], index: 0, kind: input, shape index: {}]
  %s1 = inlined_call_operand.vmem [shape: bf16[5,128], index: 1, kind: input, shape index: {}]
  %s2 = inlined_call_operand.vmem [shape: f32[9,128], index: 2, kind: input, shape index: {}]
  %s3 = inlined_call_operand.vmem [shape: f32[1,128], index: 3, kind: input, shape index: {}]
  %s4 = inlined_call_operand.vmem [shape: bf16[128,128], index: 4, kind: input, shape index: {}]
  %s5 = inlined_call_operand.vmem [shape: f32[1,128], index: 5, kind: input, shape index: {}]
  %s6 = inlined_call_operand.vmem [shape: bf16[2,256,128], index: 6, kind: input, shape index: {}]
  %s7 = inlined_call_operand.vmem [shape: f32[2,256,128], index: 7, kind: output, shape index: {}]
  %s8 = sld [smem:[#allocation0]]
  $region61: #{inverted_residual_block.1} parent=0
    _
  %s10 = ssub.s32 1, %s8
  %s11 = scalar_select 0, %s10, %s8
  loop: start=0, step=1, limit=4
  $region2: #{inverted_residual_block.1} parent=0 // loop_pre_header
    _
  $region3: #{inverted_residual_block.1} parent=0 // loop_header
    %s13 = sphi 0, %s17
    %p14 = scmp.ge.s32.totalorder %s13, 4
    %s20 = sphi 0, %s32
    %s21 = sphi 0, %s28
    %s22 = sphi 0, %s20
    %s23 = sphi 0, %s21
    %s24 = sphi 0, %s22
    %s25 = sphi 0, %s23
    %s35 = sphi 0, %s37
    %s38 = sphi 0, %s35
    %s39 = sphi 0, %s38
    %s55 = sphi 0, %s39
    %s59 = sphi 0, %s59
    %s61 = sphi 0, %s59
    %s62 = sphi 0, %s61
    %s76 = sphi 0, %s62
    %s80 = sphi 0, %s80
    %s82 = sphi 0, %s80
    %s83 = sphi 0, %s82
    %s97 = sphi 0, %s83
    %s101 = sphi 0, %s101
    %s103 = sphi 0, %s101
    %s104 = sphi 0, %s103
    %s118 = sphi 0, %s104
    %s122 = sphi 0, %s122
    %s124 = sphi 0, %s122
    %s125 = sphi 0, %s124
    %s139 = sphi 0, %s125
    %s143 = sphi 0, %s143
    %s145 = sphi 0, %s143
    %s146 = sphi 0, %s145
    %s160 = sphi 0, %s146
    %s168 = sphi 0, %s170
    %s171 = sphi 0, %s168
    %s172 = sphi 0, %s171
    %s188 = sphi 0, %s172
    %s196 = sphi 0, %s198
    %s199 = sphi 0, %s196
    %s200 = sphi 0, %s199
    %s216 = sphi 0, %s200
  $region4: #{inverted_residual_block.1} parent=0 // loop_header_branch
    %16 = sbr.rel (%p14) target = $region8
  $region5: #{inverted_residual_block.1} parent=0 // loop_body
    %s18 = ssub.s32 %s13, 1
    %s19 = ssub.s32 %s13, 2
    %s26 = sadd.s32 1, %s21
    %p27 = scmp.ge.s32.totalorder %s26, 1
    %s28 = scalar_select %p27, 0, %s26
    %s29 = sadd.s32 1, %s20
    %s30 = scalar_select %p27, %s29, %s20
    %p31 = scmp.ge.s32.totalorder %s30, 2
    %s32 = scalar_select %p31, 0, %s30
    %s33 = ssub.s32 %s20, %s32
    %p34 = scmp.eq.s32.totalorder %s33, 0
    %s36 = sadd.s32 %s35, 1
    %s37 = scalar_select %p34, %s35, %s36
    %p40 = pneg %p34
    %p41 = scmp.eq.s32.totalorder %s13, 1
    %p42 = por %p40, %p41
    %p43 = scmp.ne.s32.totalorder %s35, %s38
    %p44 = scmp.eq.s32.totalorder %s13, 0
    %p45 = por %p43, %p44
    %p46 = scmp.ne.s32.totalorder %s35, %s38
    %p47 = scmp.eq.s32.totalorder %s18, 1
    %p48 = por %p46, %p47
    %p49 = scmp.ne.s32.totalorder %s38, %s39
    %p50 = scmp.eq.s32.totalorder %s18, 0
    %p51 = por %p49, %p50
    %p52 = scmp.ne.s32.totalorder %s38, %s39
    %p53 = scmp.eq.s32.totalorder %s19, 1
    %p54 = por %p52, %p53
    %p56 = scmp.ne.s32.totalorder %s39, %s55
    %p57 = scmp.eq.s32.totalorder %s19, 0
    %p58 = por %p56, %p57
    %s60 = sadd.s32 %s59, 1
    %p63 = scmp.eq.s32.totalorder %s13, 1
    %p64 = scmp.ne.s32.totalorder %s59, %s61
    %p65 = scmp.eq.s32.totalorder %s13, 0
    %p66 = por %p64, %p65
    %p67 = scmp.ne.s32.totalorder %s59, %s61
    %p68 = scmp.eq.s32.totalorder %s18, 1
    %p69 = por %p67, %p68
    %p70 = scmp.ne.s32.totalorder %s61, %s62
    %p71 = scmp.eq.s32.totalorder %s18, 0
    %p72 = por %p70, %p71
    %p73 = scmp.ne.s32.totalorder %s61, %s62
    %p74 = scmp.eq.s32.totalorder %s19, 1
    %p75 = por %p73, %p74
    %p77 = scmp.ne.s32.totalorder %s62, %s76
    %p78 = scmp.eq.s32.totalorder %s19, 0
    %p79 = por %p77, %p78
    %s81 = sadd.s32 %s80, 1
    %p84 = scmp.eq.s32.totalorder %s13, 1
    %p85 = scmp.ne.s32.totalorder %s80, %s82
    %p86 = scmp.eq.s32.totalorder %s13, 0
    %p87 = por %p85, %p86
    %p88 = scmp.ne.s32.totalorder %s80, %s82
    %p89 = scmp.eq.s32.totalorder %s18, 1
    %p90 = por %p88, %p89
    %p91 = scmp.ne.s32.totalorder %s82, %s83
    %p92 = scmp.eq.s32.totalorder %s18, 0
    %p93 = por %p91, %p92
    %p94 = scmp.ne.s32.totalorder %s82, %s83
    %p95 = scmp.eq.s32.totalorder %s19, 1
    %p96 = por %p94, %p95
    %p98 = scmp.ne.s32.totalorder %s83, %s97
    %p99 = scmp.eq.s32.totalorder %s19, 0
    %p100 = por %p98, %p99
    %s102 = sadd.s32 %s101, 1
    %p105 = scmp.eq.s32.totalorder %s13, 1
    %p106 = scmp.ne.s32.totalorder %s101, %s103
    %p107 = scmp.eq.s32.totalorder %s13, 0
    %p108 = por %p106, %p107
    %p109 = scmp.ne.s32.totalorder %s101, %s103
    %p110 = scmp.eq.s32.totalorder %s18, 1
    %p111 = por %p109, %p110
    %p112 = scmp.ne.s32.totalorder %s103, %s104
    %p113 = scmp.eq.s32.totalorder %s18, 0
    %p114 = por %p112, %p113
    %p115 = scmp.ne.s32.totalorder %s103, %s104
    %p116 = scmp.eq.s32.totalorder %s19, 1
    %p117 = por %p115, %p116
    %p119 = scmp.ne.s32.totalorder %s104, %s118
    %p120 = scmp.eq.s32.totalorder %s19, 0
    %p121 = por %p119, %p120
    %s123 = sadd.s32 %s122, 1
    %p126 = scmp.eq.s32.totalorder %s13, 1
    %p127 = scmp.ne.s32.totalorder %s122, %s124
    %p128 = scmp.eq.s32.totalorder %s13, 0
    %p129 = por %p127, %p128
    %p130 = scmp.ne.s32.totalorder %s122, %s124
    %p131 = scmp.eq.s32.totalorder %s18, 1
    %p132 = por %p130, %p131
    %p133 = scmp.ne.s32.totalorder %s124, %s125
    %p134 = scmp.eq.s32.totalorder %s18, 0
    %p135 = por %p133, %p134
    %p136 = scmp.ne.s32.totalorder %s124, %s125
    %p137 = scmp.eq.s32.totalorder %s19, 1
    %p138 = por %p136, %p137
    %p140 = scmp.ne.s32.totalorder %s125, %s139
    %p141 = scmp.eq.s32.totalorder %s19, 0
    %p142 = por %p140, %p141
    %s144 = sadd.s32 %s143, 1
    %p147 = scmp.eq.s32.totalorder %s13, 1
    %p148 = scmp.ne.s32.totalorder %s143, %s145
    %p149 = scmp.eq.s32.totalorder %s13, 0
    %p150 = por %p148, %p149
    %p151 = scmp.ne.s32.totalorder %s143, %s145
    %p152 = scmp.eq.s32.totalorder %s18, 1
    %p153 = por %p151, %p152
    %p154 = scmp.ne.s32.totalorder %s145, %s146
    %p155 = scmp.eq.s32.totalorder %s18, 0
    %p156 = por %p154, %p155
    %p157 = scmp.ne.s32.totalorder %s145, %s146
    %p158 = scmp.eq.s32.totalorder %s19, 1
    %p159 = por %p157, %p158
    %p161 = scmp.ne.s32.totalorder %s146, %s160
    %p162 = scmp.eq.s32.totalorder %s19, 0
    %p163 = por %p161, %p162
    %s164 = ssub.s32 %s20, %s32
    %s165 = ssub.s32 %s21, %s28
    %s166 = sor.u32 %s164, %s165
    %p167 = scmp.eq.s32.totalorder %s166, 0
    %s169 = sadd.s32 %s168, 1
    %s170 = scalar_select %p167, %s168, %s169
    %p173 = pneg %p167
    %p174 = scmp.eq.s32.totalorder %s13, 1
    %p175 = por %p173, %p174
    %p176 = scmp.ne.s32.totalorder %s168, %s171
    %p177 = scmp.eq.s32.totalorder %s13, 0
    %p178 = por %p176, %p177
    %p179 = scmp.ne.s32.totalorder %s168, %s171
    %p180 = scmp.eq.s32.totalorder %s18, 1
    %p181 = por %p179, %p180
    %p182 = scmp.ne.s32.totalorder %s171, %s172
    %p183 = scmp.eq.s32.totalorder %s18, 0
    %p184 = por %p182, %p183
    %p185 = scmp.ne.s32.totalorder %s171, %s172
    %p186 = scmp.eq.s32.totalorder %s19, 1
    %p187 = por %p185, %p186
    %p189 = scmp.ne.s32.totalorder %s172, %s188
    %p190 = scmp.eq.s32.totalorder %s19, 0
    %p191 = por %p189, %p190
    %s192 = ssub.s32 %s20, %s32
    %s193 = ssub.s32 %s21, %s28
    %s194 = sor.u32 %s192, %s193
    %p195 = scmp.eq.s32.totalorder %s194, 0
    %s197 = sadd.s32 %s196, 1
    %s198 = scalar_select %p195, %s196, %s197
    %p201 = pneg %p195
    %p202 = scmp.eq.s32.totalorder %s13, 1
    %p203 = por %p201, %p202
    %p204 = scmp.ne.s32.totalorder %s196, %s199
    %p205 = scmp.eq.s32.totalorder %s13, 0
    %p206 = por %p204, %p205
    %p207 = scmp.ne.s32.totalorder %s196, %s199
    %p208 = scmp.eq.s32.totalorder %s18, 1
    %p209 = por %p207, %p208
    %p210 = scmp.ne.s32.totalorder %s199, %s200
    %p211 = scmp.eq.s32.totalorder %s18, 0
    %p212 = por %p210, %p211
    %p213 = scmp.ne.s32.totalorder %s199, %s200
    %p214 = scmp.eq.s32.totalorder %s19, 1
    %p215 = por %p213, %p214
    %p217 = scmp.ne.s32.totalorder %s200, %s216
    %p218 = scmp.eq.s32.totalorder %s19, 0
    %p219 = por %p217, %p218
    %p220 = scmp.le.s32.totalorder 1, %s13
    %p221 = scmp.lt.s32.totalorder %s13, 3
    %p222 = pnand %p220, %p221
    %p223 = pneg %p222
    // Predicated region
    $region9: #{inverted_residual_block.1} parent=5 // pred_check
      _
    $region10: #{inverted_residual_block.1} parent=5 // pred_check_branch
      %225 = sbr.rel (%p222) target = $region12
    $region11: #{inverted_residual_block.1} parent=5 // pred_region
      %s226 = ssub.s32 %s13, 1
      // Predicated region
      $region13: #{inverted_residual_block.1} parent=11 // pred_check
        %p227 = pneg %p72
      $region14: #{inverted_residual_block.1} parent=11 // pred_check_branch
        %229 = sbr.rel (%p227) target = $region16
      $region15: #{inverted_residual_block.1} parent=11 // pred_region
        _
      $region16: #{inverted_residual_block.1} parent=11 // pred_fallthru
        _
      // Predicated region
      $region17: #{inverted_residual_block.1} parent=11 // pred_check
        %p230 = pneg %p93
      $region18: #{inverted_residual_block.1} parent=11 // pred_check_branch
        %232 = sbr.rel (%p230) target = $region20
      $region19: #{inverted_residual_block.1} parent=11 // pred_region
        _
      $region20: #{inverted_residual_block.1} parent=11 // pred_fallthru
        _
      // Predicated region
      $region21: #{inverted_residual_block.1} parent=11 // pred_check
        %p233 = pneg %p114
      $region22: #{inverted_residual_block.1} parent=11 // pred_check_branch
        %235 = sbr.rel (%p233) target = $region24
      $region23: #{inverted_residual_block.1} parent=11 // pred_region
        _
      $region24: #{inverted_residual_block.1} parent=11 // pred_fallthru
        _
      // Predicated region
      $region25: #{inverted_residual_block.1} parent=11 // pred_check
        %p236 = pneg %p135
      $region26: #{inverted_residual_block.1} parent=11 // pred_check_branch
        %238 = sbr.rel (%p236) target = $region28
      $region27: #{inverted_residual_block.1} parent=11 // pred_region
        _
      $region28: #{inverted_residual_block.1} parent=11 // pred_fallthru
        _
      // Predicated region
      $region29: #{inverted_residual_block.1} parent=11 // pred_check
        %p239 = pneg %p156
      $region30: #{inverted_residual_block.1} parent=11 // pred_check_branch
        %241 = sbr.rel (%p239) target = $region32
      $region31: #{inverted_residual_block.1} parent=11 // pred_region
        _
      $region32: #{inverted_residual_block.1} parent=11 // pred_fallthru
        _
    $region12: #{inverted_residual_block.1} parent=5 // pred_fallthru
      _
    %p242 = scmp.lt.s32.totalorder %s13, 2
    // Predicated region
    $region33: #{inverted_residual_block.1} parent=5 // pred_check
      %p243 = pneg %p242
    $region34: #{inverted_residual_block.1} parent=5 // pred_check_branch
      %245 = sbr.rel (%p243) target = $region36
    $region35: #{inverted_residual_block.1} parent=5 // pred_region
      // Predicated region
      $region37: #{inverted_residual_block.1} parent=35 // pred_check
        %p246 = pneg %p45
      $region38: #{inverted_residual_block.1} parent=35 // pred_check_branch
        %248 = sbr.rel (%p246) target = $region40
      $region39: #{inverted_residual_block.1} parent=35 // pred_region
        %p249 = scmp.lt.s32.totalorder %s20, 1
        %s250 = scalar_select %p249, %s20, 1
        %s251 = smul.addr %s250, 54
        %s252 = smul.addr %s251, 4
        %s253 = scalar_lea.vmem %s0, %s252
      $region40: #{inverted_residual_block.1} parent=35 // pred_fallthru
        _
      // Predicated region
      $region41: #{inverted_residual_block.1} parent=35 // pred_check
        %p254 = pneg %p178
      $region42: #{inverted_residual_block.1} parent=35 // pred_check_branch
        %256 = sbr.rel (%p254) target = $region44
      $region43: #{inverted_residual_block.1} parent=35 // pred_region
        %s257 = smul.u32 32, %s21
        %p258 = scmp.lt.s32.totalorder %s20, 1
        %s259 = scalar_select %p258, %s20, 1
        %p260 = scmp.lt.s32.totalorder %s257, 31
        %s261 = scalar_select %p260, %s257, 31
        %s262 = smul.addr %s259, 32
        %s263 = sadd.s32 %s261, %s262
        %s264 = smul.addr %s263, 4
        %s265 = scalar_lea.vmem %s6, %s264
        %s266 = smul.u32 32, %s21
      $region44: #{inverted_residual_block.1} parent=35 // pred_fallthru
        _
    $region36: #{inverted_residual_block.1} parent=5 // pred_fallthru
      _
    %p267 = scmp.le.s32.totalorder 1, %s13
    %p268 = scmp.lt.s32.totalorder %s13, 3
    %p269 = pnand %p267, %p268
    %p270 = pneg %p269
    // Predicated region
    $region45: #{inverted_residual_block.1} parent=5 // pred_check
      _
    $region46: #{inverted_residual_block.1} parent=5 // pred_check_branch
      %272 = sbr.rel (%p269) target = $region48
    $region47: #{inverted_residual_block.1} parent=5 // pred_region
      %s273 = ssub.s32 %s13, 1
      %p274 = scmp.lt.s32.totalorder %s22, 1
      %s275 = scalar_select %p274, %s22, 1
      %s276 = smul.addr %s275, 54
      %s277 = smul.addr %s276, 4
      %s278 = scalar_lea.vmem %s0, %s277
      %p279 = pneg %p51
      %p280 = pneg %p48
      %p281 = pneg %p72
      %p282 = pneg %p69
      %p283 = pneg %p93
      %p284 = pneg %p90
      %p285 = pneg %p114
      %p286 = pneg %p111
      %p287 = pneg %p135
      %p288 = pneg %p132
      %p289 = pneg %p156
      %p290 = pneg %p153
      %s291 = smul.u32 32, %s23
      %p292 = scmp.lt.s32.totalorder %s22, 1
      %s293 = scalar_select %p292, %s22, 1
      %p294 = scmp.lt.s32.totalorder %s291, 31
      %s295 = scalar_select %p294, %s291, 31
      %s296 = smul.addr %s293, 32
      %s297 = sadd.s32 %s295, %s296
      %s298 = smul.addr %s297, 4
      %s299 = scalar_lea.vmem %s6, %s298
      %p300 = pneg %p184
      %p301 = pneg %p181
      %p302 = pneg %p212
      %p303 = pneg %p209
      %s304 = smul.u32 32, %s23
      %p305 = scmp.lt.s32.totalorder %s22, 1
      %s306 = scalar_select %p305, %s22, 1
      %p307 = scmp.lt.s32.totalorder %s304, 31
      %s308 = scalar_select %p307, %s304, 31
      %s309 = smul.addr %s306, 32
      %s310 = sadd.s32 %s308, %s309
      %s311 = smul.addr %s310, 8
      %s312 = scalar_lea.vmem %s7, %s311
      %p313 = scmp.lt.s32.totalorder %s22, 1
      %s314 = scalar_select %p313, %s22, 1
      %s315 = smul.addr %s314, 54
      %s316 = smul.addr %s315, 4
      %s317 = scalar_lea.vmem %s0, %s316
      %s318 = smul.u32 32, %s23
      %p319 = scmp.lt.s32.totalorder %s22, 1
      %s320 = scalar_select %p319, %s22, 1
      %p321 = scmp.lt.s32.totalorder %s318, 31
      %s322 = scalar_select %p321, %s318, 31
      %s323 = smul.addr %s320, 32
      %s324 = sadd.s32 %s322, %s323
      %s325 = smul.addr %s324, 4
      %s326 = scalar_lea.vmem %s6, %s325
      %s327 = smul.u32 32, %s23
      %s328 = smul.u32 32, %s23
      %p329 = scmp.lt.s32.totalorder %s22, 1
      %s330 = scalar_select %p329, %s22, 1
      %p331 = scmp.lt.s32.totalorder %s328, 31
      %s332 = scalar_select %p331, %s328, 31
      %s333 = smul.addr %s330, 32
      %s334 = sadd.s32 %s332, %s333
      %s335 = smul.addr %s334, 8
      %s336 = scalar_lea.vmem %s7, %s335
      %s337 = smul.u32 32, %s23
      %v339 = vld [vmem:[%s317] sm:$0xf]
      %v340 = vld [vmem:[%s317 + $0x4] sm:$0xf]
      %v341 = vld [vmem:[%s317 + $0x8] sm:$0xf]
      %v342 = vld [vmem:[%s317 + $0xc] sm:$0xf]
      %v343 = vld [vmem:[%s317 + $0x10] sm:$0xf]
      %v344 = vld [vmem:[%s317 + $0x14] sm:$0xf]
      %v345 = vld [vmem:[%s317 + $0x18] sm:$0xf]
      %v346 = vld [vmem:[%s317 + $0x1c] sm:$0xf]
      %v347 = vld [vmem:[%s317 + $0x20] sm:$0xf]
      %v348 = vld [vmem:[%s317 + $0x24] sm:$0xf]
      %v349 = vld [vmem:[%s317 + $0x28] sm:$0xf]
      %v350 = vld [vmem:[%s317 + $0x2c] sm:$0xf]
      %v351 = vld [vmem:[%s317 + $0x30] sm:$0xf]
      %v352 = vld [vmem:[%s317 + $0x34] sm:$0xf]
      %v353 = vld [vmem:[%s317 + $0x38] sm:$0xf]
      %v354 = vld [vmem:[%s317 + $0x3c] sm:$0xf]
      %v355 = vld [vmem:[%s317 + $0x40] sm:$0xf]
      %v356 = vld [vmem:[%s317 + $0x44] sm:$0xf]
      %v357 = vld [vmem:[%s317 + $0x48] sm:$0xf]
      %v358 = vld [vmem:[%s317 + $0x4c] sm:$0xf]
      %v359 = vld [vmem:[%s317 + $0x50] sm:$0xf]
      %v360 = vld [vmem:[%s317 + $0x54] sm:$0xf]
      %v361 = vld [vmem:[%s317 + $0x58] sm:$0xf]
      %v362 = vld [vmem:[%s317 + $0x5c] sm:$0xf]
      %v363 = vld [vmem:[%s317 + $0x60] sm:$0xf]
      %v364 = vld [vmem:[%s317 + $0x64] sm:$0xf]
      %v365 = vld [vmem:[%s317 + $0x68] sm:$0xf]
      %v366 = vld [vmem:[%s317 + $0x6c] sm:$0xf]
      %v367 = vld [vmem:[%s317 + $0x70] sm:$0xf]
      %v368 = vld [vmem:[%s317 + $0x74] sm:$0xf]
      %v369 = vld [vmem:[%s317 + $0x78] sm:$0xf]
      %v370 = vld [vmem:[%s317 + $0x7c] sm:$0xf]
      %v371 = vld [vmem:[%s317 + $0x80] sm:$0xf]
      %v372 = vld [vmem:[%s317 + $0x84] sm:$0xf]
      %v373 = vld [vmem:[%s317 + $0x88] sm:$0xf]
      %v374 = vld [vmem:[%s317 + $0x8c] sm:$0xf]
      %v375 = vld [vmem:[%s317 + $0x90] sm:$0xf]
      %v376 = vld [vmem:[%s317 + $0x94] sm:$0xf]
      %v377 = vld [vmem:[%s317 + $0x98] sm:$0xf]
      %v378 = vld [vmem:[%s317 + $0x9c] sm:$0xf]
      %v379 = vld [vmem:[%s317 + $0xa0] sm:$0xf]
      %v380 = vld [vmem:[%s317 + $0xa4] sm:$0xf]
      %v381 = vld [vmem:[%s317 + $0xa8] sm:$0xf]
      %v382 = vld [vmem:[%s317 + $0xac] sm:$0xf]
      %v383 = vld [vmem:[%s317 + $0xb0] sm:$0xf]
      %v384 = vld [vmem:[%s317 + $0xb4] sm:$0xf]
      %v385 = vld [vmem:[%s317 + $0xb8] sm:$0xf]
      %v386 = vld [vmem:[%s317 + $0xbc] sm:$0xf]
      %v387 = vld [vmem:[%s317 + $0xc0] sm:$0xf]
      %v388 = vld [vmem:[%s317 + $0xc4] sm:$0xf]
      %v389 = vld [vmem:[%s317 + $0xc8] sm:$0xf]
      %v390 = vld [vmem:[%s317 + $0xcc] sm:$0xf]
      %v391 = vld [vmem:[%s317 + $0xd0] sm:$0xf]
      %v392 = vld [vmem:[%s317 + $0xd4] sm:$0xf]
      %v393 = vld [vmem:[%s1] sm:$0x7]
      %v448 = vunpack.c.l.b16 %v339
      %v449 = vunpack.c.l.b16 %v340
      %v450 = vunpack.c.l.b16 %v341
      %v451 = vunpack.c.l.b16 %v342
      %v452 = vunpack.c.l.b16 %v343
      %v453 = vunpack.c.l.b16 %v344
      %v454 = vunpack.c.l.b16 %v345
      %v455 = vunpack.c.l.b16 %v346
      %v456 = vunpack.c.l.b16 %v347
      %v457 = vunpack.c.l.b16 %v348
      %v458 = vunpack.c.l.b16 %v349
      %v459 = vunpack.c.l.b16 %v350
      %v460 = vunpack.c.l.b16 %v351
      %v461 = vunpack.c.l.b16 %v352
      %v462 = vunpack.c.l.b16 %v353
      %v463 = vunpack.c.l.b16 %v354
      %v464 = vunpack.c.l.b16 %v355
      %v465 = vunpack.c.l.b16 %v356
      %v466 = vunpack.c.l.b16 %v357
      %v467 = vunpack.c.l.b16 %v358
      %v468 = vunpack.c.l.b16 %v359
      %v469 = vunpack.c.l.b16 %v360
      %v470 = vunpack.c.l.b16 %v361
      %v471 = vunpack.c.l.b16 %v362
      %v472 = vunpack.c.l.b16 %v363
      %v473 = vunpack.c.l.b16 %v364
      %v474 = vunpack.c.l.b16 %v365
      %v475 = vunpack.c.l.b16 %v366
      %v476 = vunpack.c.l.b16 %v367
      %v477 = vunpack.c.l.b16 %v368
      %v478 = vunpack.c.l.b16 %v369
      %v479 = vunpack.c.l.b16 %v370
      %v480 = vunpack.c.l.b16 %v371
      %v481 = vunpack.c.l.b16 %v372
      %v482 = vunpack.c.l.b16 %v373
      %v483 = vunpack.c.l.b16 %v374
      %v484 = vunpack.c.l.b16 %v375
      %v485 = vunpack.c.l.b16 %v376
      %v486 = vunpack.c.l.b16 %v377
      %v487 = vunpack.c.l.b16 %v378
      %v488 = vunpack.c.l.b16 %v379
      %v489 = vunpack.c.l.b16 %v380
      %v490 = vunpack.c.l.b16 %v381
      %v491 = vunpack.c.l.b16 %v382
      %v492 = vunpack.c.l.b16 %v383
      %v493 = vunpack.c.l.b16 %v384
      %v494 = vunpack.c.l.b16 %v385
      %v495 = vunpack.c.l.b16 %v386
      %v496 = vunpack.c.l.b16 %v387
      %v497 = vunpack.c.l.b16 %v388
      %v498 = vunpack.c.l.b16 %v389
      %v499 = vunpack.c.l.b16 %v390
      %v500 = vunpack.c.l.b16 %v391
      %v501 = vunpack.c.l.b16 %v392
      %v502 = vpack.c.b16 %v449, %v448
      %v503 = vpack.c.b16 %v451, %v450
      %v504 = vpack.c.b16 %v453, %v452
      %v505 = vpack.c.b16 %v455, %v454
      %v506 = vpack.c.b16 %v457, %v456
      %v507 = vpack.c.b16 %v459, %v458
      %v508 = vpack.c.b16 %v461, %v460
      %v509 = vpack.c.b16 %v463, %v462
      %v510 = vpack.c.b16 %v465, %v464
      %v511 = vpack.c.b16 %v467, %v466
      %v512 = vpack.c.b16 %v469, %v468
      %v513 = vpack.c.b16 %v471, %v470
      %v514 = vpack.c.b16 %v473, %v472
      %v515 = vpack.c.b16 %v475, %v474
      %v516 = vpack.c.b16 %v477, %v476
      %v517 = vpack.c.b16 %v479, %v478
      %v518 = vpack.c.b16 %v481, %v480
      %v519 = vpack.c.b16 %v483, %v482
      %v520 = vpack.c.b16 %v485, %v484
      %v521 = vpack.c.b16 %v487, %v486
      %v522 = vpack.c.b16 %v489, %v488
      %v523 = vpack.c.b16 %v491, %v490
      %v524 = vpack.c.b16 %v493, %v492
      %v525 = vpack.c.b16 %v495, %v494
      %v526 = vpack.c.b16 %v497, %v496
      %v527 = vpack.c.b16 %v499, %v498
      %v528 = vpack.c.b16 %v501, %v500
      %vm529 = vcmask 39936
      %v531 = vsel %vm529, %v502, 0
      %v534 = vsel %vm529, %v503, 0
      %v537 = vsel %vm529, %v504, 0
      %v540 = vsel %vm529, %v505, 0
      %v543 = vsel %vm529, %v506, 0
      %v546 = vsel %vm529, %v507, 0
      %v549 = vsel %vm529, %v508, 0
      %v552 = vsel %vm529, %v509, 0
      %v555 = vsel %vm529, %v510, 0
      %v558 = vsel %vm529, %v511, 0
      %v561 = vsel %vm529, %v512, 0
      %v564 = vsel %vm529, %v513, 0
      %v567 = vsel %vm529, %v514, 0
      %v570 = vsel %vm529, %v515, 0
      %v573 = vsel %vm529, %v516, 0
      %v576 = vsel %vm529, %v517, 0
      %v579 = vsel %vm529, %v518, 0
      %v582 = vsel %vm529, %v519, 0
      %v585 = vsel %vm529, %v520, 0
      %v588 = vsel %vm529, %v521, 0
      %v591 = vsel %vm529, %v522, 0
      %v594 = vsel %vm529, %v523, 0
      %v597 = vsel %vm529, %v524, 0
      %v600 = vsel %vm529, %v525, 0
      %v603 = vsel %vm529, %v526, 0
      %v606 = vsel %vm529, %v527, 0
      %v609 = vsel %vm529, %v528, 0
      %vm611 = vcmask 1041408
      %vm612 = vcmask 1042432
      %v613 = vsel %vm611, 4294967295, 65535
      %v614 = vsel %vm612, %v613, 0
      %v616 = vand.u32 %v393, %v614
      %618 = vmatprep.subr.bf16.mxu0 0
      %619 = vmatpush1.bf16.msra.mxu0 %v616
      %620 = vmatprep.subr.bf16.mxu0 0
      %621 = vmatpush1.bf16.msra.mxu0 0
      %622 = vmatprep.subr.bf16.mxu0 0
      %623 = vmatpush1.bf16.msra.mxu0 0
      %624 = vmatprep.subr.bf16.mxu0 0
      %625 = vmatpush1.bf16.msra.mxu0 0
      %626 = vmatprep.subr.bf16.mxu0 0
      %627 = vmatpush1.bf16.msra.mxu0 0
      %628 = vmatprep.subr.bf16.mxu0 0
      %629 = vmatpush1.bf16.msra.mxu0 0
      %630 = vmatprep.subr.bf16.mxu0 0
      %631 = vmatpush1.bf16.msra.mxu0 0
      %632 = vmatprep.subr.bf16.mxu0 0
      %633 = vmatpush1.bf16.msra.mxu0 0
      %634 = vmatprep.subr.bf16.mxu0 0
      %635 = vmatpush1.bf16.msra.mxu0 0
      %636 = vmatprep.subr.bf16.mxu0 0
      %637 = vmatpush1.bf16.msra.mxu0 0
      %638 = vmatprep.subr.bf16.mxu0 0
      %639 = vmatpush1.bf16.msra.mxu0 0
      %640 = vmatprep.subr.bf16.mxu0 0
      %641 = vmatpush1.bf16.msra.mxu0 0
      %642 = vmatprep.subr.bf16.mxu0 0
      %643 = vmatpush1.bf16.msra.mxu0 0
      %644 = vmatprep.subr.bf16.mxu0 0
      %645 = vmatpush1.bf16.msra.mxu0 0
      %646 = vmatprep.subr.bf16.mxu0 0
      %647 = vmatpush1.bf16.msra.mxu0 0
      %648 = vmatprep.subr.bf16.mxu0 0
      %649 = vmatpush1.bf16.msra.mxu0 0
      %650 = vmatprep.mubr.bf16.mxu0 0
      %651 = vmatmul.mubr.bf16.gmra.mrb[0].mxu0 %v531
      %v652 = vpop.f32.mrb[0].mxu0
      %v653 = vadd.f32 0.0, %v652
      %v654 = vpop.f32.mrb[0].mxu0
      %v655 = vpop.f32.mrb[0].mxu0
      %v656 = vadd.f32 0.0, %v655
      %v657 = vpop.f32.mrb[0].mxu0
      %658 = vmatprep.mubr.bf16.mxu0 0
      %659 = vmatmul.mubr.bf16.gmra.mrb[0].mxu0 %v534
      %v660 = vpop.f32.mrb[0].mxu0
      %v661 = vadd.f32 0.0, %v660
      %v662 = vpop.f32.mrb[0].mxu0
      %v663 = vpop.f32.mrb[0].mxu0
      %v664 = vadd.f32 0.0, %v663
      %v665 = vpop.f32.mrb[0].mxu0
      %666 = vmatprep.mubr.bf16.mxu0 0
      %667 = vmatmul.mubr.bf16.gmra.mrb[0].mxu0 %v537
      %v668 = vpop.f32.mrb[0].mxu0
      %v669 = vadd.f32 0.0, %v668
      %v670 = vpop.f32.mrb[0].mxu0
      %v671 = vpop.f32.mrb[0].mxu0
      %v672 = vadd.f32 0.0, %v671
      %v673 = vpop.f32.mrb[0].mxu0
      %674 = vmatprep.mubr.bf16.mxu0 0
      %675 = vmatmul.mubr.bf16.gmra.mrb[0].mxu0 %v540
      %v676 = vpop.f32.mrb[0].mxu0
      %v677 = vadd.f32 0.0, %v676
      %v678 = vpop.f32.mrb[0].mxu0
      %v679 = vpop.f32.mrb[0].mxu0
      %v680 = vadd.f32 0.0, %v679
      %v681 = vpop.f32.mrb[0].mxu0
      %682 = vmatprep.mubr.bf16.mxu0 0
      %683 = vmatmul.mubr.bf16.gmra.mrb[0].mxu0 %v543
      %v684 = vpop.f32.mrb[0].mxu0
      %v685 = vadd.f32 0.0, %v684
      %v686 = vpop.f32.mrb[0].mxu0
      %v687 = vpop.f32.mrb[0].mxu0
      %v688 = vadd.f32 0.0, %v687
      %v689 = vpop.f32.mrb[0].mxu0
      %690 = vmatprep.mubr.bf16.mxu0 0
      %691 = vmatmul.mubr.bf16.gmra.mrb[0].mxu0 %v546
      %v692 = vpop.f32.mrb[0].mxu0
      %v693 = vadd.f32 0.0, %v692
      %v694 = vpop.f32.mrb[0].mxu0
      %v695 = vpop.f32.mrb[0].mxu0
      %v696 = vadd.f32 0.0, %v695
      %v697 = vpop.f32.mrb[0].mxu0
      %698 = vmatprep.mubr.bf16.mxu0 0
      %699 = vmatmul.mubr.bf16.gmra.mrb[0].mxu0 %v549
      %v700 = vpop.f32.mrb[0].mxu0
      %v701 = vadd.f32 0.0, %v700
      %v702 = vpop.f32.mrb[0].mxu0
      %v703 = vpop.f32.mrb[0].mxu0
      %v704 = vadd.f32 0.0, %v703
      %v705 = vpop.f32.mrb[0].mxu0
      %706 = vmatprep.mubr.bf16.mxu0 0
      %707 = vmatmul.mubr.bf16.gmra.mrb[0].mxu0 %v552
      %v708 = vpop.f32.mrb[0].mxu0
      %v709 = vadd.f32 0.0, %v708
      %v710 = vpop.f32.mrb[0].mxu0
      %v711 = vpop.f32.mrb[0].mxu0
      %v712 = vadd.f32 0.0, %v711
      %v713 = vpop.f32.mrb[0].mxu0
      %714 = vmatprep.mubr.bf16.mxu0 0
      %715 = vmatmul.mubr.bf16.gmra.mrb[0].mxu0 %v555
      %v716 = vpop.f32.mrb[0].mxu0
      %v717 = vadd.f32 0.0, %v716
      %v718 = vpop.f32.mrb[0].mxu0
      %v719 = vpop.f32.mrb[0].mxu0
      %v720 = vadd.f32 0.0, %v719
      %v721 = vpop.f32.mrb[0].mxu0
      %722 = vmatprep.mubr.bf16.mxu0 0
      %723 = vmatmul.mubr.bf16.gmra.mrb[0].mxu0 %v558
      %v724 = vpop.f32.mrb[0].mxu0
      %v725 = vadd.f32 0.0, %v724
      %v726 = vpop.f32.mrb[0].mxu0
      %v727 = vpop.f32.mrb[0].mxu0
      %v728 = vadd.f32 0.0, %v727
      %v729 = vpop.f32.mrb[0].mxu0
      %730 = vmatprep.mubr.bf16.mxu0 0
      %731 = vmatmul.mubr.bf16.gmra.mrb[0].mxu0 %v561
      %v732 = vpop.f32.mrb[0].mxu0
      %v733 = vadd.f32 0.0, %v732
      %v734 = vpop.f32.mrb[0].mxu0
      %v735 = vpop.f32.mrb[0].mxu0
      %v736 = vadd.f32 0.0, %v735
      %v737 = vpop.f32.mrb[0].mxu0
      %738 = vmatprep.mubr.bf16.mxu0 0
      %739 = vmatmul.mubr.bf16.gmra.mrb[0].mxu0 %v564
      %v740 = vpop.f32.mrb[0].mxu0
      %v741 = vadd.f32 0.0, %v740
      %v742 = vpop.f32.mrb[0].mxu0
      %v743 = vpop.f32.mrb[0].mxu0
      %v744 = vadd.f32 0.0, %v743
      %v745 = vpop.f32.mrb[0].mxu0
      %746 = vmatprep.mubr.bf16.mxu0 0
      %747 = vmatmul.mubr.bf16.gmra.mrb[0].mxu0 %v567
      %v748 = vpop.f32.mrb[0].mxu0
      %v749 = vadd.f32 0.0, %v748
      %v750 = vpop.f32.mrb[0].mxu0
      %v751 = vpop.f32.mrb[0].mxu0
      %v752 = vadd.f32 0.0, %v751
      %v753 = vpop.f32.mrb[0].mxu0
      %754 = vmatprep.mubr.bf16.mxu0 0
      %755 = vmatmul.mubr.bf16.gmra.mrb[0].mxu0 %v570
      %v756 = vpop.f32.mrb[0].mxu0
      %v757 = vadd.f32 0.0, %v756
      %v758 = vpop.f32.mrb[0].mxu0
      %v759 = vpop.f32.mrb[0].mxu0
      %v760 = vadd.f32 0.0, %v759
      %v761 = vpop.f32.mrb[0].mxu0
      %762 = vmatprep.mubr.bf16.mxu0 0
      %763 = vmatmul.mubr.bf16.gmra.mrb[0].mxu0 %v573
      %v764 = vpop.f32.mrb[0].mxu0
      %v765 = vadd.f32 0.0, %v764
      %v766 = vpop.f32.mrb[0].mxu0
      %v767 = vpop.f32.mrb[0].mxu0
      %v768 = vadd.f32 0.0, %v767
      %v769 = vpop.f32.mrb[0].mxu0
      %770 = vmatprep.mubr.bf16.mxu0 0
      %771 = vmatmul.mubr.bf16.gmra.mrb[0].mxu0 %v576
      %v772 = vpop.f32.mrb[0].mxu0
      %v773 = vadd.f32 0.0, %v772
      %v774 = vpop.f32.mrb[0].mxu0
      %v775 = vpop.f32.mrb[0].mxu0
      %v776 = vadd.f32 0.0, %v775
      %v777 = vpop.f32.mrb[0].mxu0
      %778 = vmatprep.mubr.bf16.mxu0 0
      %779 = vmatmul.mubr.bf16.gmra.mrb[0].mxu0 %v579
      %v780 = vpop.f32.mrb[0].mxu0
      %v781 = vadd.f32 0.0, %v780
      %v782 = vpop.f32.mrb[0].mxu0
      %v783 = vpop.f32.mrb[0].mxu0
      %v784 = vadd.f32 0.0, %v783
      %v785 = vpop.f32.mrb[0].mxu0
      %786 = vmatprep.mubr.bf16.mxu0 0
      %787 = vmatmul.mubr.bf16.gmra.mrb[0].mxu0 %v582
      %v788 = vpop.f32.mrb[0].mxu0
      %v789 = vadd.f32 0.0, %v788
      %v790 = vpop.f32.mrb[0].mxu0
      %v791 = vpop.f32.mrb[0].mxu0
      %v792 = vadd.f32 0.0, %v791
      %v793 = vpop.f32.mrb[0].mxu0
      %794 = vmatprep.mubr.bf16.mxu0 0
      %795 = vmatmul.mubr.bf16.gmra.mrb[0].mxu0 %v585
      %v796 = vpop.f32.mrb[0].mxu0
      %v797 = vadd.f32 0.0, %v796
      %v798 = vpop.f32.mrb[0].mxu0
      %v799 = vpop.f32.mrb[0].mxu0
      %v800 = vadd.f32 0.0, %v799
      %v801 = vpop.f32.mrb[0].mxu0
      %802 = vmatprep.mubr.bf16.mxu0 0
      %803 = vmatmul.mubr.bf16.gmra.mrb[0].mxu0 %v588
      %v804 = vpop.f32.mrb[0].mxu0
      %v805 = vadd.f32 0.0, %v804
      %v806 = vpop.f32.mrb[0].mxu0
      %v807 = vpop.f32.mrb[0].mxu0
      %v808 = vadd.f32 0.0, %v807
      %v809 = vpop.f32.mrb[0].mxu0
      %810 = vmatprep.mubr.bf16.mxu0 0
      %811 = vmatmul.mubr.bf16.gmra.mrb[0].mxu0 %v591
      %v812 = vpop.f32.mrb[0].mxu0
      %v813 = vadd.f32 0.0, %v812
      %v814 = vpop.f32.mrb[0].mxu0
      %v815 = vpop.f32.mrb[0].mxu0
      %v816 = vadd.f32 0.0, %v815
      %v817 = vpop.f32.mrb[0].mxu0
      %818 = vmatprep.mubr.bf16.mxu0 0
      %819 = vmatmul.mubr.bf16.gmra.mrb[0].mxu0 %v594
      %v820 = vpop.f32.mrb[0].mxu0
      %v821 = vadd.f32 0.0, %v820
      %v822 = vpop.f32.mrb[0].mxu0
      %v823 = vpop.f32.mrb[0].mxu0
      %v824 = vadd.f32 0.0, %v823
      %v825 = vpop.f32.mrb[0].mxu0
      %826 = vmatprep.mubr.bf16.mxu0 0
      %827 = vmatmul.mubr.bf16.gmra.mrb[0].mxu0 %v597
      %v828 = vpop.f32.mrb[0].mxu0
      %v829 = vadd.f32 0.0, %v828
      %v830 = vpop.f32.mrb[0].mxu0
      %v831 = vpop.f32.mrb[0].mxu0
      %v832 = vadd.f32 0.0, %v831
      %v833 = vpop.f32.mrb[0].mxu0
      %834 = vmatprep.mubr.bf16.mxu0 0
      %835 = vmatmul.mubr.bf16.gmra.mrb[0].mxu0 %v600
      %v836 = vpop.f32.mrb[0].mxu0
      %v837 = vadd.f32 0.0, %v836
      %v838 = vpop.f32.mrb[0].mxu0
      %v839 = vpop.f32.mrb[0].mxu0
      %v840 = vadd.f32 0.0, %v839
      %v841 = vpop.f32.mrb[0].mxu0
      %842 = vmatprep.mubr.bf16.mxu0 0
      %843 = vmatmul.mubr.bf16.gmra.mrb[0].mxu0 %v603
      %v844 = vpop.f32.mrb[0].mxu0
      %v845 = vadd.f32 0.0, %v844
      %v846 = vpop.f32.mrb[0].mxu0
      %v847 = vpop.f32.mrb[0].mxu0
      %v848 = vadd.f32 0.0, %v847
      %v849 = vpop.f32.mrb[0].mxu0
      %850 = vmatprep.mubr.bf16.mxu0 0
      %851 = vmatmul.mubr.bf16.gmra.mrb[0].mxu0 %v606
      %v852 = vpop.f32.mrb[0].mxu0
      %v853 = vadd.f32 0.0, %v852
      %v854 = vpop.f32.mrb[0].mxu0
      %v855 = vpop.f32.mrb[0].mxu0
      %v856 = vadd.f32 0.0, %v855
      %v857 = vpop.f32.mrb[0].mxu0
      %858 = vmatprep.mubr.bf16.mxu0 0
      %859 = vmatmul.mubr.bf16.gmra.mrb[0].mxu0 %v609
      %v860 = vpop.f32.mrb[0].mxu0
      %v861 = vadd.f32 0.0, %v860
      %v862 = vpop.f32.mrb[0].mxu0
      %v863 = vpop.f32.mrb[0].mxu0
      %v864 = vadd.f32 0.0, %v863
      %v865 = vpop.f32.mrb[0].mxu0
      %866 = vdwg.mxu0
      %v867 = vmax.f32 %v653, 0.0
      %v868 = vmax.f32 %v656, 0.0
      %v869 = vmax.f32 %v661, 0.0
      %v870 = vmax.f32 %v664, 0.0
      %v871 = vmax.f32 %v669, 0.0
      %v872 = vmax.f32 %v672, 0.0
      %v873 = vmax.f32 %v677, 0.0
      %v874 = vmax.f32 %v680, 0.0
      %v875 = vmax.f32 %v685, 0.0
      %v876 = vmax.f32 %v688, 0.0
      %v877 = vmax.f32 %v693, 0.0
      %v878 = vmax.f32 %v696, 0.0
      %v879 = vmax.f32 %v701, 0.0
      %v880 = vmax.f32 %v704, 0.0
      %v881 = vmax.f32 %v709, 0.0
      %v882 = vmax.f32 %v712, 0.0
      %v883 = vmax.f32 %v717, 0.0
      %v884 = vmax.f32 %v720, 0.0
      %v885 = vmax.f32 %v725, 0.0
      %v886 = vmax.f32 %v728, 0.0
      %v887 = vmax.f32 %v733, 0.0
      %v888 = vmax.f32 %v736, 0.0
      %v889 = vmax.f32 %v741, 0.0
      %v890 = vmax.f32 %v744, 0.0
      %v891 = vmax.f32 %v749, 0.0
      %v892 = vmax.f32 %v752, 0.0
      %v893 = vmax.f32 %v757, 0.0
      %v894 = vmax.f32 %v760, 0.0
      %v895 = vmax.f32 %v765, 0.0
      %v896 = vmax.f32 %v768, 0.0
      %v897 = vmax.f32 %v773, 0.0
      %v898 = vmax.f32 %v776, 0.0
      %v899 = vmax.f32 %v781, 0.0
      %v900 = vmax.f32 %v784, 0.0
      %v901 = vmax.f32 %v789, 0.0
      %v902 = vmax.f32 %v792, 0.0
      %v903 = vmax.f32 %v797, 0.0
      %v904 = vmax.f32 %v800, 0.0
      %v905 = vmax.f32 %v805, 0.0
      %v906 = vmax.f32 %v808, 0.0
      %v907 = vmax.f32 %v813, 0.0
      %v908 = vmax.f32 %v816, 0.0
      %v909 = vmax.f32 %v821, 0.0
      %v910 = vmax.f32 %v824, 0.0
      %v911 = vmax.f32 %v829, 0.0
      %v912 = vmax.f32 %v832, 0.0
      %v913 = vmax.f32 %v837, 0.0
      %v914 = vmax.f32 %v840, 0.0
      %v915 = vmax.f32 %v845, 0.0
      %v916 = vmax.f32 %v848, 0.0
      %v917 = vmax.f32 %v853, 0.0
      %v918 = vmax.f32 %v856, 0.0
      %v919 = vmax.f32 %v861, 0.0
      %v920 = vmax.f32 %v864, 0.0
      %v921 = vmin.f32 %v867, 6.0
      %v922 = vmin.f32 %v868, 6.0
      %v923 = vmin.f32 %v869, 6.0
      %v924 = vmin.f32 %v870, 6.0
      %v925 = vmin.f32 %v871, 6.0
      %v926 = vmin.f32 %v872, 6.0
      %v927 = vmin.f32 %v873, 6.0
      %v928 = vmin.f32 %v874, 6.0
      %v929 = vmin.f32 %v875, 6.0
      %v930 = vmin.f32 %v876, 6.0
      %v931 = vmin.f32 %v877, 6.0
      %v932 = vmin.f32 %v878, 6.0
      %v933 = vmin.f32 %v879, 6.0
      %v934 = vmin.f32 %v880, 6.0
      %v935 = vmin.f32 %v881, 6.0
      %v936 = vmin.f32 %v882, 6.0
      %v937 = vmin.f32 %v883, 6.0
      %v938 = vmin.f32 %v884, 6.0
      %v939 = vmin.f32 %v885, 6.0
      %v940 = vmin.f32 %v886, 6.0
      %v941 = vmin.f32 %v887, 6.0
      %v942 = vmin.f32 %v888, 6.0
      %v943 = vmin.f32 %v889, 6.0
      %v944 = vmin.f32 %v890, 6.0
      %v945 = vmin.f32 %v891, 6.0
      %v946 = vmin.f32 %v892, 6.0
      %v947 = vmin.f32 %v893, 6.0
      %v948 = vmin.f32 %v894, 6.0
      %v949 = vmin.f32 %v895, 6.0
      %v950 = vmin.f32 %v896, 6.0
      %v951 = vmin.f32 %v897, 6.0
      %v952 = vmin.f32 %v898, 6.0
      %v953 = vmin.f32 %v899, 6.0
      %v954 = vmin.f32 %v900, 6.0
      %v955 = vmin.f32 %v901, 6.0
      %v956 = vmin.f32 %v902, 6.0
      %v957 = vmin.f32 %v903, 6.0
      %v958 = vmin.f32 %v904, 6.0
      %v959 = vmin.f32 %v905, 6.0
      %v960 = vmin.f32 %v906, 6.0
      %v961 = vmin.f32 %v907, 6.0
      %v962 = vmin.f32 %v908, 6.0
      %v963 = vmin.f32 %v909, 6.0
      %v964 = vmin.f32 %v910, 6.0
      %v965 = vmin.f32 %v911, 6.0
      %v966 = vmin.f32 %v912, 6.0
      %v967 = vmin.f32 %v913, 6.0
      %v968 = vmin.f32 %v914, 6.0
      %v969 = vmin.f32 %v915, 6.0
      %v970 = vmin.f32 %v916, 6.0
      %v971 = vmin.f32 %v917, 6.0
      %v972 = vmin.f32 %v918, 6.0
      %v973 = vmin.f32 %v919, 6.0
      %v974 = vmin.f32 %v920, 6.0
      %975 = vst [vmem:[#allocation2] sm:$0xff] %v921
      %976 = vst [vmem:[#allocation2 + $0x8] sm:$0xff] %v922
      %977 = vst [vmem:[#allocation2 + $0x10] sm:$0xff] %v923
      %978 = vst [vmem:[#allocation2 + $0x18] sm:$0xff] %v924
      %979 = vst [vmem:[#allocation2 + $0x20] sm:$0xff] %v925
      %980 = vst [vmem:[#allocation2 + $0x28] sm:$0xff] %v926
      %981 = vst [vmem:[#allocation2 + $0x30] sm:$0xff] %v927
      %982 = vst [vmem:[#allocation2 + $0x38] sm:$0xff] %v928
      %983 = vst [vmem:[#allocation2 + $0x40] sm:$0xff] %v929
      %984 = vst [vmem:[#allocation2 + $0x48] sm:$0xff] %v930
      %985 = vst [vmem:[#allocation2 + $0x50] sm:$0xff] %v931
      %986 = vst [vmem:[#allocation2 + $0x58] sm:$0xff] %v932
      %987 = vst [vmem:[#allocation2 + $0x60] sm:$0xff] %v933
      %988 = vst [vmem:[#allocation2 + $0x68] sm:$0xff] %v934
      %989 = vst [vmem:[#allocation2 + $0x70] sm:$0xff] %v935
      %990 = vst [vmem:[#allocation2 + $0x78] sm:$0xff] %v936
      %991 = vst [vmem:[#allocation2 + $0x80] sm:$0xff] %v937
      %992 = vst [vmem:[#allocation2 + $0x88] sm:$0xff] %v938
      %993 = vst [vmem:[#allocation2 + $0x90] sm:$0xff] %v939
      %994 = vst [vmem:[#allocation2 + $0x98] sm:$0xff] %v940
      %995 = vst [vmem:[#allocation2 + $0xa0] sm:$0xff] %v941
      %996 = vst [vmem:[#allocation2 + $0xa8] sm:$0xff] %v942
      %997 = vst [vmem:[#allocation2 + $0xb0] sm:$0xff] %v943
      %998 = vst [vmem:[#allocation2 + $0xb8] sm:$0xff] %v944
      %999 = vst [vmem:[#allocation2 + $0xc0] sm:$0xff] %v945
      %1000 = vst [vmem:[#allocation2 + $0xc8] sm:$0xff] %v946
      %1001 = vst [vmem:[#allocation2 + $0xd0] sm:$0xff] %v947
      %1002 = vst [vmem:[#allocation2 + $0xd8] sm:$0xff] %v948
      %1003 = vst [vmem:[#allocation2 + $0xe0] sm:$0xff] %v949
      %1004 = vst [vmem:[#allocation2 + $0xe8] sm:$0xff] %v950
      %1005 = vst [vmem:[#allocation2 + $0xf0] sm:$0xff] %v951
      %1006 = vst [vmem:[#allocation2 + $0xf8] sm:$0xff] %v952
      %1007 = vst [vmem:[#allocation2 + $0x100] sm:$0xff] %v953
      %1008 = vst [vmem:[#allocation2 + $0x108] sm:$0xff] %v954
      %1009 = vst [vmem:[#allocation2 + $0x110] sm:$0xff] %v955
      %1010 = vst [vmem:[#allocation2 + $0x118] sm:$0xff] %v956
      %1011 = vst [vmem:[#allocation2 + $0x120] sm:$0xff] %v957
      %1012 = vst [vmem:[#allocation2 + $0x128] sm:$0xff] %v958
      %1013 = vst [vmem:[#allocation2 + $0x130] sm:$0xff] %v959
      %1014 = vst [vmem:[#allocation2 + $0x138] sm:$0xff] %v960
      %1015 = vst [vmem:[#allocation2 + $0x140] sm:$0xff] %v961
      %1016 = vst [vmem:[#allocation2 + $0x148] sm:$0xff] %v962
      %1017 = vst [vmem:[#allocation2 + $0x150] sm:$0xff] %v963
      %1018 = vst [vmem:[#allocation2 + $0x158] sm:$0xff] %v964
      %1019 = vst [vmem:[#allocation2 + $0x160] sm:$0xff] %v965
      %1020 = vst [vmem:[#allocation2 + $0x168] sm:$0xff] %v966
      %1021 = vst [vmem:[#allocation2 + $0x170] sm:$0xff] %v967
      %1022 = vst [vmem:[#allocation2 + $0x178] sm:$0xff] %v968
      %1023 = vst [vmem:[#allocation2 + $0x180] sm:$0xff] %v969
      %1024 = vst [vmem:[#allocation2 + $0x188] sm:$0xff] %v970
      %1025 = vst [vmem:[#allocation2 + $0x190] sm:$0xff] %v971
      %1026 = vst [vmem:[#allocation2 + $0x198] sm:$0xff] %v972
      %1027 = vst [vmem:[#allocation2 + $0x1a0] sm:$0xff] %v973
      %1028 = vst [vmem:[#allocation2 + $0x1a8] sm:$0xff] %v974
      %v1029 = vld [vmem:[%s2] sm:$0xff]
      %v1030 = vld [vmem:[%s2 + $0x8] sm:$0x1]
      %v1031 = vld [vmem:[#allocation2] sm:$0xff]
      %v1032 = vld [vmem:[#allocation2 + $0x8] sm:$0xff]
      %v1033 = vld [vmem:[#allocation2 + $0x10] sm:$0xff]
      %v1034 = vld [vmem:[#allocation2 + $0x18] sm:$0xff]
      %v1035 = vld [vmem:[#allocation2 + $0x20] sm:$0xff]
      %v1036 = vld [vmem:[#allocation2 + $0x28] sm:$0xff]
      %v1037 = vld [vmem:[#allocation2 + $0x30] sm:$0xff]
      %v1038 = vld [vmem:[#allocation2 + $0x38] sm:$0xff]
      %v1039 = vld [vmem:[#allocation2 + $0x40] sm:$0xff]
      %v1040 = vld [vmem:[#allocation2 + $0x48] sm:$0xff]
      %v1041 = vld [vmem:[#allocation2 + $0x50] sm:$0xff]
      %v1042 = vld [vmem:[#allocation2 + $0x58] sm:$0xff]
      %v1043 = vld [vmem:[#allocation2 + $0x60] sm:$0xff]
      %v1044 = vld [vmem:[#allocation2 + $0x68] sm:$0xff]
      %v1045 = vld [vmem:[#allocation2 + $0x70] sm:$0xff]
      %v1046 = vld [vmem:[#allocation2 + $0x78] sm:$0xff]
      %v1047 = vld [vmem:[#allocation2 + $0x80] sm:$0xff]
      %v1048 = vld [vmem:[#allocation2 + $0x88] sm:$0xff]
      %v1049 = vld [vmem:[#allocation2 + $0x90] sm:$0xff]
      %v1050 = vld [vmem:[#allocation2 + $0x98] sm:$0xff]
      %v1051 = vld [vmem:[#allocation2 + $0xa0] sm:$0xff]
      %v1052 = vld [vmem:[#allocation2 + $0xa8] sm:$0xff]
      %v1053 = vld [vmem:[#allocation2 + $0xb0] sm:$0xff]
      %v1054 = vld [vmem:[#allocation2 + $0xb8] sm:$0xff]
      %v1055 = vld [vmem:[#allocation2 + $0xc0] sm:$0xff]
      %v1056 = vld [vmem:[#allocation2 + $0xc8] sm:$0xff]
      %v1057 = vld [vmem:[#allocation2 + $0xd0] sm:$0xff]
      %v1058 = vld [vmem:[#allocation2 + $0xd8] sm:$0xff]
      %v1059 = vld [vmem:[#allocation2 + $0xe0] sm:$0xff]
      %v1060 = vld [vmem:[#allocation2 + $0xe8] sm:$0xff]
      %v1061 = vld [vmem:[#allocation2 + $0xf0] sm:$0xff]
      %v1062 = vld [vmem:[#allocation2 + $0xf8] sm:$0xff]
      %v1063 = vld [vmem:[#allocation2 + $0x100] sm:$0xff]
      %v1064 = vld [vmem:[#allocation2 + $0x108] sm:$0xff]
      %v1065 = vld [vmem:[#allocation2 + $0x110] sm:$0xff]
      %v1066 = vld [vmem:[#allocation2 + $0x118] sm:$0xff]
      %v1067 = vld [vmem:[#allocation2 + $0x120] sm:$0xff]
      %v1068 = vld [vmem:[#allocation2 + $0x128] sm:$0xff]
      %v1069 = vld [vmem:[#allocation2 + $0x130] sm:$0xff]
      %v1070 = vld [vmem:[#allocation2 + $0x138] sm:$0xff]
      %v1071 = vld [vmem:[#allocation2 + $0x140] sm:$0xff]
      %v1072 = vld [vmem:[#allocation2 + $0x148] sm:$0xff]
      %v1073 = vld [vmem:[#allocation2 + $0x150] sm:$0xff]
      %v1074 = vld [vmem:[#allocation2 + $0x158] sm:$0xff]
      %v1075 = vld [vmem:[#allocation2 + $0x160] sm:$0xff]
      %v1076 = vld [vmem:[#allocation2 + $0x168] sm:$0xff]
      %v1077 = vld [vmem:[#allocation2 + $0x170] sm:$0xff]
      %v1078 = vlaneseq
      %v1079 = vshrl.u32 %v1078, 7
      %v1080 = vsub.s32 0, %v1079
      %v1081 = vrot.slane %v1029, %v1080
      %v1082 = vmul.f32 %v1031, %v1081
      %v1083 = vmul.f32 %v1032, %v1081
      %v1084 = vmul.f32 %v1033, %v1081
      %v1085 = vmul.f32 %v1034, %v1081
      %v1086 = vmul.f32 %v1035, %v1081
      %v1087 = vmul.f32 %v1036, %v1081
      %v1088 = vmul.f32 %v1037, %v1081
      %v1089 = vmul.f32 %v1038, %v1081
      %v1090 = vmul.f32 %v1039, %v1081
      %v1091 = vmul.f32 %v1040, %v1081
      %v1092 = vmul.f32 %v1041, %v1081
      %v1093 = vmul.f32 %v1042, %v1081
      %v1094 = vmul.f32 %v1043, %v1081
      %v1095 = vmul.f32 %v1044, %v1081
      %v1096 = vmul.f32 %v1045, %v1081
      %v1097 = vmul.f32 %v1046, %v1081
      %v1098 = vmul.f32 %v1047, %v1081
      %v1099 = vmul.f32 %v1048, %v1081
      %v1100 = vmul.f32 %v1049, %v1081
      %v1101 = vmul.f32 %v1050, %v1081
      %v1102 = vmul.f32 %v1051, %v1081
      %v1103 = vmul.f32 %v1052, %v1081
      %v1104 = vmul.f32 %v1053, %v1081
      %v1105 = vmul.f32 %v1054, %v1081
      %v1106 = vmul.f32 %v1055, %v1081
      %v1107 = vmul.f32 %v1056, %v1081
      %v1108 = vmul.f32 %v1057, %v1081
      %v1109 = vmul.f32 %v1058, %v1081
      %v1110 = vmul.f32 %v1059, %v1081
      %v1111 = vmul.f32 %v1060, %v1081
      %v1112 = vmul.f32 %v1061, %v1081
      %v1113 = vmul.f32 %v1062, %v1081
      %v1114 = vmul.f32 %v1063, %v1081
      %v1115 = vmul.f32 %v1064, %v1081
      %v1116 = vmul.f32 %v1065, %v1081
      %v1117 = vmul.f32 %v1066, %v1081
      %v1118 = vmul.f32 %v1067, %v1081
      %v1119 = vmul.f32 %v1068, %v1081
      %v1120 = vmul.f32 %v1069, %v1081
      %v1121 = vmul.f32 %v1070, %v1081
      %v1122 = vmul.f32 %v1071, %v1081
      %v1123 = vmul.f32 %v1072, %v1081
      %v1124 = vmul.f32 %v1073, %v1081
      %v1125 = vmul.f32 %v1074, %v1081
      %v1126 = vmul.f32 %v1075, %v1081
      %v1127 = vmul.f32 %v1076, %v1081
      %v1128 = vmul.f32 %v1077, %v1081
      %v1129 = vld [vmem:[#allocation2 + $0x1] sm:$0xff]
      %v1130 = vld [vmem:[#allocation2 + $0x9] sm:$0xff]
      %v1131 = vld [vmem:[#allocation2 + $0x11] sm:$0xff]
      %v1132 = vld [vmem:[#allocation2 + $0x19] sm:$0xff]
      %v1133 = vld [vmem:[#allocation2 + $0x21] sm:$0xff]
      %v1134 = vld [vmem:[#allocation2 + $0x29] sm:$0xff]
      %v1135 = vld [vmem:[#allocation2 + $0x31] sm:$0xff]
      %v1136 = vld [vmem:[#allocation2 + $0x39] sm:$0xff]
      %v1137 = vld [vmem:[#allocation2 + $0x41] sm:$0xff]
      %v1138 = vld [vmem:[#allocation2 + $0x49] sm:$0xff]
      %v1139 = vld [vmem:[#allocation2 + $0x51] sm:$0xff]
      %v1140 = vld [vmem:[#allocation2 + $0x59] sm:$0xff]
      %v1141 = vld [vmem:[#allocation2 + $0x61] sm:$0xff]
      %v1142 = vld [vmem:[#allocation2 + $0x69] sm:$0xff]
      %v1143 = vld [vmem:[#allocation2 + $0x71] sm:$0xff]
      %v1144 = vld [vmem:[#allocation2 + $0x79] sm:$0xff]
      %v1145 = vld [vmem:[#allocation2 + $0x81] sm:$0xff]
      %v1146 = vld [vmem:[#allocation2 + $0x89] sm:$0xff]
      %v1147 = vld [vmem:[#allocation2 + $0x91] sm:$0xff]
      %v1148 = vld [vmem:[#allocation2 + $0x99] sm:$0xff]
      %v1149 = vld [vmem:[#allocation2 + $0xa1] sm:$0xff]
      %v1150 = vld [vmem:[#allocation2 + $0xa9] sm:$0xff]
      %v1151 = vld [vmem:[#allocation2 + $0xb1] sm:$0xff]
      %v1152 = vld [vmem:[#allocation2 + $0xb9] sm:$0xff]
      %v1153 = vld [vmem:[#allocation2 + $0xc1] sm:$0xff]
      %v1154 = vld [vmem:[#allocation2 + $0xc9] sm:$0xff]
      %v1155 = vld [vmem:[#allocation2 + $0xd1] sm:$0xff]
      %v1156 = vld [vmem:[#allocation2 + $0xd9] sm:$0xff]
      %v1157 = vld [vmem:[#allocation2 + $0xe1] sm:$0xff]
      %v1158 = vld [vmem:[#allocation2 + $0xe9] sm:$0xff]
      %v1159 = vld [vmem:[#allocation2 + $0xf1] sm:$0xff]
      %v1160 = vld [vmem:[#allocation2 + $0xf9] sm:$0xff]
      %v1161 = vld [vmem:[#allocation2 + $0x101] sm:$0xff]
      %v1162 = vld [vmem:[#allocation2 + $0x109] sm:$0xff]
      %v1163 = vld [vmem:[#allocation2 + $0x111] sm:$0xff]
      %v1164 = vld [vmem:[#allocation2 + $0x119] sm:$0xff]
      %v1165 = vld [vmem:[#allocation2 + $0x121] sm:$0xff]
      %v1166 = vld [vmem:[#allocation2 + $0x129] sm:$0xff]
      %v1167 = vld [vmem:[#allocation2 + $0x131] sm:$0xff]
      %v1168 = vld [vmem:[#allocation2 + $0x139] sm:$0xff]
      %v1169 = vld [vmem:[#allocation2 + $0x141] sm:$0xff]
      %v1170 = vld [vmem:[#allocation2 + $0x149] sm:$0xff]
      %v1171 = vld [vmem:[#allocation2 + $0x151] sm:$0xff]
      %v1172 = vld [vmem:[#allocation2 + $0x159] sm:$0xff]
      %v1173 = vld [vmem:[#allocation2 + $0x161] sm:$0xff]
      %v1174 = vld [vmem:[#allocation2 + $0x169] sm:$0xff]
      %v1175 = vld [vmem:[#allocation2 + $0x171] sm:$0xff]
      %v1176 = vlaneseq
      %v1177 = vshrl.u32 %v1176, 7
      %v1178 = vsub.s32 1, %v1177
      %v1179 = vrot.slane %v1029, %v1178
      %v1180 = vmul.f32 %v1129, %v1179
      %v1181 = vmul.f32 %v1130, %v1179
      %v1182 = vmul.f32 %v1131, %v1179
      %v1183 = vmul.f32 %v1132, %v1179
      %v1184 = vmul.f32 %v1133, %v1179
      %v1185 = vmul.f32 %v1134, %v1179
      %v1186 = vmul.f32 %v1135, %v1179
      %v1187 = vmul.f32 %v1136, %v1179
      %v1188 = vmul.f32 %v1137, %v1179
      %v1189 = vmul.f32 %v1138, %v1179
      %v1190 = vmul.f32 %v1139, %v1179
      %v1191 = vmul.f32 %v1140, %v1179
      %v1192 = vmul.f32 %v1141, %v1179
      %v1193 = vmul.f32 %v1142, %v1179
      %v1194 = vmul.f32 %v1143, %v1179
      %v1195 = vmul.f32 %v1144, %v1179
      %v1196 = vmul.f32 %v1145, %v1179
      %v1197 = vmul.f32 %v1146, %v1179
      %v1198 = vmul.f32 %v1147, %v1179
      %v1199 = vmul.f32 %v1148, %v1179
      %v1200 = vmul.f32 %v1149, %v1179
      %v1201 = vmul.f32 %v1150, %v1179
      %v1202 = vmul.f32 %v1151, %v1179
      %v1203 = vmul.f32 %v1152, %v1179
      %v1204 = vmul.f32 %v1153, %v1179
      %v1205 = vmul.f32 %v1154, %v1179
      %v1206 = vmul.f32 %v1155, %v1179
      %v1207 = vmul.f32 %v1156, %v1179
      %v1208 = vmul.f32 %v1157, %v1179
      %v1209 = vmul.f32 %v1158, %v1179
      %v1210 = vmul.f32 %v1159, %v1179
      %v1211 = vmul.f32 %v1160, %v1179
      %v1212 = vmul.f32 %v1161, %v1179
      %v1213 = vmul.f32 %v1162, %v1179
      %v1214 = vmul.f32 %v1163, %v1179
      %v1215 = vmul.f32 %v1164, %v1179
      %v1216 = vmul.f32 %v1165, %v1179
      %v1217 = vmul.f32 %v1166, %v1179
      %v1218 = vmul.f32 %v1167, %v1179
      %v1219 = vmul.f32 %v1168, %v1179
      %v1220 = vmul.f32 %v1169, %v1179
      %v1221 = vmul.f32 %v1170, %v1179
      %v1222 = vmul.f32 %v1171, %v1179
      %v1223 = vmul.f32 %v1172, %v1179
      %v1224 = vmul.f32 %v1173, %v1179
      %v1225 = vmul.f32 %v1174, %v1179
      %v1226 = vmul.f32 %v1175, %v1179
      %v1227 = vadd.f32 %v1082, %v1180
      %v1228 = vadd.f32 %v1083, %v1181
      %v1229 = vadd.f32 %v1084, %v1182
      %v1230 = vadd.f32 %v1085, %v1183
      %v1231 = vadd.f32 %v1086, %v1184
      %v1232 = vadd.f32 %v1087, %v1185
      %v1233 = vadd.f32 %v1088, %v1186
      %v1234 = vadd.f32 %v1089, %v1187
      %v1235 = vadd.f32 %v1090, %v1188
      %v1236 = vadd.f32 %v1091, %v1189
      %v1237 = vadd.f32 %v1092, %v1190
      %v1238 = vadd.f32 %v1093, %v1191
      %v1239 = vadd.f32 %v1094, %v1192
      %v1240 = vadd.f32 %v1095, %v1193
      %v1241 = vadd.f32 %v1096, %v1194
      %v1242 = vadd.f32 %v1097, %v1195
      %v1243 = vadd.f32 %v1098, %v1196
      %v1244 = vadd.f32 %v1099, %v1197
      %v1245 = vadd.f32 %v1100, %v1198
      %v1246 = vadd.f32 %v1101, %v1199
      %v1247 = vadd.f32 %v1102, %v1200
      %v1248 = vadd.f32 %v1103, %v1201
      %v1249 = vadd.f32 %v1104, %v1202
      %v1250 = vadd.f32 %v1105, %v1203
      %v1251 = vadd.f32 %v1106, %v1204
      %v1252 = vadd.f32 %v1107, %v1205
      %v1253 = vadd.f32 %v1108, %v1206
      %v1254 = vadd.f32 %v1109, %v1207
      %v1255 = vadd.f32 %v1110, %v1208
      %v1256 = vadd.f32 %v1111, %v1209
      %v1257 = vadd.f32 %v1112, %v1210
      %v1258 = vadd.f32 %v1113, %v1211
      %v1259 = vadd.f32 %v1114, %v1212
      %v1260 = vadd.f32 %v1115, %v1213
      %v1261 = vadd.f32 %v1116, %v1214
      %v1262 = vadd.f32 %v1117, %v1215
      %v1263 = vadd.f32 %v1118, %v1216
      %v1264 = vadd.f32 %v1119, %v1217
      %v1265 = vadd.f32 %v1120, %v1218
      %v1266 = vadd.f32 %v1121, %v1219
      %v1267 = vadd.f32 %v1122, %v1220
      %v1268 = vadd.f32 %v1123, %v1221
      %v1269 = vadd.f32 %v1124, %v1222
      %v1270 = vadd.f32 %v1125, %v1223
      %v1271 = vadd.f32 %v1126, %v1224
      %v1272 = vadd.f32 %v1127, %v1225
      %v1273 = vadd.f32 %v1128, %v1226
      %v1274 = vld [vmem:[#allocation2 + $0x2] sm:$0xff]
      %v1275 = vld [vmem:[#allocation2 + $0xa] sm:$0xff]
      %v1276 = vld [vmem:[#allocation2 + $0x12] sm:$0xff]
      %v1277 = vld [vmem:[#allocation2 + $0x1a] sm:$0xff]
      %v1278 = vld [vmem:[#allocation2 + $0x22] sm:$0xff]
      %v1279 = vld [vmem:[#allocation2 + $0x2a] sm:$0xff]
      %v1280 = vld [vmem:[#allocation2 + $0x32] sm:$0xff]
      %v1281 = vld [vmem:[#allocation2 + $0x3a] sm:$0xff]
      %v1282 = vld [vmem:[#allocation2 + $0x42] sm:$0xff]
      %v1283 = vld [vmem:[#allocation2 + $0x4a] sm:$0xff]
      %v1284 = vld [vmem:[#allocation2 + $0x52] sm:$0xff]
      %v1285 = vld [vmem:[#allocation2 + $0x5a] sm:$0xff]
      %v1286 = vld [vmem:[#allocation2 + $0x62] sm:$0xff]
      %v1287 = vld [vmem:[#allocation2 + $0x6a] sm:$0xff]
      %v1288 = vld [vmem:[#allocation2 + $0x72] sm:$0xff]
      %v1289 = vld [vmem:[#allocation2 + $0x7a] sm:$0xff]
      %v1290 = vld [vmem:[#allocation2 + $0x82] sm:$0xff]
      %v1291 = vld [vmem:[#allocation2 + $0x8a] sm:$0xff]
      %v1292 = vld [vmem:[#allocation2 + $0x92] sm:$0xff]
      %v1293 = vld [vmem:[#allocation2 + $0x9a] sm:$0xff]
      %v1294 = vld [vmem:[#allocation2 + $0xa2] sm:$0xff]
      %v1295 = vld [vmem:[#allocation2 + $0xaa] sm:$0xff]
      %v1296 = vld [vmem:[#allocation2 + $0xb2] sm:$0xff]
      %v1297 = vld [vmem:[#allocation2 + $0xba] sm:$0xff]
      %v1298 = vld [vmem:[#allocation2 + $0xc2] sm:$0xff]
      %v1299 = vld [vmem:[#allocation2 + $0xca] sm:$0xff]
      %v1300 = vld [vmem:[#allocation2 + $0xd2] sm:$0xff]
      %v1301 = vld [vmem:[#allocation2 + $0xda] sm:$0xff]
      %v1302 = vld [vmem:[#allocation2 + $0xe2] sm:$0xff]
      %v1303 = vld [vmem:[#allocation2 + $0xea] sm:$0xff]
      %v1304 = vld [vmem:[#allocation2 + $0xf2] sm:$0xff]
      %v1305 = vld [vmem:[#allocation2 + $0xfa] sm:$0xff]
      %v1306 = vld [vmem:[#allocation2 + $0x102] sm:$0xff]
      %v1307 = vld [vmem:[#allocation2 + $0x10a] sm:$0xff]
      %v1308 = vld [vmem:[#allocation2 + $0x112] sm:$0xff]
      %v1309 = vld [vmem:[#allocation2 + $0x11a] sm:$0xff]
      %v1310 = vld [vmem:[#allocation2 + $0x122] sm:$0xff]
      %v1311 = vld [vmem:[#allocation2 + $0x12a] sm:$0xff]
      %v1312 = vld [vmem:[#allocation2 + $0x132] sm:$0xff]
      %v1313 = vld [vmem:[#allocation2 + $0x13a] sm:$0xff]
      %v1314 = vld [vmem:[#allocation2 + $0x142] sm:$0xff]
      %v1315 = vld [vmem:[#allocation2 + $0x14a] sm:$0xff]
      %v1316 = vld [vmem:[#allocation2 + $0x152] sm:$0xff]
      %v1317 = vld [vmem:[#allocation2 + $0x15a] sm:$0xff]
      %v1318 = vld [vmem:[#allocation2 + $0x162] sm:$0xff]
      %v1319 = vld [vmem:[#allocation2 + $0x16a] sm:$0xff]
      %v1320 = vld [vmem:[#allocation2 + $0x172] sm:$0xff]
      %v1321 = vlaneseq
      %v1322 = vshrl.u32 %v1321, 7
      %v1323 = vsub.s32 2, %v1322
      %v1324 = vrot.slane %v1029, %v1323
      %v1325 = vmul.f32 %v1274, %v1324
      %v1326 = vmul.f32 %v1275, %v1324
      %v1327 = vmul.f32 %v1276, %v1324
      %v1328 = vmul.f32 %v1277, %v1324
      %v1329 = vmul.f32 %v1278, %v1324
      %v1330 = vmul.f32 %v1279, %v1324
      %v1331 = vmul.f32 %v1280, %v1324
      %v1332 = vmul.f32 %v1281, %v1324
      %v1333 = vmul.f32 %v1282, %v1324
      %v1334 = vmul.f32 %v1283, %v1324
      %v1335 = vmul.f32 %v1284, %v1324
      %v1336 = vmul.f32 %v1285, %v1324
      %v1337 = vmul.f32 %v1286, %v1324
      %v1338 = vmul.f32 %v1287, %v1324
      %v1339 = vmul.f32 %v1288, %v1324
      %v1340 = vmul.f32 %v1289, %v1324
      %v1341 = vmul.f32 %v1290, %v1324
      %v1342 = vmul.f32 %v1291, %v1324
      %v1343 = vmul.f32 %v1292, %v1324
      %v1344 = vmul.f32 %v1293, %v1324
      %v1345 = vmul.f32 %v1294, %v1324
      %v1346 = vmul.f32 %v1295, %v1324
      %v1347 = vmul.f32 %v1296, %v1324
      %v1348 = vmul.f32 %v1297, %v1324
      %v1349 = vmul.f32 %v1298, %v1324
      %v1350 = vmul.f32 %v1299, %v1324
      %v1351 = vmul.f32 %v1300, %v1324
      %v1352 = vmul.f32 %v1301, %v1324
      %v1353 = vmul.f32 %v1302, %v1324
      %v1354 = vmul.f32 %v1303, %v1324
      %v1355 = vmul.f32 %v1304, %v1324
      %v1356 = vmul.f32 %v1305, %v1324
      %v1357 = vmul.f32 %v1306, %v1324
      %v1358 = vmul.f32 %v1307, %v1324
      %v1359 = vmul.f32 %v1308, %v1324
      %v1360 = vmul.f32 %v1309, %v1324
      %v1361 = vmul.f32 %v1310, %v1324
      %v1362 = vmul.f32 %v1311, %v1324
      %v1363 = vmul.f32 %v1312, %v1324
      %v1364 = vmul.f32 %v1313, %v1324
      %v1365 = vmul.f32 %v1314, %v1324
      %v1366 = vmul.f32 %v1315, %v1324
      %v1367 = vmul.f32 %v1316, %v1324
      %v1368 = vmul.f32 %v1317, %v1324
      %v1369 = vmul.f32 %v1318, %v1324
      %v1370 = vmul.f32 %v1319, %v1324
      %v1371 = vmul.f32 %v1320, %v1324
      %v1372 = vadd.f32 %v1227, %v1325
      %v1373 = vadd.f32 %v1228, %v1326
      %v1374 = vadd.f32 %v1229, %v1327
      %v1375 = vadd.f32 %v1230, %v1328
      %v1376 = vadd.f32 %v1231, %v1329
      %v1377 = vadd.f32 %v1232, %v1330
      %v1378 = vadd.f32 %v1233, %v1331
      %v1379 = vadd.f32 %v1234, %v1332
      %v1380 = vadd.f32 %v1235, %v1333
      %v1381 = vadd.f32 %v1236, %v1334
      %v1382 = vadd.f32 %v1237, %v1335
      %v1383 = vadd.f32 %v1238, %v1336
      %v1384 = vadd.f32 %v1239, %v1337
      %v1385 = vadd.f32 %v1240, %v1338
      %v1386 = vadd.f32 %v1241, %v1339
      %v1387 = vadd.f32 %v1242, %v1340
      %v1388 = vadd.f32 %v1243, %v1341
      %v1389 = vadd.f32 %v1244, %v1342
      %v1390 = vadd.f32 %v1245, %v1343
      %v1391 = vadd.f32 %v1246, %v1344
      %v1392 = vadd.f32 %v1247, %v1345
      %v1393 = vadd.f32 %v1248, %v1346
      %v1394 = vadd.f32 %v1249, %v1347
      %v1395 = vadd.f32 %v1250, %v1348
      %v1396 = vadd.f32 %v1251, %v1349
      %v1397 = vadd.f32 %v1252, %v1350
      %v1398 = vadd.f32 %v1253, %v1351
      %v1399 = vadd.f32 %v1254, %v1352
      %v1400 = vadd.f32 %v1255, %v1353
      %v1401 = vadd.f32 %v1256, %v1354
      %v1402 = vadd.f32 %v1257, %v1355
      %v1403 = vadd.f32 %v1258, %v1356
      %v1404 = vadd.f32 %v1259, %v1357
      %v1405 = vadd.f32 %v1260, %v1358
      %v1406 = vadd.f32 %v1261, %v1359
      %v1407 = vadd.f32 %v1262, %v1360
      %v1408 = vadd.f32 %v1263, %v1361
      %v1409 = vadd.f32 %v1264, %v1362
      %v1410 = vadd.f32 %v1265, %v1363
      %v1411 = vadd.f32 %v1266, %v1364
      %v1412 = vadd.f32 %v1267, %v1365
      %v1413 = vadd.f32 %v1268, %v1366
      %v1414 = vadd.f32 %v1269, %v1367
      %v1415 = vadd.f32 %v1270, %v1368
      %v1416 = vadd.f32 %v1271, %v1369
      %v1417 = vadd.f32 %v1272, %v1370
      %v1418 = vadd.f32 %v1273, %v1371
      %v1419 = vld [vmem:[#allocation2 + $0x178] sm:$0xff]
      %v1420 = vld [vmem:[#allocation2 + $0x180] sm:$0xff]
      %v1421 = vld [vmem:[#allocation2 + $0x188] sm:$0xff]
      %v1422 = vlaneseq
      %v1423 = vshrl.u32 %v1422, 7
      %v1424 = vsub.s32 3, %v1423
      %v1425 = vrot.slane %v1029, %v1424
      %v1426 = vmul.f32 %v1034, %v1425
      %v1427 = vmul.f32 %v1035, %v1425
      %v1428 = vmul.f32 %v1036, %v1425
      %v1429 = vmul.f32 %v1037, %v1425
      %v1430 = vmul.f32 %v1038, %v1425
      %v1431 = vmul.f32 %v1039, %v1425
      %v1432 = vmul.f32 %v1040, %v1425
      %v1433 = vmul.f32 %v1041, %v1425
      %v1434 = vmul.f32 %v1042, %v1425
      %v1435 = vmul.f32 %v1043, %v1425
      %v1436 = vmul.f32 %v1044, %v1425
      %v1437 = vmul.f32 %v1045, %v1425
      %v1438 = vmul.f32 %v1046, %v1425
      %v1439 = vmul.f32 %v1047, %v1425
      %v1440 = vmul.f32 %v1048, %v1425
      %v1441 = vmul.f32 %v1049, %v1425
      %v1442 = vmul.f32 %v1050, %v1425
      %v1443 = vmul.f32 %v1051, %v1425
      %v1444 = vmul.f32 %v1052, %v1425
      %v1445 = vmul.f32 %v1053, %v1425
      %v1446 = vmul.f32 %v1054, %v1425
      %v1447 = vmul.f32 %v1055, %v1425
      %v1448 = vmul.f32 %v1056, %v1425
      %v1449 = vmul.f32 %v1057, %v1425
      %v1450 = vmul.f32 %v1058, %v1425
      %v1451 = vmul.f32 %v1059, %v1425
      %v1452 = vmul.f32 %v1060, %v1425
      %v1453 = vmul.f32 %v1061, %v1425
      %v1454 = vmul.f32 %v1062, %v1425
      %v1455 = vmul.f32 %v1063, %v1425
      %v1456 = vmul.f32 %v1064, %v1425
      %v1457 = vmul.f32 %v1065, %v1425
      %v1458 = vmul.f32 %v1066, %v1425
      %v1459 = vmul.f32 %v1067, %v1425
      %v1460 = vmul.f32 %v1068, %v1425
      %v1461 = vmul.f32 %v1069, %v1425
      %v1462 = vmul.f32 %v1070, %v1425
      %v1463 = vmul.f32 %v1071, %v1425
      %v1464 = vmul.f32 %v1072, %v1425
      %v1465 = vmul.f32 %v1073, %v1425
      %v1466 = vmul.f32 %v1074, %v1425
      %v1467 = vmul.f32 %v1075, %v1425
      %v1468 = vmul.f32 %v1076, %v1425
      %v1469 = vmul.f32 %v1077, %v1425
      %v1470 = vmul.f32 %v1419, %v1425
      %v1471 = vmul.f32 %v1420, %v1425
      %v1472 = vmul.f32 %v1421, %v1425
      %v1473 = vadd.f32 %v1372, %v1426
      %v1474 = vadd.f32 %v1373, %v1427
      %v1475 = vadd.f32 %v1374, %v1428
      %v1476 = vadd.f32 %v1375, %v1429
      %v1477 = vadd.f32 %v1376, %v1430
      %v1478 = vadd.f32 %v1377, %v1431
      %v1479 = vadd.f32 %v1378, %v1432
      %v1480 = vadd.f32 %v1379, %v1433
      %v1481 = vadd.f32 %v1380, %v1434
      %v1482 = vadd.f32 %v1381, %v1435
      %v1483 = vadd.f32 %v1382, %v1436
      %v1484 = vadd.f32 %v1383, %v1437
      %v1485 = vadd.f32 %v1384, %v1438
      %v1486 = vadd.f32 %v1385, %v1439
      %v1487 = vadd.f32 %v1386, %v1440
      %v1488 = vadd.f32 %v1387, %v1441
      %v1489 = vadd.f32 %v1388, %v1442
      %v1490 = vadd.f32 %v1389, %v1443
      %v1491 = vadd.f32 %v1390, %v1444
      %v1492 = vadd.f32 %v1391, %v1445
      %v1493 = vadd.f32 %v1392, %v1446
      %v1494 = vadd.f32 %v1393, %v1447
      %v1495 = vadd.f32 %v1394, %v1448
      %v1496 = vadd.f32 %v1395, %v1449
      %v1497 = vadd.f32 %v1396, %v1450
      %v1498 = vadd.f32 %v1397, %v1451
      %v1499 = vadd.f32 %v1398, %v1452
      %v1500 = vadd.f32 %v1399, %v1453
      %v1501 = vadd.f32 %v1400, %v1454
      %v1502 = vadd.f32 %v1401, %v1455
      %v1503 = vadd.f32 %v1402, %v1456
      %v1504 = vadd.f32 %v1403, %v1457
      %v1505 = vadd.f32 %v1404, %v1458
      %v1506 = vadd.f32 %v1405, %v1459
      %v1507 = vadd.f32 %v1406, %v1460
      %v1508 = vadd.f32 %v1407, %v1461
      %v1509 = vadd.f32 %v1408, %v1462
      %v1510 = vadd.f32 %v1409, %v1463
      %v1511 = vadd.f32 %v1410, %v1464
      %v1512 = vadd.f32 %v1411, %v1465
      %v1513 = vadd.f32 %v1412, %v1466
      %v1514 = vadd.f32 %v1413, %v1467
      %v1515 = vadd.f32 %v1414, %v1468
      %v1516 = vadd.f32 %v1415, %v1469
      %v1517 = vadd.f32 %v1416, %v1470
      %v1518 = vadd.f32 %v1417, %v1471
      %v1519 = vadd.f32 %v1418, %v1472
      %v1520 = vld [vmem:[#allocation2 + $0x179] sm:$0xff]
      %v1521 = vld [vmem:[#allocation2 + $0x181] sm:$0xff]
      %v1522 = vld [vmem:[#allocation2 + $0x189] sm:$0xff]
      %v1523 = vlaneseq
      %v1524 = vshrl.u32 %v1523, 7
      %v1525 = vsub.s32 4, %v1524
      %v1526 = vrot.slane %v1029, %v1525
      %v1527 = vmul.f32 %v1132, %v1526
      %v1528 = vmul.f32 %v1133, %v1526
      %v1529 = vmul.f32 %v1134, %v1526
      %v1530 = vmul.f32 %v1135, %v1526
      %v1531 = vmul.f32 %v1136, %v1526
      %v1532 = vmul.f32 %v1137, %v1526
      %v1533 = vmul.f32 %v1138, %v1526
      %v1534 = vmul.f32 %v1139, %v1526
      %v1535 = vmul.f32 %v1140, %v1526
      %v1536 = vmul.f32 %v1141, %v1526
      %v1537 = vmul.f32 %v1142, %v1526
      %v1538 = vmul.f32 %v1143, %v1526
      %v1539 = vmul.f32 %v1144, %v1526
      %v1540 = vmul.f32 %v1145, %v1526
      %v1541 = vmul.f32 %v1146, %v1526
      %v1542 = vmul.f32 %v1147, %v1526
      %v1543 = vmul.f32 %v1148, %v1526
      %v1544 = vmul.f32 %v1149, %v1526
      %v1545 = vmul.f32 %v1150, %v1526
      %v1546 = vmul.f32 %v1151, %v1526
      %v1547 = vmul.f32 %v1152, %v1526
      %v1548 = vmul.f32 %v1153, %v1526
      %v1549 = vmul.f32 %v1154, %v1526
      %v1550 = vmul.f32 %v1155, %v1526
      %v1551 = vmul.f32 %v1156, %v1526
      %v1552 = vmul.f32 %v1157, %v1526
      %v1553 = vmul.f32 %v1158, %v1526
      %v1554 = vmul.f32 %v1159, %v1526
      %v1555 = vmul.f32 %v1160, %v1526
      %v1556 = vmul.f32 %v1161, %v1526
      %v1557 = vmul.f32 %v1162, %v1526
      %v1558 = vmul.f32 %v1163, %v1526
      %v1559 = vmul.f32 %v1164, %v1526
      %v1560 = vmul.f32 %v1165, %v1526
      %v1561 = vmul.f32 %v1166, %v1526
      %v1562 = vmul.f32 %v1167, %v1526
      %v1563 = vmul.f32 %v1168, %v1526
      %v1564 = vmul.f32 %v1169, %v1526
      %v1565 = vmul.f32 %v1170, %v1526
      %v1566 = vmul.f32 %v1171, %v1526
      %v1567 = vmul.f32 %v1172, %v1526
      %v1568 = vmul.f32 %v1173, %v1526
      %v1569 = vmul.f32 %v1174, %v1526
      %v1570 = vmul.f32 %v1175, %v1526
      %v1571 = vmul.f32 %v1520, %v1526
      %v1572 = vmul.f32 %v1521, %v1526
      %v1573 = vmul.f32 %v1522, %v1526
      %v1574 = vadd.f32 %v1473, %v1527
      %v1575 = vadd.f32 %v1474, %v1528
      %v1576 = vadd.f32 %v1475, %v1529
      %v1577 = vadd.f32 %v1476, %v1530
      %v1578 = vadd.f32 %v1477, %v1531
      %v1579 = vadd.f32 %v1478, %v1532
      %v1580 = vadd.f32 %v1479, %v1533
      %v1581 = vadd.f32 %v1480, %v1534
      %v1582 = vadd.f32 %v1481, %v1535
      %v1583 = vadd.f32 %v1482, %v1536
      %v1584 = vadd.f32 %v1483, %v1537
      %v1585 = vadd.f32 %v1484, %v1538
      %v1586 = vadd.f32 %v1485, %v1539
      %v1587 = vadd.f32 %v1486, %v1540
      %v1588 = vadd.f32 %v1487, %v1541
      %v1589 = vadd.f32 %v1488, %v1542
      %v1590 = vadd.f32 %v1489, %v1543
      %v1591 = vadd.f32 %v1490, %v1544
      %v1592 = vadd.f32 %v1491, %v1545
      %v1593 = vadd.f32 %v1492, %v1546
      %v1594 = vadd.f32 %v1493, %v1547
      %v1595 = vadd.f32 %v1494, %v1548
      %v1596 = vadd.f32 %v1495, %v1549
      %v1597 = vadd.f32 %v1496, %v1550
      %v1598 = vadd.f32 %v1497, %v1551
      %v1599 = vadd.f32 %v1498, %v1552
      %v1600 = vadd.f32 %v1499, %v1553
      %v1601 = vadd.f32 %v1500, %v1554
      %v1602 = vadd.f32 %v1501, %v1555
      %v1603 = vadd.f32 %v1502, %v1556
      %v1604 = vadd.f32 %v1503, %v1557
      %v1605 = vadd.f32 %v1504, %v1558
      %v1606 = vadd.f32 %v1505, %v1559
      %v1607 = vadd.f32 %v1506, %v1560
      %v1608 = vadd.f32 %v1507, %v1561
      %v1609 = vadd.f32 %v1508, %v1562
      %v1610 = vadd.f32 %v1509, %v1563
      %v1611 = vadd.f32 %v1510, %v1564
      %v1612 = vadd.f32 %v1511, %v1565
      %v1613 = vadd.f32 %v1512, %v1566
      %v1614 = vadd.f32 %v1513, %v1567
      %v1615 = vadd.f32 %v1514, %v1568
      %v1616 = vadd.f32 %v1515, %v1569
      %v1617 = vadd.f32 %v1516, %v1570
      %v1618 = vadd.f32 %v1517, %v1571
      %v1619 = vadd.f32 %v1518, %v1572
      %v1620 = vadd.f32 %v1519, %v1573
      %v1621 = vld [vmem:[#allocation2 + $0x17a] sm:$0xff]
      %v1622 = vld [vmem:[#allocation2 + $0x182] sm:$0xff]
      %v1623 = vld [vmem:[#allocation2 + $0x18a] sm:$0xff]
      %v1624 = vlaneseq
      %v1625 = vshrl.u32 %v1624, 7
      %v1626 = vsub.s32 5, %v1625
      %v1627 = vrot.slane %v1029, %v1626
      %v1628 = vmul.f32 %v1277, %v1627
      %v1629 = vmul.f32 %v1278, %v1627
      %v1630 = vmul.f32 %v1279, %v1627
      %v1631 = vmul.f32 %v1280, %v1627
      %v1632 = vmul.f32 %v1281, %v1627
      %v1633 = vmul.f32 %v1282, %v1627
      %v1634 = vmul.f32 %v1283, %v1627
      %v1635 = vmul.f32 %v1284, %v1627
      %v1636 = vmul.f32 %v1285, %v1627
      %v1637 = vmul.f32 %v1286, %v1627
      %v1638 = vmul.f32 %v1287, %v1627
      %v1639 = vmul.f32 %v1288, %v1627
      %v1640 = vmul.f32 %v1289, %v1627
      %v1641 = vmul.f32 %v1290, %v1627
      %v1642 = vmul.f32 %v1291, %v1627
      %v1643 = vmul.f32 %v1292, %v1627
      %v1644 = vmul.f32 %v1293, %v1627
      %v1645 = vmul.f32 %v1294, %v1627
      %v1646 = vmul.f32 %v1295, %v1627
      %v1647 = vmul.f32 %v1296, %v1627
      %v1648 = vmul.f32 %v1297, %v1627
      %v1649 = vmul.f32 %v1298, %v1627
      %v1650 = vmul.f32 %v1299, %v1627
      %v1651 = vmul.f32 %v1300, %v1627
      %v1652 = vmul.f32 %v1301, %v1627
      %v1653 = vmul.f32 %v1302, %v1627
      %v1654 = vmul.f32 %v1303, %v1627
      %v1655 = vmul.f32 %v1304, %v1627
      %v1656 = vmul.f32 %v1305, %v1627
      %v1657 = vmul.f32 %v1306, %v1627
      %v1658 = vmul.f32 %v1307, %v1627
      %v1659 = vmul.f32 %v1308, %v1627
      %v1660 = vmul.f32 %v1309, %v1627
      %v1661 = vmul.f32 %v1310, %v1627
      %v1662 = vmul.f32 %v1311, %v1627
      %v1663 = vmul.f32 %v1312, %v1627
      %v1664 = vmul.f32 %v1313, %v1627
      %v1665 = vmul.f32 %v1314, %v1627
      %v1666 = vmul.f32 %v1315, %v1627
      %v1667 = vmul.f32 %v1316, %v1627
      %v1668 = vmul.f32 %v1317, %v1627
      %v1669 = vmul.f32 %v1318, %v1627
      %v1670 = vmul.f32 %v1319, %v1627
      %v1671 = vmul.f32 %v1320, %v1627
      %v1672 = vmul.f32 %v1621, %v1627
      %v1673 = vmul.f32 %v1622, %v1627
      %v1674 = vmul.f32 %v1623, %v1627
      %v1675 = vadd.f32 %v1574, %v1628
      %v1676 = vadd.f32 %v1575, %v1629
      %v1677 = vadd.f32 %v1576, %v1630
      %v1678 = vadd.f32 %v1577, %v1631
      %v1679 = vadd.f32 %v1578, %v1632
      %v1680 = vadd.f32 %v1579, %v1633
      %v1681 = vadd.f32 %v1580, %v1634
      %v1682 = vadd.f32 %v1581, %v1635
      %v1683 = vadd.f32 %v1582, %v1636
      %v1684 = vadd.f32 %v1583, %v1637
      %v1685 = vadd.f32 %v1584, %v1638
      %v1686 = vadd.f32 %v1585, %v1639
      %v1687 = vadd.f32 %v1586, %v1640
      %v1688 = vadd.f32 %v1587, %v1641
      %v1689 = vadd.f32 %v1588, %v1642
      %v1690 = vadd.f32 %v1589, %v1643
      %v1691 = vadd.f32 %v1590, %v1644
      %v1692 = vadd.f32 %v1591, %v1645
      %v1693 = vadd.f32 %v1592, %v1646
      %v1694 = vadd.f32 %v1593, %v1647
      %v1695 = vadd.f32 %v1594, %v1648
      %v1696 = vadd.f32 %v1595, %v1649
      %v1697 = vadd.f32 %v1596, %v1650
      %v1698 = vadd.f32 %v1597, %v1651
      %v1699 = vadd.f32 %v1598, %v1652
      %v1700 = vadd.f32 %v1599, %v1653
      %v1701 = vadd.f32 %v1600, %v1654
      %v1702 = vadd.f32 %v1601, %v1655
      %v1703 = vadd.f32 %v1602, %v1656
      %v1704 = vadd.f32 %v1603, %v1657
      %v1705 = vadd.f32 %v1604, %v1658
      %v1706 = vadd.f32 %v1605, %v1659
      %v1707 = vadd.f32 %v1606, %v1660
      %v1708 = vadd.f32 %v1607, %v1661
      %v1709 = vadd.f32 %v1608, %v1662
      %v1710 = vadd.f32 %v1609, %v1663
      %v1711 = vadd.f32 %v1610, %v1664
      %v1712 = vadd.f32 %v1611, %v1665
      %v1713 = vadd.f32 %v1612, %v1666
      %v1714 = vadd.f32 %v1613, %v1667
      %v1715 = vadd.f32 %v1614, %v1668
      %v1716 = vadd.f32 %v1615, %v1669
      %v1717 = vadd.f32 %v1616, %v1670
      %v1718 = vadd.f32 %v1617, %v1671
      %v1719 = vadd.f32 %v1618, %v1672
      %v1720 = vadd.f32 %v1619, %v1673
      %v1721 = vadd.f32 %v1620, %v1674
      %v1722 = vld [vmem:[#allocation2 + $0x190] sm:$0xff]
      %v1723 = vld [vmem:[#allocation2 + $0x198] sm:$0xff]
      %v1724 = vld [vmem:[#allocation2 + $0x1a0] sm:$0xff]
      %v1725 = vlaneseq
      %v1726 = vshrl.u32 %v1725, 7
      %v1727 = vsub.s32 6, %v1726
      %v1728 = vrot.slane %v1029, %v1727
      %v1729 = vmul.f32 %v1037, %v1728
      %v1730 = vmul.f32 %v1038, %v1728
      %v1731 = vmul.f32 %v1039, %v1728
      %v1732 = vmul.f32 %v1040, %v1728
      %v1733 = vmul.f32 %v1041, %v1728
      %v1734 = vmul.f32 %v1042, %v1728
      %v1735 = vmul.f32 %v1043, %v1728
      %v1736 = vmul.f32 %v1044, %v1728
      %v1737 = vmul.f32 %v1045, %v1728
      %v1738 = vmul.f32 %v1046, %v1728
      %v1739 = vmul.f32 %v1047, %v1728
      %v1740 = vmul.f32 %v1048, %v1728
      %v1741 = vmul.f32 %v1049, %v1728
      %v1742 = vmul.f32 %v1050, %v1728
      %v1743 = vmul.f32 %v1051, %v1728
      %v1744 = vmul.f32 %v1052, %v1728
      %v1745 = vmul.f32 %v1053, %v1728
      %v1746 = vmul.f32 %v1054, %v1728
      %v1747 = vmul.f32 %v1055, %v1728
      %v1748 = vmul.f32 %v1056, %v1728
      %v1749 = vmul.f32 %v1057, %v1728
      %v1750 = vmul.f32 %v1058, %v1728
      %v1751 = vmul.f32 %v1059, %v1728
      %v1752 = vmul.f32 %v1060, %v1728
      %v1753 = vmul.f32 %v1061, %v1728
      %v1754 = vmul.f32 %v1062, %v1728
      %v1755 = vmul.f32 %v1063, %v1728
      %v1756 = vmul.f32 %v1064, %v1728
      %v1757 = vmul.f32 %v1065, %v1728
      %v1758 = vmul.f32 %v1066, %v1728
      %v1759 = vmul.f32 %v1067, %v1728
      %v1760 = vmul.f32 %v1068, %v1728
      %v1761 = vmul.f32 %v1069, %v1728
      %v1762 = vmul.f32 %v1070, %v1728
      %v1763 = vmul.f32 %v1071, %v1728
      %v1764 = vmul.f32 %v1072, %v1728
      %v1765 = vmul.f32 %v1073, %v1728
      %v1766 = vmul.f32 %v1074, %v1728
      %v1767 = vmul.f32 %v1075, %v1728
      %v1768 = vmul.f32 %v1076, %v1728
      %v1769 = vmul.f32 %v1077, %v1728
      %v1770 = vmul.f32 %v1419, %v1728
      %v1771 = vmul.f32 %v1420, %v1728
      %v1772 = vmul.f32 %v1421, %v1728
      %v1773 = vmul.f32 %v1722, %v1728
      %v1774 = vmul.f32 %v1723, %v1728
      %v1775 = vmul.f32 %v1724, %v1728
      %v1776 = vadd.f32 %v1675, %v1729
      %v1777 = vadd.f32 %v1676, %v1730
      %v1778 = vadd.f32 %v1677, %v1731
      %v1779 = vadd.f32 %v1678, %v1732
      %v1780 = vadd.f32 %v1679, %v1733
      %v1781 = vadd.f32 %v1680, %v1734
      %v1782 = vadd.f32 %v1681, %v1735
      %v1783 = vadd.f32 %v1682, %v1736
      %v1784 = vadd.f32 %v1683, %v1737
      %v1785 = vadd.f32 %v1684, %v1738
      %v1786 = vadd.f32 %v1685, %v1739
      %v1787 = vadd.f32 %v1686, %v1740
      %v1788 = vadd.f32 %v1687, %v1741
      %v1789 = vadd.f32 %v1688, %v1742
      %v1790 = vadd.f32 %v1689, %v1743
      %v1791 = vadd.f32 %v1690, %v1744
      %v1792 = vadd.f32 %v1691, %v1745
      %v1793 = vadd.f32 %v1692, %v1746
      %v1794 = vadd.f32 %v1693, %v1747
      %v1795 = vadd.f32 %v1694, %v1748
      %v1796 = vadd.f32 %v1695, %v1749
      %v1797 = vadd.f32 %v1696, %v1750
      %v1798 = vadd.f32 %v1697, %v1751
      %v1799 = vadd.f32 %v1698, %v1752
      %v1800 = vadd.f32 %v1699, %v1753
      %v1801 = vadd.f32 %v1700, %v1754
      %v1802 = vadd.f32 %v1701, %v1755
      %v1803 = vadd.f32 %v1702, %v1756
      %v1804 = vadd.f32 %v1703, %v1757
      %v1805 = vadd.f32 %v1704, %v1758
      %v1806 = vadd.f32 %v1705, %v1759
      %v1807 = vadd.f32 %v1706, %v1760
      %v1808 = vadd.f32 %v1707, %v1761
      %v1809 = vadd.f32 %v1708, %v1762
      %v1810 = vadd.f32 %v1709, %v1763
      %v1811 = vadd.f32 %v1710, %v1764
      %v1812 = vadd.f32 %v1711, %v1765
      %v1813 = vadd.f32 %v1712, %v1766
      %v1814 = vadd.f32 %v1713, %v1767
      %v1815 = vadd.f32 %v1714, %v1768
      %v1816 = vadd.f32 %v1715, %v1769
      %v1817 = vadd.f32 %v1716, %v1770
      %v1818 = vadd.f32 %v1717, %v1771
      %v1819 = vadd.f32 %v1718, %v1772
      %v1820 = vadd.f32 %v1719, %v1773
      %v1821 = vadd.f32 %v1720, %v1774
      %v1822 = vadd.f32 %v1721, %v1775
      %v1823 = vld [vmem:[#allocation2 + $0x191] sm:$0xff]
      %v1824 = vld [vmem:[#allocation2 + $0x199] sm:$0xff]
      %v1825 = vld [vmem:[#allocation2 + $0x1a1] sm:$0xff]
      %v1826 = vlaneseq
      %v1827 = vshrl.u32 %v1826, 7
      %v1828 = vsub.s32 7, %v1827
      %v1829 = vrot.slane %v1029, %v1828
      %v1830 = vmul.f32 %v1135, %v1829
      %v1831 = vmul.f32 %v1136, %v1829
      %v1832 = vmul.f32 %v1137, %v1829
      %v1833 = vmul.f32 %v1138, %v1829
      %v1834 = vmul.f32 %v1139, %v1829
      %v1835 = vmul.f32 %v1140, %v1829
      %v1836 = vmul.f32 %v1141, %v1829
      %v1837 = vmul.f32 %v1142, %v1829
      %v1838 = vmul.f32 %v1143, %v1829
      %v1839 = vmul.f32 %v1144, %v1829
      %v1840 = vmul.f32 %v1145, %v1829
      %v1841 = vmul.f32 %v1146, %v1829
      %v1842 = vmul.f32 %v1147, %v1829
      %v1843 = vmul.f32 %v1148, %v1829
      %v1844 = vmul.f32 %v1149, %v1829
      %v1845 = vmul.f32 %v1150, %v1829
      %v1846 = vmul.f32 %v1151, %v1829
      %v1847 = vmul.f32 %v1152, %v1829
      %v1848 = vmul.f32 %v1153, %v1829
      %v1849 = vmul.f32 %v1154, %v1829
      %v1850 = vmul.f32 %v1155, %v1829
      %v1851 = vmul.f32 %v1156, %v1829
      %v1852 = vmul.f32 %v1157, %v1829
      %v1853 = vmul.f32 %v1158, %v1829
      %v1854 = vmul.f32 %v1159, %v1829
      %v1855 = vmul.f32 %v1160, %v1829
      %v1856 = vmul.f32 %v1161, %v1829
      %v1857 = vmul.f32 %v1162, %v1829
      %v1858 = vmul.f32 %v1163, %v1829
      %v1859 = vmul.f32 %v1164, %v1829
      %v1860 = vmul.f32 %v1165, %v1829
      %v1861 = vmul.f32 %v1166, %v1829
      %v1862 = vmul.f32 %v1167, %v1829
      %v1863 = vmul.f32 %v1168, %v1829
      %v1864 = vmul.f32 %v1169, %v1829
      %v1865 = vmul.f32 %v1170, %v1829
      %v1866 = vmul.f32 %v1171, %v1829
      %v1867 = vmul.f32 %v1172, %v1829
      %v1868 = vmul.f32 %v1173, %v1829
      %v1869 = vmul.f32 %v1174, %v1829
      %v1870 = vmul.f32 %v1175, %v1829
      %v1871 = vmul.f32 %v1520, %v1829
      %v1872 = vmul.f32 %v1521, %v1829
      %v1873 = vmul.f32 %v1522, %v1829
      %v1874 = vmul.f32 %v1823, %v1829
      %v1875 = vmul.f32 %v1824, %v1829
      %v1876 = vmul.f32 %v1825, %v1829
      %v1877 = vadd.f32 %v1776, %v1830
      %v1878 = vadd.f32 %v1777, %v1831
      %v1879 = vadd.f32 %v1778, %v1832
      %v1880 = vadd.f32 %v1779, %v1833
      %v1881 = vadd.f32 %v1780, %v1834
      %v1882 = vadd.f32 %v1781, %v1835
      %v1883 = vadd.f32 %v1782, %v1836
      %v1884 = vadd.f32 %v1783, %v1837
      %v1885 = vadd.f32 %v1784, %v1838
      %v1886 = vadd.f32 %v1785, %v1839
      %v1887 = vadd.f32 %v1786, %v1840
      %v1888 = vadd.f32 %v1787, %v1841
      %v1889 = vadd.f32 %v1788, %v1842
      %v1890 = vadd.f32 %v1789, %v1843
      %v1891 = vadd.f32 %v1790, %v1844
      %v1892 = vadd.f32 %v1791, %v1845
      %v1893 = vadd.f32 %v1792, %v1846
      %v1894 = vadd.f32 %v1793, %v1847
      %v1895 = vadd.f32 %v1794, %v1848
      %v1896 = vadd.f32 %v1795, %v1849
      %v1897 = vadd.f32 %v1796, %v1850
      %v1898 = vadd.f32 %v1797, %v1851
      %v1899 = vadd.f32 %v1798, %v1852
      %v1900 = vadd.f32 %v1799, %v1853
      %v1901 = vadd.f32 %v1800, %v1854
      %v1902 = vadd.f32 %v1801, %v1855
      %v1903 = vadd.f32 %v1802, %v1856
      %v1904 = vadd.f32 %v1803, %v1857
      %v1905 = vadd.f32 %v1804, %v1858
      %v1906 = vadd.f32 %v1805, %v1859
      %v1907 = vadd.f32 %v1806, %v1860
      %v1908 = vadd.f32 %v1807, %v1861
      %v1909 = vadd.f32 %v1808, %v1862
      %v1910 = vadd.f32 %v1809, %v1863
      %v1911 = vadd.f32 %v1810, %v1864
      %v1912 = vadd.f32 %v1811, %v1865
      %v1913 = vadd.f32 %v1812, %v1866
      %v1914 = vadd.f32 %v1813, %v1867
      %v1915 = vadd.f32 %v1814, %v1868
      %v1916 = vadd.f32 %v1815, %v1869
      %v1917 = vadd.f32 %v1816, %v1870
      %v1918 = vadd.f32 %v1817, %v1871
      %v1919 = vadd.f32 %v1818, %v1872
      %v1920 = vadd.f32 %v1819, %v1873
      %v1921 = vadd.f32 %v1820, %v1874
      %v1922 = vadd.f32 %v1821, %v1875
      %v1923 = vadd.f32 %v1822, %v1876
      %v1924 = vld [vmem:[#allocation2 + $0x192] sm:$0xff]
      %v1925 = vld [vmem:[#allocation2 + $0x19a] sm:$0xff]
      %v1926 = vld [vmem:[#allocation2 + $0x1a2] sm:$0xff]
      %v1927 = vlaneseq
      %v1928 = vshrl.u32 %v1927, 7
      %v1929 = vsub.s32 0, %v1928
      %v1930 = vrot.slane %v1030, %v1929
      %v1931 = vmul.f32 %v1280, %v1930
      %v1932 = vmul.f32 %v1281, %v1930
      %v1933 = vmul.f32 %v1282, %v1930
      %v1934 = vmul.f32 %v1283, %v1930
      %v1935 = vmul.f32 %v1284, %v1930
      %v1936 = vmul.f32 %v1285, %v1930
      %v1937 = vmul.f32 %v1286, %v1930
      %v1938 = vmul.f32 %v1287, %v1930
      %v1939 = vmul.f32 %v1288, %v1930
      %v1940 = vmul.f32 %v1289, %v1930
      %v1941 = vmul.f32 %v1290, %v1930
      %v1942 = vmul.f32 %v1291, %v1930
      %v1943 = vmul.f32 %v1292, %v1930
      %v1944 = vmul.f32 %v1293, %v1930
      %v1945 = vmul.f32 %v1294, %v1930
      %v1946 = vmul.f32 %v1295, %v1930
      %v1947 = vmul.f32 %v1296, %v1930
      %v1948 = vmul.f32 %v1297, %v1930
      %v1949 = vmul.f32 %v1298, %v1930
      %v1950 = vmul.f32 %v1299, %v1930
      %v1951 = vmul.f32 %v1300, %v1930
      %v1952 = vmul.f32 %v1301, %v1930
      %v1953 = vmul.f32 %v1302, %v1930
      %v1954 = vmul.f32 %v1303, %v1930
      %v1955 = vmul.f32 %v1304, %v1930
      %v1956 = vmul.f32 %v1305, %v1930
      %v1957 = vmul.f32 %v1306, %v1930
      %v1958 = vmul.f32 %v1307, %v1930
      %v1959 = vmul.f32 %v1308, %v1930
      %v1960 = vmul.f32 %v1309, %v1930
      %v1961 = vmul.f32 %v1310, %v1930
      %v1962 = vmul.f32 %v1311, %v1930
      %v1963 = vmul.f32 %v1312, %v1930
      %v1964 = vmul.f32 %v1313, %v1930
      %v1965 = vmul.f32 %v1314, %v1930
      %v1966 = vmul.f32 %v1315, %v1930
      %v1967 = vmul.f32 %v1316, %v1930
      %v1968 = vmul.f32 %v1317, %v1930
      %v1969 = vmul.f32 %v1318, %v1930
      %v1970 = vmul.f32 %v1319, %v1930
      %v1971 = vmul.f32 %v1320, %v1930
      %v1972 = vmul.f32 %v1621, %v1930
      %v1973 = vmul.f32 %v1622, %v1930
      %v1974 = vmul.f32 %v1623, %v1930
      %v1975 = vmul.f32 %v1924, %v1930
      %v1976 = vmul.f32 %v1925, %v1930
      %v1977 = vmul.f32 %v1926, %v1930
      %v1978 = vadd.f32 %v1877, %v1931
      %v1979 = vadd.f32 %v1878, %v1932
      %v1980 = vadd.f32 %v1879, %v1933
      %v1981 = vadd.f32 %v1880, %v1934
      %v1982 = vadd.f32 %v1881, %v1935
      %v1983 = vadd.f32 %v1882, %v1936
      %v1984 = vadd.f32 %v1883, %v1937
      %v1985 = vadd.f32 %v1884, %v1938
      %v1986 = vadd.f32 %v1885, %v1939
      %v1987 = vadd.f32 %v1886, %v1940
      %v1988 = vadd.f32 %v1887, %v1941
      %v1989 = vadd.f32 %v1888, %v1942
      %v1990 = vadd.f32 %v1889, %v1943
      %v1991 = vadd.f32 %v1890, %v1944
      %v1992 = vadd.f32 %v1891, %v1945
      %v1993 = vadd.f32 %v1892, %v1946
      %v1994 = vadd.f32 %v1893, %v1947
      %v1995 = vadd.f32 %v1894, %v1948
      %v1996 = vadd.f32 %v1895, %v1949
      %v1997 = vadd.f32 %v1896, %v1950
      %v1998 = vadd.f32 %v1897, %v1951
      %v1999 = vadd.f32 %v1898, %v1952
      %v2000 = vadd.f32 %v1899, %v1953
      %v2001 = vadd.f32 %v1900, %v1954
      %v2002 = vadd.f32 %v1901, %v1955
      %v2003 = vadd.f32 %v1902, %v1956
      %v2004 = vadd.f32 %v1903, %v1957
      %v2005 = vadd.f32 %v1904, %v1958
      %v2006 = vadd.f32 %v1905, %v1959
      %v2007 = vadd.f32 %v1906, %v1960
      %v2008 = vadd.f32 %v1907, %v1961
      %v2009 = vadd.f32 %v1908, %v1962
      %v2010 = vadd.f32 %v1909, %v1963
      %v2011 = vadd.f32 %v1910, %v1964
      %v2012 = vadd.f32 %v1911, %v1965
      %v2013 = vadd.f32 %v1912, %v1966
      %v2014 = vadd.f32 %v1913, %v1967
      %v2015 = vadd.f32 %v1914, %v1968
      %v2016 = vadd.f32 %v1915, %v1969
      %v2017 = vadd.f32 %v1916, %v1970
      %v2018 = vadd.f32 %v1917, %v1971
      %v2019 = vadd.f32 %v1918, %v1972
      %v2020 = vadd.f32 %v1919, %v1973
      %v2021 = vadd.f32 %v1920, %v1974
      %v2022 = vadd.f32 %v1921, %v1975
      %v2023 = vadd.f32 %v1922, %v1976
      %v2024 = vadd.f32 %v1923, %v1977
      %v2025 = vld [vmem:[%s3] sm:$0x1]
      %v2027 = vlaneseq
      %v2028 = vshrl.u32 %v2027, 7
      %v2029 = vsub.s32 0, %v2028
      %v2030 = vrot.slane %v2025, %v2029
      %v2032 = vadd.f32 %v1978, %v2030
      %v2033 = vadd.f32 %v1979, %v2030
      %v2034 = vadd.f32 %v1980, %v2030
      %v2035 = vadd.f32 %v1981, %v2030
      %v2036 = vadd.f32 %v1982, %v2030
      %v2037 = vadd.f32 %v1983, %v2030
      %v2038 = vadd.f32 %v1984, %v2030
      %v2039 = vadd.f32 %v1985, %v2030
      %v2040 = vadd.f32 %v1986, %v2030
      %v2041 = vadd.f32 %v1987, %v2030
      %v2042 = vadd.f32 %v1988, %v2030
      %v2043 = vadd.f32 %v1989, %v2030
      %v2044 = vadd.f32 %v1990, %v2030
      %v2045 = vadd.f32 %v1991, %v2030
      %v2046 = vadd.f32 %v1992, %v2030
      %v2047 = vadd.f32 %v1993, %v2030
      %v2048 = vadd.f32 %v1994, %v2030
      %v2049 = vadd.f32 %v1995, %v2030
      %v2050 = vadd.f32 %v1996, %v2030
      %v2051 = vadd.f32 %v1997, %v2030
      %v2052 = vadd.f32 %v1998, %v2030
      %v2053 = vadd.f32 %v1999, %v2030
      %v2054 = vadd.f32 %v2000, %v2030
      %v2055 = vadd.f32 %v2001, %v2030
      %v2056 = vadd.f32 %v2002, %v2030
      %v2057 = vadd.f32 %v2003, %v2030
      %v2058 = vadd.f32 %v2004, %v2030
      %v2059 = vadd.f32 %v2005, %v2030
      %v2060 = vadd.f32 %v2006, %v2030
      %v2061 = vadd.f32 %v2007, %v2030
      %v2062 = vadd.f32 %v2008, %v2030
      %v2063 = vadd.f32 %v2009, %v2030
      %v2064 = vadd.f32 %v2010, %v2030
      %v2065 = vadd.f32 %v2011, %v2030
      %v2066 = vadd.f32 %v2012, %v2030
      %v2067 = vadd.f32 %v2013, %v2030
      %v2068 = vadd.f32 %v2014, %v2030
      %v2069 = vadd.f32 %v2015, %v2030
      %v2070 = vadd.f32 %v2016, %v2030
      %v2071 = vadd.f32 %v2017, %v2030
      %v2072 = vadd.f32 %v2018, %v2030
      %v2073 = vadd.f32 %v2019, %v2030
      %v2074 = vadd.f32 %v2020, %v2030
      %v2075 = vadd.f32 %v2021, %v2030
      %v2076 = vadd.f32 %v2022, %v2030
      %v2077 = vadd.f32 %v2023, %v2030
      %v2078 = vadd.f32 %v2024, %v2030
      %v2079 = vmax.f32 %v2032, 0.0
      %v2080 = vmax.f32 %v2033, 0.0
      %v2081 = vmax.f32 %v2034, 0.0
      %v2082 = vmax.f32 %v2035, 0.0
      %v2083 = vmax.f32 %v2036, 0.0
      %v2084 = vmax.f32 %v2037, 0.0
      %v2085 = vmax.f32 %v2038, 0.0
      %v2086 = vmax.f32 %v2039, 0.0
      %v2087 = vmax.f32 %v2040, 0.0
      %v2088 = vmax.f32 %v2041, 0.0
      %v2089 = vmax.f32 %v2042, 0.0
      %v2090 = vmax.f32 %v2043, 0.0
      %v2091 = vmax.f32 %v2044, 0.0
      %v2092 = vmax.f32 %v2045, 0.0
      %v2093 = vmax.f32 %v2046, 0.0
      %v2094 = vmax.f32 %v2047, 0.0
      %v2095 = vmax.f32 %v2048, 0.0
      %v2096 = vmax.f32 %v2049, 0.0
      %v2097 = vmax.f32 %v2050, 0.0
      %v2098 = vmax.f32 %v2051, 0.0
      %v2099 = vmax.f32 %v2052, 0.0
      %v2100 = vmax.f32 %v2053, 0.0
      %v2101 = vmax.f32 %v2054, 0.0
      %v2102 = vmax.f32 %v2055, 0.0
      %v2103 = vmax.f32 %v2056, 0.0
      %v2104 = vmax.f32 %v2057, 0.0
      %v2105 = vmax.f32 %v2058, 0.0
      %v2106 = vmax.f32 %v2059, 0.0
      %v2107 = vmax.f32 %v2060, 0.0
      %v2108 = vmax.f32 %v2061, 0.0
      %v2109 = vmax.f32 %v2062, 0.0
      %v2110 = vmax.f32 %v2063, 0.0
      %v2111 = vmax.f32 %v2064, 0.0
      %v2112 = vmax.f32 %v2065, 0.0
      %v2113 = vmax.f32 %v2066, 0.0
      %v2114 = vmax.f32 %v2067, 0.0
      %v2115 = vmax.f32 %v2068, 0.0
      %v2116 = vmax.f32 %v2069, 0.0
      %v2117 = vmax.f32 %v2070, 0.0
      %v2118 = vmax.f32 %v2071, 0.0
      %v2119 = vmax.f32 %v2072, 0.0
      %v2120 = vmax.f32 %v2073, 0.0
      %v2121 = vmax.f32 %v2074, 0.0
      %v2122 = vmax.f32 %v2075, 0.0
      %v2123 = vmax.f32 %v2076, 0.0
      %v2124 = vmax.f32 %v2077, 0.0
      %v2125 = vmax.f32 %v2078, 0.0
      %v2126 = vmin.f32 %v2079, 6.0
      %v2127 = vmin.f32 %v2080, 6.0
      %v2128 = vmin.f32 %v2081, 6.0
      %v2129 = vmin.f32 %v2082, 6.0
      %v2130 = vmin.f32 %v2083, 6.0
      %v2131 = vmin.f32 %v2084, 6.0
      %v2132 = vmin.f32 %v2085, 6.0
      %v2133 = vmin.f32 %v2086, 6.0
      %v2134 = vmin.f32 %v2087, 6.0
      %v2135 = vmin.f32 %v2088, 6.0
      %v2136 = vmin.f32 %v2089, 6.0
      %v2137 = vmin.f32 %v2090, 6.0
      %v2138 = vmin.f32 %v2091, 6.0
      %v2139 = vmin.f32 %v2092, 6.0
      %v2140 = vmin.f32 %v2093, 6.0
      %v2141 = vmin.f32 %v2094, 6.0
      %v2142 = vmin.f32 %v2095, 6.0
      %v2143 = vmin.f32 %v2096, 6.0
      %v2144 = vmin.f32 %v2097, 6.0
      %v2145 = vmin.f32 %v2098, 6.0
      %v2146 = vmin.f32 %v2099, 6.0
      %v2147 = vmin.f32 %v2100, 6.0
      %v2148 = vmin.f32 %v2101, 6.0
      %v2149 = vmin.f32 %v2102, 6.0
      %v2150 = vmin.f32 %v2103, 6.0
      %v2151 = vmin.f32 %v2104, 6.0
      %v2152 = vmin.f32 %v2105, 6.0
      %v2153 = vmin.f32 %v2106, 6.0
      %v2154 = vmin.f32 %v2107, 6.0
      %v2155 = vmin.f32 %v2108, 6.0
      %v2156 = vmin.f32 %v2109, 6.0
      %v2157 = vmin.f32 %v2110, 6.0
      %v2158 = vmin.f32 %v2111, 6.0
      %v2159 = vmin.f32 %v2112, 6.0
      %v2160 = vmin.f32 %v2113, 6.0
      %v2161 = vmin.f32 %v2114, 6.0
      %v2162 = vmin.f32 %v2115, 6.0
      %v2163 = vmin.f32 %v2116, 6.0
      %v2164 = vmin.f32 %v2117, 6.0
      %v2165 = vmin.f32 %v2118, 6.0
      %v2166 = vmin.f32 %v2119, 6.0
      %v2167 = vmin.f32 %v2120, 6.0
      %v2168 = vmin.f32 %v2121, 6.0
      %v2169 = vmin.f32 %v2122, 6.0
      %v2170 = vmin.f32 %v2123, 6.0
      %v2171 = vmin.f32 %v2124, 6.0
      %v2172 = vmin.f32 %v2125, 6.0
      %2173 = vst [vmem:[#allocation3] sm:$0xff] %v2126
      %2174 = vst [vmem:[#allocation3 + $0x8] sm:$0xff] %v2127
      %2175 = vst [vmem:[#allocation3 + $0x10] sm:$0xff] %v2128
      %2176 = vst [vmem:[#allocation3 + $0x18] sm:$0xff] %v2129
      %2177 = vst [vmem:[#allocation3 + $0x20] sm:$0xff] %v2130
      %2178 = vst [vmem:[#allocation3 + $0x28] sm:$0xff] %v2131
      %2179 = vst [vmem:[#allocation3 + $0x30] sm:$0xff] %v2132
      %2180 = vst [vmem:[#allocation3 + $0x38] sm:$0xff] %v2133
      %2181 = vst [vmem:[#allocation3 + $0x40] sm:$0xff] %v2134
      %2182 = vst [vmem:[#allocation3 + $0x48] sm:$0xff] %v2135
      %2183 = vst [vmem:[#allocation3 + $0x50] sm:$0xff] %v2136
      %2184 = vst [vmem:[#allocation3 + $0x58] sm:$0xff] %v2137
      %2185 = vst [vmem:[#allocation3 + $0x60] sm:$0xff] %v2138
      %2186 = vst [vmem:[#allocation3 + $0x68] sm:$0xff] %v2139
      %2187 = vst [vmem:[#allocation3 + $0x70] sm:$0xff] %v2140
      %2188 = vst [vmem:[#allocation3 + $0x78] sm:$0xff] %v2141
      %2189 = vst [vmem:[#allocation3 + $0x80] sm:$0xff] %v2142
      %2190 = vst [vmem:[#allocation3 + $0x88] sm:$0xff] %v2143
      %2191 = vst [vmem:[#allocation3 + $0x90] sm:$0xff] %v2144
      %2192 = vst [vmem:[#allocation3 + $0x98] sm:$0xff] %v2145
      %2193 = vst [vmem:[#allocation3 + $0xa0] sm:$0xff] %v2146
      %2194 = vst [vmem:[#allocation3 + $0xa8] sm:$0xff] %v2147
      %2195 = vst [vmem:[#allocation3 + $0xb0] sm:$0xff] %v2148
      %2196 = vst [vmem:[#allocation3 + $0xb8] sm:$0xff] %v2149
      %2197 = vst [vmem:[#allocation3 + $0xc0] sm:$0xff] %v2150
      %2198 = vst [vmem:[#allocation3 + $0xc8] sm:$0xff] %v2151
      %2199 = vst [vmem:[#allocation3 + $0xd0] sm:$0xff] %v2152
      %2200 = vst [vmem:[#allocation3 + $0xd8] sm:$0xff] %v2153
      %2201 = vst [vmem:[#allocation3 + $0xe0] sm:$0xff] %v2154
      %2202 = vst [vmem:[#allocation3 + $0xe8] sm:$0xff] %v2155
      %2203 = vst [vmem:[#allocation3 + $0xf0] sm:$0xff] %v2156
      %2204 = vst [vmem:[#allocation3 + $0xf8] sm:$0xff] %v2157
      %2205 = vst [vmem:[#allocation3 + $0x100] sm:$0xff] %v2158
      %2206 = vst [vmem:[#allocation3 + $0x108] sm:$0xff] %v2159
      %2207 = vst [vmem:[#allocation3 + $0x110] sm:$0xff] %v2160
      %2208 = vst [vmem:[#allocation3 + $0x118] sm:$0xff] %v2161
      %2209 = vst [vmem:[#allocation3 + $0x120] sm:$0xff] %v2162
      %2210 = vst [vmem:[#allocation3 + $0x128] sm:$0xff] %v2163
      %2211 = vst [vmem:[#allocation3 + $0x130] sm:$0xff] %v2164
      %2212 = vst [vmem:[#allocation3 + $0x138] sm:$0xff] %v2165
      %2213 = vst [vmem:[#allocation3 + $0x140] sm:$0xff] %v2166
      %2214 = vst [vmem:[#allocation3 + $0x148] sm:$0xff] %v2167
      %2215 = vst [vmem:[#allocation3 + $0x150] sm:$0xff] %v2168
      %2216 = vst [vmem:[#allocation3 + $0x158] sm:$0xff] %v2169
      %2217 = vst [vmem:[#allocation3 + $0x160] sm:$0xff] %v2170
      %2218 = vst [vmem:[#allocation3 + $0x168] sm:$0xff] %v2171
      %2219 = vst [vmem:[#allocation3 + $0x170] sm:$0xff] %v2172
      %v2220 = vld [vmem:[#allocation3] sm:$0xff]
      %v2221 = vld [vmem:[#allocation3 + $0x8] sm:$0xff]
      %2222 = vst [vmem:[#allocation4] sm:$0xff] %v2220
      %2223 = vst [vmem:[#allocation4 + $0x8] sm:$0xff] %v2221
      %v2224 = vld [vmem:[#allocation3 + $0x18] sm:$0xff]
      %v2225 = vld [vmem:[#allocation3 + $0x20] sm:$0xff]
      %2226 = vst [vmem:[#allocation4 + $0x10] sm:$0xff] %v2224
      %2227 = vst [vmem:[#allocation4 + $0x18] sm:$0xff] %v2225
      %v2228 = vld [vmem:[#allocation3 + $0x30] sm:$0xff]
      %v2229 = vld [vmem:[#allocation3 + $0x38] sm:$0xff]
      %2230 = vst [vmem:[#allocation4 + $0x20] sm:$0xff] %v2228
      %2231 = vst [vmem:[#allocation4 + $0x28] sm:$0xff] %v2229
      %v2232 = vld [vmem:[#allocation3 + $0x48] sm:$0xff]
      %v2233 = vld [vmem:[#allocation3 + $0x50] sm:$0xff]
      %2234 = vst [vmem:[#allocation4 + $0x30] sm:$0xff] %v2232
      %2235 = vst [vmem:[#allocation4 + $0x38] sm:$0xff] %v2233
      %v2236 = vld [vmem:[#allocation3 + $0x60] sm:$0xff]
      %v2237 = vld [vmem:[#allocation3 + $0x68] sm:$0xff]
      %2238 = vst [vmem:[#allocation4 + $0x40] sm:$0xff] %v2236
      %2239 = vst [vmem:[#allocation4 + $0x48] sm:$0xff] %v2237
      %v2240 = vld [vmem:[#allocation3 + $0x78] sm:$0xff]
      %v2241 = vld [vmem:[#allocation3 + $0x80] sm:$0xff]
      %2242 = vst [vmem:[#allocation4 + $0x50] sm:$0xff] %v2240
      %2243 = vst [vmem:[#allocation4 + $0x58] sm:$0xff] %v2241
      %v2244 = vld [vmem:[#allocation3 + $0x90] sm:$0xff]
      %v2245 = vld [vmem:[#allocation3 + $0x98] sm:$0xff]
      %2246 = vst [vmem:[#allocation4 + $0x60] sm:$0xff] %v2244
      %2247 = vst [vmem:[#allocation4 + $0x68] sm:$0xff] %v2245
      %v2248 = vld [vmem:[#allocation3 + $0xa8] sm:$0xff]
      %v2249 = vld [vmem:[#allocation3 + $0xb0] sm:$0xff]
      %2250 = vst [vmem:[#allocation4 + $0x70] sm:$0xff] %v2248
      %2251 = vst [vmem:[#allocation4 + $0x78] sm:$0xff] %v2249
      %v2252 = vld [vmem:[#allocation3 + $0xc0] sm:$0xff]
      %v2253 = vld [vmem:[#allocation3 + $0xc8] sm:$0xff]
      %2254 = vst [vmem:[#allocation4 + $0x80] sm:$0xff] %v2252
      %2255 = vst [vmem:[#allocation4 + $0x88] sm:$0xff] %v2253
      %v2256 = vld [vmem:[#allocation3 + $0xd8] sm:$0xff]
      %v2257 = vld [vmem:[#allocation3 + $0xe0] sm:$0xff]
      %2258 = vst [vmem:[#allocation4 + $0x90] sm:$0xff] %v2256
      %2259 = vst [vmem:[#allocation4 + $0x98] sm:$0xff] %v2257
      %v2260 = vld [vmem:[#allocation3 + $0xf0] sm:$0xff]
      %v2261 = vld [vmem:[#allocation3 + $0xf8] sm:$0xff]
      %2262 = vst [vmem:[#allocation4 + $0xa0] sm:$0xff] %v2260
      %2263 = vst [vmem:[#allocation4 + $0xa8] sm:$0xff] %v2261
      %v2264 = vld [vmem:[#allocation3 + $0x108] sm:$0xff]
      %v2265 = vld [vmem:[#allocation3 + $0x110] sm:$0xff]
      %2266 = vst [vmem:[#allocation4 + $0xb0] sm:$0xff] %v2264
      %2267 = vst [vmem:[#allocation4 + $0xb8] sm:$0xff] %v2265
      %v2268 = vld [vmem:[#allocation3 + $0x120] sm:$0xff]
      %v2269 = vld [vmem:[#allocation3 + $0x128] sm:$0xff]
      %2270 = vst [vmem:[#allocation4 + $0xc0] sm:$0xff] %v2268
      %2271 = vst [vmem:[#allocation4 + $0xc8] sm:$0xff] %v2269
      %v2272 = vld [vmem:[#allocation3 + $0x138] sm:$0xff]
      %v2273 = vld [vmem:[#allocation3 + $0x140] sm:$0xff]
      %2274 = vst [vmem:[#allocation4 + $0xd0] sm:$0xff] %v2272
      %2275 = vst [vmem:[#allocation4 + $0xd8] sm:$0xff] %v2273
      %v2276 = vld [vmem:[#allocation3 + $0x150] sm:$0xff]
      %v2277 = vld [vmem:[#allocation3 + $0x158] sm:$0xff]
      %2278 = vst [vmem:[#allocation4 + $0xe0] sm:$0xff] %v2276
      %2279 = vst [vmem:[#allocation4 + $0xe8] sm:$0xff] %v2277
      %v2280 = vld [vmem:[#allocation3 + $0x168] sm:$0xff]
      %v2281 = vld [vmem:[#allocation3 + $0x170] sm:$0xff]
      %2282 = vst [vmem:[#allocation4 + $0xf0] sm:$0xff] %v2280
      %2283 = vst [vmem:[#allocation4 + $0xf8] sm:$0xff] %v2281
      %v2284 = vld [vmem:[#allocation4] sm:$0xff]
      %v2285 = vld [vmem:[#allocation4 + $0x8] sm:$0xff]
      %v2286 = vld [vmem:[#allocation4 + $0x10] sm:$0xff]
      %v2287 = vld [vmem:[#allocation4 + $0x18] sm:$0xff]
      %v2288 = vld [vmem:[#allocation4 + $0x20] sm:$0xff]
      %v2289 = vld [vmem:[#allocation4 + $0x28] sm:$0xff]
      %v2290 = vld [vmem:[#allocation4 + $0x30] sm:$0xff]
      %v2291 = vld [vmem:[#allocation4 + $0x38] sm:$0xff]
      %v2292 = vld [vmem:[#allocation4 + $0x40] sm:$0xff]
      %v2293 = vld [vmem:[#allocation4 + $0x48] sm:$0xff]
      %v2294 = vld [vmem:[#allocation4 + $0x50] sm:$0xff]
      %v2295 = vld [vmem:[#allocation4 + $0x58] sm:$0xff]
      %v2296 = vld [vmem:[#allocation4 + $0x60] sm:$0xff]
      %v2297 = vld [vmem:[#allocation4 + $0x68] sm:$0xff]
      %v2298 = vld [vmem:[#allocation4 + $0x70] sm:$0xff]
      %v2299 = vld [vmem:[#allocation4 + $0x78] sm:$0xff]
      %v2300 = vld [vmem:[#allocation4 + $0x80] sm:$0xff]
      %v2301 = vld [vmem:[#allocation4 + $0x88] sm:$0xff]
      %v2302 = vld [vmem:[#allocation4 + $0x90] sm:$0xff]
      %v2303 = vld [vmem:[#allocation4 + $0x98] sm:$0xff]
      %v2304 = vld [vmem:[#allocation4 + $0xa0] sm:$0xff]
      %v2305 = vld [vmem:[#allocation4 + $0xa8] sm:$0xff]
      %v2306 = vld [vmem:[#allocation4 + $0xb0] sm:$0xff]
      %v2307 = vld [vmem:[#allocation4 + $0xb8] sm:$0xff]
      %v2308 = vld [vmem:[#allocation4 + $0xc0] sm:$0xff]
      %v2309 = vld [vmem:[#allocation4 + $0xc8] sm:$0xff]
      %v2310 = vld [vmem:[#allocation4 + $0xd0] sm:$0xff]
      %v2311 = vld [vmem:[#allocation4 + $0xd8] sm:$0xff]
      %v2312 = vld [vmem:[#allocation4 + $0xe0] sm:$0xff]
      %v2313 = vld [vmem:[#allocation4 + $0xe8] sm:$0xff]
      %v2314 = vld [vmem:[#allocation4 + $0xf0] sm:$0xff]
      %v2315 = vld [vmem:[#allocation4 + $0xf8] sm:$0xff]
      %v2316 = vpack.c.bf16 %v2285, %v2284
      %v2317 = vpack.c.bf16 %v2287, %v2286
      %v2318 = vpack.c.bf16 %v2289, %v2288
      %v2319 = vpack.c.bf16 %v2291, %v2290
      %v2320 = vpack.c.bf16 %v2293, %v2292
      %v2321 = vpack.c.bf16 %v2295, %v2294
      %v2322 = vpack.c.bf16 %v2297, %v2296
      %v2323 = vpack.c.bf16 %v2299, %v2298
      %v2324 = vpack.c.bf16 %v2301, %v2300
      %v2325 = vpack.c.bf16 %v2303, %v2302
      %v2326 = vpack.c.bf16 %v2305, %v2304
      %v2327 = vpack.c.bf16 %v2307, %v2306
      %v2328 = vpack.c.bf16 %v2309, %v2308
      %v2329 = vpack.c.bf16 %v2311, %v2310
      %v2330 = vpack.c.bf16 %v2313, %v2312
      %v2331 = vpack.c.bf16 %v2315, %v2314
      %v2332 = vld [vmem:[%s4] sm:$0xf]
      %v2333 = vld [vmem:[%s4 + $0x4] sm:$0xf]
      %v2334 = vld [vmem:[%s4 + $0x8] sm:$0xf]
      %v2335 = vld [vmem:[%s4 + $0xc] sm:$0xf]
      %v2336 = vld [vmem:[%s4 + $0x10] sm:$0xf]
      %v2337 = vld [vmem:[%s4 + $0x14] sm:$0xf]
      %v2338 = vld [vmem:[%s4 + $0x18] sm:$0xf]
      %v2339 = vld [vmem:[%s4 + $0x1c] sm:$0xf]
      %v2340 = vld [vmem:[%s4 + $0x20] sm:$0xf]
      %v2341 = vld [vmem:[%s4 + $0x24] sm:$0xf]
      %v2342 = vld [vmem:[%s4 + $0x28] sm:$0xf]
      %v2343 = vld [vmem:[%s4 + $0x2c] sm:$0xf]
      %v2344 = vld [vmem:[%s4 + $0x30] sm:$0xf]
      %v2345 = vld [vmem:[%s4 + $0x34] sm:$0xf]
      %v2346 = vld [vmem:[%s4 + $0x38] sm:$0xf]
      %v2347 = vld [vmem:[%s4 + $0x3c] sm:$0xf]
      %v2348 = vld [vmem:[%s5] sm:$0x1]
      %v2350 = vlaneseq
      %v2351 = vshrl.u32 %v2350, 7
      %v2352 = vsub.s32 0, %v2351
      %v2353 = vrot.slane %v2348, %v2352
      %v2371 = vunpack.c.l.b16 %v2332
      %v2372 = vunpack.c.l.b16 %v2333
      %v2373 = vunpack.c.l.b16 %v2334
      %v2374 = vunpack.c.l.b16 %v2335
      %v2375 = vunpack.c.l.b16 %v2336
      %v2376 = vunpack.c.l.b16 %v2337
      %v2377 = vunpack.c.l.b16 %v2338
      %v2378 = vunpack.c.l.b16 %v2339
      %v2379 = vunpack.c.l.b16 %v2340
      %v2380 = vunpack.c.l.b16 %v2341
      %v2381 = vunpack.c.l.b16 %v2342
      %v2382 = vunpack.c.l.b16 %v2343
      %v2383 = vunpack.c.l.b16 %v2344
      %v2384 = vunpack.c.l.b16 %v2345
      %v2385 = vunpack.c.l.b16 %v2346
      %v2386 = vunpack.c.l.b16 %v2347
      %v2387 = vpack.c.b16 %v2372, %v2371
      %v2388 = vpack.c.b16 %v2374, %v2373
      %v2389 = vpack.c.b16 %v2376, %v2375
      %v2390 = vpack.c.b16 %v2378, %v2377
      %v2391 = vpack.c.b16 %v2380, %v2379
      %v2392 = vpack.c.b16 %v2382, %v2381
      %v2393 = vpack.c.b16 %v2384, %v2383
      %v2394 = vpack.c.b16 %v2386, %v2385
      %2403 = vmatprep.subr.bf16.mxu0 0
      %2404 = vmatpush1.bf16.msra.mxu0 %v2387
      %2405 = vmatprep.subr.bf16.mxu0 0
      %2406 = vmatpush1.bf16.msra.mxu0 %v2388
      %2407 = vmatprep.subr.bf16.mxu0 0
      %2408 = vmatpush1.bf16.msra.mxu0 %v2389
      %2409 = vmatprep.subr.bf16.mxu0 0
      %2410 = vmatpush1.bf16.msra.mxu0 %v2390
      %2411 = vmatprep.subr.bf16.mxu0 0
      %2412 = vmatpush1.bf16.msra.mxu0 %v2391
      %2413 = vmatprep.subr.bf16.mxu0 0
      %2414 = vmatpush1.bf16.msra.mxu0 %v2392
      %2415 = vmatprep.subr.bf16.mxu0 0
      %2416 = vmatpush1.bf16.msra.mxu0 %v2393
      %2417 = vmatprep.subr.bf16.mxu0 0
      %2418 = vmatpush1.bf16.msra.mxu0 %v2394
      %2419 = vmatprep.subr.bf16.mxu0 0
      %2420 = vmatpush1.bf16.msra.mxu0 0
      %2421 = vmatprep.subr.bf16.mxu0 0
      %2422 = vmatpush1.bf16.msra.mxu0 0
      %2423 = vmatprep.subr.bf16.mxu0 0
      %2424 = vmatpush1.bf16.msra.mxu0 0
      %2425 = vmatprep.subr.bf16.mxu0 0
      %2426 = vmatpush1.bf16.msra.mxu0 0
      %2427 = vmatprep.subr.bf16.mxu0 0
      %2428 = vmatpush1.bf16.msra.mxu0 0
      %2429 = vmatprep.subr.bf16.mxu0 0
      %2430 = vmatpush1.bf16.msra.mxu0 0
      %2431 = vmatprep.subr.bf16.mxu0 0
      %2432 = vmatpush1.bf16.msra.mxu0 0
      %2433 = vmatprep.subr.bf16.mxu0 0
      %2434 = vmatpush1.bf16.msra.mxu0 0
      %2435 = vmatprep.mubr.bf16.mxu0 0
      %2436 = vmatmul.mubr.bf16.gmra.mrb[0].mxu0 %v2316
      %v2437 = vpop.f32.mrb[0].mxu0
      %v2438 = vadd.f32 %v2353, %v2437
      %v2439 = vpop.f32.mrb[0].mxu0
      %v2440 = vpop.f32.mrb[0].mxu0
      %v2441 = vadd.f32 %v2353, %v2440
      %v2442 = vpop.f32.mrb[0].mxu0
      %2443 = vmatprep.mubr.bf16.mxu0 0
      %2444 = vmatmul.mubr.bf16.gmra.mrb[0].mxu0 %v2317
      %v2445 = vpop.f32.mrb[0].mxu0
      %v2446 = vadd.f32 %v2353, %v2445
      %v2447 = vpop.f32.mrb[0].mxu0
      %v2448 = vpop.f32.mrb[0].mxu0
      %v2449 = vadd.f32 %v2353, %v2448
      %v2450 = vpop.f32.mrb[0].mxu0
      %2451 = vmatprep.mubr.bf16.mxu0 0
      %2452 = vmatmul.mubr.bf16.gmra.mrb[0].mxu0 %v2318
      %v2453 = vpop.f32.mrb[0].mxu0
      %v2454 = vadd.f32 %v2353, %v2453
      %v2455 = vpop.f32.mrb[0].mxu0
      %v2456 = vpop.f32.mrb[0].mxu0
      %v2457 = vadd.f32 %v2353, %v2456
      %v2458 = vpop.f32.mrb[0].mxu0
      %2459 = vmatprep.mubr.bf16.mxu0 0
      %2460 = vmatmul.mubr.bf16.gmra.mrb[0].mxu0 %v2319
      %v2461 = vpop.f32.mrb[0].mxu0
      %v2462 = vadd.f32 %v2353, %v2461
      %v2463 = vpop.f32.mrb[0].mxu0
      %v2464 = vpop.f32.mrb[0].mxu0
      %v2465 = vadd.f32 %v2353, %v2464
      %v2466 = vpop.f32.mrb[0].mxu0
      %2467 = vmatprep.mubr.bf16.mxu0 0
      %2468 = vmatmul.mubr.bf16.gmra.mrb[0].mxu0 %v2320
      %v2469 = vpop.f32.mrb[0].mxu0
      %v2470 = vadd.f32 %v2353, %v2469
      %v2471 = vpop.f32.mrb[0].mxu0
      %v2472 = vpop.f32.mrb[0].mxu0
      %v2473 = vadd.f32 %v2353, %v2472
      %v2474 = vpop.f32.mrb[0].mxu0
      %2475 = vmatprep.mubr.bf16.mxu0 0
      %2476 = vmatmul.mubr.bf16.gmra.mrb[0].mxu0 %v2321
      %v2477 = vpop.f32.mrb[0].mxu0
      %v2478 = vadd.f32 %v2353, %v2477
      %v2479 = vpop.f32.mrb[0].mxu0
      %v2480 = vpop.f32.mrb[0].mxu0
      %v2481 = vadd.f32 %v2353, %v2480
      %v2482 = vpop.f32.mrb[0].mxu0
      %2483 = vmatprep.mubr.bf16.mxu0 0
      %2484 = vmatmul.mubr.bf16.gmra.mrb[0].mxu0 %v2322
      %v2485 = vpop.f32.mrb[0].mxu0
      %v2486 = vadd.f32 %v2353, %v2485
      %v2487 = vpop.f32.mrb[0].mxu0
      %v2488 = vpop.f32.mrb[0].mxu0
      %v2489 = vadd.f32 %v2353, %v2488
      %v2490 = vpop.f32.mrb[0].mxu0
      %2491 = vmatprep.mubr.bf16.mxu0 0
      %2492 = vmatmul.mubr.bf16.gmra.mrb[0].mxu0 %v2323
      %v2493 = vpop.f32.mrb[0].mxu0
      %v2494 = vadd.f32 %v2353, %v2493
      %v2495 = vpop.f32.mrb[0].mxu0
      %v2496 = vpop.f32.mrb[0].mxu0
      %v2497 = vadd.f32 %v2353, %v2496
      %v2498 = vpop.f32.mrb[0].mxu0
      %2499 = vmatprep.mubr.bf16.mxu0 0
      %2500 = vmatmul.mubr.bf16.gmra.mrb[0].mxu0 %v2324
      %v2501 = vpop.f32.mrb[0].mxu0
      %v2502 = vadd.f32 %v2353, %v2501
      %v2503 = vpop.f32.mrb[0].mxu0
      %v2504 = vpop.f32.mrb[0].mxu0
      %v2505 = vadd.f32 %v2353, %v2504
      %v2506 = vpop.f32.mrb[0].mxu0
      %2507 = vmatprep.mubr.bf16.mxu0 0
      %2508 = vmatmul.mubr.bf16.gmra.mrb[0].mxu0 %v2325
      %v2509 = vpop.f32.mrb[0].mxu0
      %v2510 = vadd.f32 %v2353, %v2509
      %v2511 = vpop.f32.mrb[0].mxu0
      %v2512 = vpop.f32.mrb[0].mxu0
      %v2513 = vadd.f32 %v2353, %v2512
      %v2514 = vpop.f32.mrb[0].mxu0
      %2515 = vmatprep.mubr.bf16.mxu0 0
      %2516 = vmatmul.mubr.bf16.gmra.mrb[0].mxu0 %v2326
      %v2517 = vpop.f32.mrb[0].mxu0
      %v2518 = vadd.f32 %v2353, %v2517
      %v2519 = vpop.f32.mrb[0].mxu0
      %v2520 = vpop.f32.mrb[0].mxu0
      %v2521 = vadd.f32 %v2353, %v2520
      %v2522 = vpop.f32.mrb[0].mxu0
      %2523 = vmatprep.mubr.bf16.mxu0 0
      %2524 = vmatmul.mubr.bf16.gmra.mrb[0].mxu0 %v2327
      %v2525 = vpop.f32.mrb[0].mxu0
      %v2526 = vadd.f32 %v2353, %v2525
      %v2527 = vpop.f32.mrb[0].mxu0
      %v2528 = vpop.f32.mrb[0].mxu0
      %v2529 = vadd.f32 %v2353, %v2528
      %v2530 = vpop.f32.mrb[0].mxu0
      %2531 = vmatprep.mubr.bf16.mxu0 0
      %2532 = vmatmul.mubr.bf16.gmra.mrb[0].mxu0 %v2328
      %v2533 = vpop.f32.mrb[0].mxu0
      %v2534 = vadd.f32 %v2353, %v2533
      %v2535 = vpop.f32.mrb[0].mxu0
      %v2536 = vpop.f32.mrb[0].mxu0
      %v2537 = vadd.f32 %v2353, %v2536
      %v2538 = vpop.f32.mrb[0].mxu0
      %2539 = vmatprep.mubr.bf16.mxu0 0
      %2540 = vmatmul.mubr.bf16.gmra.mrb[0].mxu0 %v2329
      %v2541 = vpop.f32.mrb[0].mxu0
      %v2542 = vadd.f32 %v2353, %v2541
      %v2543 = vpop.f32.mrb[0].mxu0
      %v2544 = vpop.f32.mrb[0].mxu0
      %v2545 = vadd.f32 %v2353, %v2544
      %v2546 = vpop.f32.mrb[0].mxu0
      %2547 = vmatprep.mubr.bf16.mxu0 0
      %2548 = vmatmul.mubr.bf16.gmra.mrb[0].mxu0 %v2330
      %v2549 = vpop.f32.mrb[0].mxu0
      %v2550 = vadd.f32 %v2353, %v2549
      %v2551 = vpop.f32.mrb[0].mxu0
      %v2552 = vpop.f32.mrb[0].mxu0
      %v2553 = vadd.f32 %v2353, %v2552
      %v2554 = vpop.f32.mrb[0].mxu0
      %2555 = vmatprep.mubr.bf16.mxu0 0
      %2556 = vmatmul.mubr.bf16.gmra.mrb[0].mxu0 %v2331
      %v2557 = vpop.f32.mrb[0].mxu0
      %v2558 = vadd.f32 %v2353, %v2557
      %v2559 = vpop.f32.mrb[0].mxu0
      %v2560 = vpop.f32.mrb[0].mxu0
      %v2561 = vadd.f32 %v2353, %v2560
      %v2562 = vpop.f32.mrb[0].mxu0
      %2563 = vdwg.mxu0
      %v2564 = vld [vmem:[%s326] sm:$0xf]
      %v2565 = vld [vmem:[%s326 + $0x4] sm:$0xf]
      %v2566 = vld [vmem:[%s326 + $0x8] sm:$0xf]
      %v2567 = vld [vmem:[%s326 + $0xc] sm:$0xf]
      %v2568 = vld [vmem:[%s326 + $0x10] sm:$0xf]
      %v2569 = vld [vmem:[%s326 + $0x14] sm:$0xf]
      %v2570 = vld [vmem:[%s326 + $0x18] sm:$0xf]
      %v2571 = vld [vmem:[%s326 + $0x1c] sm:$0xf]
      %v2572 = vld [vmem:[%s326 + $0x20] sm:$0xf]
      %v2573 = vld [vmem:[%s326 + $0x24] sm:$0xf]
      %v2574 = vld [vmem:[%s326 + $0x28] sm:$0xf]
      %v2575 = vld [vmem:[%s326 + $0x2c] sm:$0xf]
      %v2576 = vld [vmem:[%s326 + $0x30] sm:$0xf]
      %v2577 = vld [vmem:[%s326 + $0x34] sm:$0xf]
      %v2578 = vld [vmem:[%s326 + $0x38] sm:$0xf]
      %v2579 = vld [vmem:[%s326 + $0x3c] sm:$0xf]
      %v2580 = vld [vmem:[%s326 + $0x40] sm:$0xf]
      %v2581 = vld [vmem:[%s326 + $0x44] sm:$0xf]
      %v2582 = vld [vmem:[%s326 + $0x48] sm:$0xf]
      %v2583 = vld [vmem:[%s326 + $0x4c] sm:$0xf]
      %v2584 = vld [vmem:[%s326 + $0x50] sm:$0xf]
      %v2585 = vld [vmem:[%s326 + $0x54] sm:$0xf]
      %v2586 = vld [vmem:[%s326 + $0x58] sm:$0xf]
      %v2587 = vld [vmem:[%s326 + $0x5c] sm:$0xf]
      %v2588 = vld [vmem:[%s326 + $0x60] sm:$0xf]
      %v2589 = vld [vmem:[%s326 + $0x64] sm:$0xf]
      %v2590 = vld [vmem:[%s326 + $0x68] sm:$0xf]
      %v2591 = vld [vmem:[%s326 + $0x6c] sm:$0xf]
      %v2592 = vld [vmem:[%s326 + $0x70] sm:$0xf]
      %v2593 = vld [vmem:[%s326 + $0x74] sm:$0xf]
      %v2594 = vld [vmem:[%s326 + $0x78] sm:$0xf]
      %v2595 = vld [vmem:[%s326 + $0x7c] sm:$0xf]
      %v2596 = vunpack.c.l.bf16 %v2564
      %v2597 = vunpack.c.l.bf16 %v2565
      %v2598 = vunpack.c.l.bf16 %v2566
      %v2599 = vunpack.c.l.bf16 %v2567
      %v2600 = vunpack.c.l.bf16 %v2568
      %v2601 = vunpack.c.l.bf16 %v2569
      %v2602 = vunpack.c.l.bf16 %v2570
      %v2603 = vunpack.c.l.bf16 %v2571
      %v2604 = vunpack.c.l.bf16 %v2572
      %v2605 = vunpack.c.l.bf16 %v2573
      %v2606 = vunpack.c.l.bf16 %v2574
      %v2607 = vunpack.c.l.bf16 %v2575
      %v2608 = vunpack.c.l.bf16 %v2576
      %v2609 = vunpack.c.l.bf16 %v2577
      %v2610 = vunpack.c.l.bf16 %v2578
      %v2611 = vunpack.c.l.bf16 %v2579
      %v2612 = vunpack.c.l.bf16 %v2580
      %v2613 = vunpack.c.l.bf16 %v2581
      %v2614 = vunpack.c.l.bf16 %v2582
      %v2615 = vunpack.c.l.bf16 %v2583
      %v2616 = vunpack.c.l.bf16 %v2584
      %v2617 = vunpack.c.l.bf16 %v2585
      %v2618 = vunpack.c.l.bf16 %v2586
      %v2619 = vunpack.c.l.bf16 %v2587
      %v2620 = vunpack.c.l.bf16 %v2588
      %v2621 = vunpack.c.l.bf16 %v2589
      %v2622 = vunpack.c.l.bf16 %v2590
      %v2623 = vunpack.c.l.bf16 %v2591
      %v2624 = vunpack.c.l.bf16 %v2592
      %v2625 = vunpack.c.l.bf16 %v2593
      %v2626 = vunpack.c.l.bf16 %v2594
      %v2627 = vunpack.c.l.bf16 %v2595
      %v2628 = vadd.f32 %v2438, %v2596
      %v2629 = vadd.f32 %v2441, %v2597
      %v2630 = vadd.f32 %v2446, %v2598
      %v2631 = vadd.f32 %v2449, %v2599
      %v2632 = vadd.f32 %v2454, %v2600
      %v2633 = vadd.f32 %v2457, %v2601
      %v2634 = vadd.f32 %v2462, %v2602
      %v2635 = vadd.f32 %v2465, %v2603
      %v2636 = vadd.f32 %v2470, %v2604
      %v2637 = vadd.f32 %v2473, %v2605
      %v2638 = vadd.f32 %v2478, %v2606
      %v2639 = vadd.f32 %v2481, %v2607
      %v2640 = vadd.f32 %v2486, %v2608
      %v2641 = vadd.f32 %v2489, %v2609
      %v2642 = vadd.f32 %v2494, %v2610
      %v2643 = vadd.f32 %v2497, %v2611
      %v2644 = vadd.f32 %v2502, %v2612
      %v2645 = vadd.f32 %v2505, %v2613
      %v2646 = vadd.f32 %v2510, %v2614
      %v2647 = vadd.f32 %v2513, %v2615
      %v2648 = vadd.f32 %v2518, %v2616
      %v2649 = vadd.f32 %v2521, %v2617
      %v2650 = vadd.f32 %v2526, %v2618
      %v2651 = vadd.f32 %v2529, %v2619
      %v2652 = vadd.f32 %v2534, %v2620
      %v2653 = vadd.f32 %v2537, %v2621
      %v2654 = vadd.f32 %v2542, %v2622
      %v2655 = vadd.f32 %v2545, %v2623
      %v2656 = vadd.f32 %v2550, %v2624
      %v2657 = vadd.f32 %v2553, %v2625
      %v2658 = vadd.f32 %v2558, %v2626
      %v2659 = vadd.f32 %v2561, %v2627
      %2660 = vst [vmem:[%s336] sm:$0xff] %v2628
      %2661 = vst [vmem:[%s336 + $0x8] sm:$0xff] %v2629
      %2662 = vst [vmem:[%s336 + $0x10] sm:$0xff] %v2630
      %2663 = vst [vmem:[%s336 + $0x18] sm:$0xff] %v2631
      %2664 = vst [vmem:[%s336 + $0x20] sm:$0xff] %v2632
      %2665 = vst [vmem:[%s336 + $0x28] sm:$0xff] %v2633
      %2666 = vst [vmem:[%s336 + $0x30] sm:$0xff] %v2634
      %2667 = vst [vmem:[%s336 + $0x38] sm:$0xff] %v2635
      %2668 = vst [vmem:[%s336 + $0x40] sm:$0xff] %v2636
      %2669 = vst [vmem:[%s336 + $0x48] sm:$0xff] %v2637
      %2670 = vst [vmem:[%s336 + $0x50] sm:$0xff] %v2638
      %2671 = vst [vmem:[%s336 + $0x58] sm:$0xff] %v2639
      %2672 = vst [vmem:[%s336 + $0x60] sm:$0xff] %v2640
      %2673 = vst [vmem:[%s336 + $0x68] sm:$0xff] %v2641
      %2674 = vst [vmem:[%s336 + $0x70] sm:$0xff] %v2642
      %2675 = vst [vmem:[%s336 + $0x78] sm:$0xff] %v2643
      %2676 = vst [vmem:[%s336 + $0x80] sm:$0xff] %v2644
      %2677 = vst [vmem:[%s336 + $0x88] sm:$0xff] %v2645
      %2678 = vst [vmem:[%s336 + $0x90] sm:$0xff] %v2646
      %2679 = vst [vmem:[%s336 + $0x98] sm:$0xff] %v2647
      %2680 = vst [vmem:[%s336 + $0xa0] sm:$0xff] %v2648
      %2681 = vst [vmem:[%s336 + $0xa8] sm:$0xff] %v2649
      %2682 = vst [vmem:[%s336 + $0xb0] sm:$0xff] %v2650
      %2683 = vst [vmem:[%s336 + $0xb8] sm:$0xff] %v2651
      %2684 = vst [vmem:[%s336 + $0xc0] sm:$0xff] %v2652
      %2685 = vst [vmem:[%s336 + $0xc8] sm:$0xff] %v2653
      %2686 = vst [vmem:[%s336 + $0xd0] sm:$0xff] %v2654
      %2687 = vst [vmem:[%s336 + $0xd8] sm:$0xff] %v2655
      %2688 = vst [vmem:[%s336 + $0xe0] sm:$0xff] %v2656
      %2689 = vst [vmem:[%s336 + $0xe8] sm:$0xff] %v2657
      %2690 = vst [vmem:[%s336 + $0xf0] sm:$0xff] %v2658
      %2691 = vst [vmem:[%s336 + $0xf8] sm:$0xff] %v2659
      %s2692 = smul.u32 32, %s23
      %p2693 = scmp.lt.s32.totalorder %s22, 1
      %s2694 = scalar_select %p2693, %s22, 1
      %p2695 = scmp.lt.s32.totalorder %s2692, 31
      %s2696 = scalar_select %p2695, %s2692, 31
      %s2697 = smul.addr %s2694, 32
      %s2698 = sadd.s32 %s2696, %s2697
      %s2699 = smul.addr %s2698, 8
      %s2700 = scalar_lea.vmem %s7, %s2699
      // Predicated region
      $region49: #{inverted_residual_block.1} parent=47 // pred_check
        %p2701 = pneg %p209
      $region50: #{inverted_residual_block.1} parent=47 // pred_check_branch
        %2703 = sbr.rel (%p2701) target = $region52
      $region51: #{inverted_residual_block.1} parent=47 // pred_region
        %s2704 = smul.u32 32, %s23
      $region52: #{inverted_residual_block.1} parent=47 // pred_fallthru
        _
    $region48: #{inverted_residual_block.1} parent=5 // pred_fallthru
      _
    %p2705 = scmp.le.s32.totalorder 2, %s13
    // Predicated region
    $region53: #{inverted_residual_block.1} parent=5 // pred_check
      %p2706 = pneg %p2705
    $region54: #{inverted_residual_block.1} parent=5 // pred_check_branch
      %2708 = sbr.rel (%p2706) target = $region56
    $region55: #{inverted_residual_block.1} parent=5 // pred_region
      %s2709 = ssub.s32 %s13, 2
      // Predicated region
      $region57: #{inverted_residual_block.1} parent=55 // pred_check
        %p2710 = pneg %p215
      $region58: #{inverted_residual_block.1} parent=55 // pred_check_branch
        %2712 = sbr.rel (%p2710) target = $region60
      $region59: #{inverted_residual_block.1} parent=55 // pred_region
        %s2713 = smul.u32 32, %s25
        %p2714 = scmp.lt.s32.totalorder %s24, 1
        %s2715 = scalar_select %p2714, %s24, 1
        %p2716 = scmp.lt.s32.totalorder %s2713, 31
        %s2717 = scalar_select %p2716, %s2713, 31
        %s2718 = smul.addr %s2715, 32
        %s2719 = sadd.s32 %s2717, %s2718
        %s2720 = smul.addr %s2719, 8
        %s2721 = scalar_lea.vmem %s7, %s2720
      $region60: #{inverted_residual_block.1} parent=55 // pred_fallthru
        _
    $region56: #{inverted_residual_block.1} parent=5 // pred_fallthru
      _
  $region6: #{inverted_residual_block.1} parent=0 // loop_footer
    %s17 = sadd.s32 1, %s13
  $region7: #{inverted_residual_block.1} parent=0 // loop_footer_branch
    %12 = sbr.rel target = $region3
  $region8: #{inverted_residual_block.1} parent=0 // loop_exit
    _

</llo_original>
